<compile_context>
chip_gen: v7x
topology: tpu7x:2x2x1
jax: 0.10.0
libtpu: 0.0.40
codegen_flags: <defaults>
</compile_context>

<pallas_src>
import functools
import math

import jax
import jax.numpy as jnp
from jax.experimental import pallas as pl
from jax.experimental.pallas import tpu as pltpu

EPS = 1e-5
NEG_SLOPE = 0.01   # F.leaky_relu default
LANES = 128


def _round_up(x, m):
    return (x + m - 1) // m * m


def _leaky_relu(x):
    return jnp.where(x >= 0, x, NEG_SLOPE * x)


# ---------- kernel 1: 1x1 conv + per-tile BN1 partial statistics -------------
def conv1_stats_kernel(x_ref, w_ref, h_ref, s_ref, q_ref):
    # x: (r, c2p) bf16    w: (c2p, cp) bf16 (resident)
    # h: (r, cp)  bf16    pre-BN conv1 output (bf16-rounded)
    # s/q: (1, 1, cp) f32 per-tile partial sum / sum-of-squares of the rounded h
    h = jnp.dot(x_ref[...], w_ref[...], preferred_element_type=jnp.float32)
    hb = h.astype(jnp.bfloat16)
    h_ref[...] = hb
    hf = hb.astype(jnp.float32)          # stats on the value BN1 will actually see
    cp = hf.shape[-1]
    s_ref[...] = jnp.sum(hf, axis=0, keepdims=True).reshape(1, 1, cp)
    q_ref[...] = jnp.sum(hf * hf, axis=0, keepdims=True).reshape(1, 1, cp)


# -- kernel 2: fused BN1+lrelu, 3x3 conv as three K=3*cp matmuls, BN2 stats ---
def conv2_stats_kernel(h_ref, w2_ref, sc_ref, sh_ref, y_ref, s_ref, q_ref,
                       *, height, width):
    # h_ref : (1, H*W, cp)   bf16  conv1 pre-BN output, one image per grid step
    # w2_ref: (3, 3*cp, c2p) bf16  resident; contraction axis order = (kw, cin)
    # sc/sh : (1, cp)        f32   folded BN1 scale / shift
    # y_ref : (1, H*W, c2p)  bf16  pre-BN2 conv2 output (bf16-rounded)
    # s/q   : (1, 1, c2p)    f32   per-image partial sum / sum-of-squares
    hw = height * width
    cp = h_ref.shape[-1]
    c2p = w2_ref.shape[-1]
    bf16 = jnp.bfloat16

    # BN1 scale/shift + leaky_relu, kept in bf16 (native VPU dtype on v6e/v7x).
    sc = sc_ref[...].astype(bf16)
    sh = sh_ref[...].astype(bf16)
    h1 = _leaky_relu(h_ref[0] * sc + sh).reshape(height, width, cp)

    # Column (kw) taps: explicit zero columns provide the conv's zero padding,
    # so no per-pixel pad mask is needed.  The three taps are concatenated
    # along lanes -> one K = 3*cp contraction per row (kh) tap.
    zc = jnp.zeros((height, 1, cp), bf16)
    left = jnp.concatenate([zc, h1[:, :width - 1, :]], axis=1)    # in[r, c-1]
    right = jnp.concatenate([h1[:, 1:, :], zc], axis=1)           # in[r, c+1]
    a = jnp.concatenate([left, h1, right], axis=-1).reshape(hw, 3 * cp)

    # Row (kh) taps: shift by one full image row (W rows, sublane-aligned).
    zr = jnp.zeros((width, 3 * cp), bf16)
    a_up = jnp.concatenate([zr, a[:hw - width]], axis=0)          # in[r-1, *]
    a_dn = jnp.concatenate([a[width:], zr], axis=0)               # in[r+1, *]

    acc = jnp.dot(a_up, w2_ref[0], preferred_element_type=jnp.float32)
    acc += jnp.dot(a, w2_ref[1], preferred_element_type=jnp.float32)
    acc += jnp.dot(a_dn, w2_ref[2], preferred_element_type=jnp.float32)

    yb = acc.astype(bf16)
    y_ref[0] = yb
    yf = yb.astype(jnp.float32)          # stats on the value BN2 will actually see
    s_ref[...] = jnp.sum(yf, axis=0, keepdims=True).reshape(1, 1, c2p)
    q_ref[...] = jnp.sum(yf * yf, axis=0, keepdims=True).reshape(1, 1, c2p)


# ------------- kernel 3: fused BN2 scale/shift + lrelu + residual ------------
def bn2_residual_kernel(y_ref, x_ref, sc_ref, sh_ref, o_ref):
    y = y_ref[...].astype(jnp.float32) * sc_ref[...] + sh_ref[...]
    o_ref[...] = (_leaky_relu(y) + x_ref[...].astype(jnp.float32)
                  ).astype(o_ref.dtype)


def _bn_fold(s, q, gamma, beta, count):
    """Fold train-mode BN (biased variance) + affine into one scale/shift."""
    mean = s / count
    var = jnp.maximum(q / count - mean * mean, 0.0)
    scale = gamma * jax.lax.rsqrt(var + EPS)
    return scale, beta - mean * scale


def _vmem_capacity_bytes():
    try:
        return int(pltpu.get_tpu_info().vmem_capacity_bytes)
    except Exception:
        return 64 * 1024 * 1024          # conservative (v7x per-core VMEM)


def _pick_row_tile(total, cap):
    """Largest divisor of `total` that is a multiple of 16 (else 8) and <= cap."""
    best16 = best8 = 0
    i = 1
    while i * i <= total:
        if total % i == 0:
            for d in (i, total // i):
                if d <= cap:
                    if d % 16 == 0:
                        best16 = max(best16, d)
                    elif d % 8 == 0:
                        best8 = max(best8, d)
        i += 1
    return best16 or best8 or total


@functools.partial(jax.jit, static_argnames=("row_tile", "vmem_limit"))
def _forward_impl(x_nchw, w1, g1, be1, w2, g2, be2, *, row_tile, vmem_limit):
    N, C2, H, W = x_nchw.shape
    C = C2 // 2
    NHW = N * H * W
    HW = H * W
    f32 = jnp.float32
    bf16 = jnp.bfloat16

    # lane-dense channel padding (multiple of 128): unmasked stores + full MXU N
    cp = _round_up(C, LANES)
    c2p = _round_up(C2, LANES)
    r = row_tile
    nt = NHW // r

    # NCHW -> NHWC with the f32->bf16 cast fused into the same HBM pass.
    x2d = jnp.transpose(x_nchw, (0, 2, 3, 1)).astype(bf16).reshape(NHW, C2)
    x2d = jnp.pad(x2d, ((0, 0), (0, c2p - C2)))

    w1p = jnp.pad(w1, ((0, c2p - C2), (0, cp - C))).astype(bf16)
    # (kh, kw, cin, cout) -> (kh, kw*cp + cin, cout): kw taps concatenated along
    # the contraction axis so the 3x3 conv becomes three K = 3*cp matmuls.
    w2cat = jnp.pad(w2, ((0, 0), (0, 0), (0, cp - C), (0, c2p - C2))
                    ).astype(bf16).reshape(3, 3 * cp, c2p)
    g1p = jnp.pad(g1, (0, cp - C)).reshape(1, cp).astype(f32)
    be1p = jnp.pad(be1, (0, cp - C)).reshape(1, cp).astype(f32)
    g2p = jnp.pad(g2, (0, c2p - C2)).reshape(1, c2p).astype(f32)
    be2p = jnp.pad(be2, (0, c2p - C2)).reshape(1, c2p).astype(f32)

    cparams = pltpu.CompilerParams(
        dimension_semantics=("parallel",),      # per-step partial stats -> no
        vmem_limit_bytes=vmem_limit)            # cross-iteration accumulation

    # ---- kernel 1: conv1 (1x1) + per-tile BN1 partial stats -----------------
    h_pre, s1, q1 = pl.pallas_call(
        conv1_stats_kernel,
        grid=(nt,),
        in_specs=[
            pl.BlockSpec((r, c2p), lambda i: (i, 0)),
            pl.BlockSpec((c2p, cp), lambda i: (0, 0)),        # resident weight
        ],
        out_specs=(
            pl.BlockSpec((r, cp), lambda i: (i, 0)),
            pl.BlockSpec((1, 1, cp), lambda i: (i, 0, 0)),    # per-tile partials
            pl.BlockSpec((1, 1, cp), lambda i: (i, 0, 0)),
        ),
        out_shape=(
            jax.ShapeDtypeStruct((NHW, cp), bf16),
            jax.ShapeDtypeStruct((nt, 1, cp), f32),
            jax.ShapeDtypeStruct((nt, 1, cp), f32),
        ),
        compiler_params=cparams,
        cost_estimate=pl.CostEstimate(
            flops=2 * NHW * c2p * cp, transcendentals=0,
            bytes_accessed=NHW * c2p * 2 + NHW * cp * 2 + c2p * cp * 2),
    )(x2d, w1p)

    sc1, sh1 = _bn_fold(jnp.sum(s1, axis=0), jnp.sum(q1, axis=0),
                        g1p, be1p, float(NHW))

    # ---- kernel 2: BN1+lrelu fused, 3x3 conv, per-image BN2 partial stats ---
    # h_pre is consumed straight from HBM, one image per grid step; no padded /
    # haloed copy of the intermediate is ever materialized in HBM.
    h_img = h_pre.reshape(N, HW, cp)
    y_pre, s2, q2 = pl.pallas_call(
        functools.partial(conv2_stats_kernel, height=H, width=W),
        grid=(N,),
        in_specs=[
            pl.BlockSpec((1, HW, cp), lambda n: (n, 0, 0)),
            pl.BlockSpec((3, 3 * cp, c2p), lambda n: (0, 0, 0)),  # resident
            pl.BlockSpec((1, cp), lambda n: (0, 0)),
            pl.BlockSpec((1, cp), lambda n: (0, 0)),
        ],
        out_specs=(
            pl.BlockSpec((1, HW, c2p), lambda n: (n, 0, 0)),
            pl.BlockSpec((1, 1, c2p), lambda n: (n, 0, 0)),
            pl.BlockSpec((1, 1, c2p), lambda n: (n, 0, 0)),
        ),
        out_shape=(
            jax.ShapeDtypeStruct((N, HW, c2p), bf16),
            jax.ShapeDtypeStruct((N, 1, c2p), f32),
            jax.ShapeDtypeStruct((N, 1, c2p), f32),
        ),
        compiler_params=cparams,
        cost_estimate=pl.CostEstimate(
            flops=2 * 9 * NHW * cp * c2p, transcendentals=0,
            bytes_accessed=NHW * cp * 2 + NHW * c2p * 2 + 9 * cp * c2p * 2),
    )(h_img, w2cat, sc1, sh1)

    sc2, sh2 = _bn_fold(jnp.sum(s2, axis=0), jnp.sum(q2, axis=0),
                        g2p, be2p, float(NHW))

    # ---- kernel 3: BN2 + lrelu + residual (bf16 in, f32 out) ----------------
    out2d = pl.pallas_call(
        bn2_residual_kernel,
        grid=(nt,),
        in_specs=[
            pl.BlockSpec((r, c2p), lambda i: (i, 0)),
            pl.BlockSpec((r, c2p), lambda i: (i, 0)),
            pl.BlockSpec((1, c2p), lambda i: (0, 0)),
            pl.BlockSpec((1, c2p), lambda i: (0, 0)),
        ],
        out_specs=pl.BlockSpec((r, c2p), lambda i: (i, 0)),
        out_shape=jax.ShapeDtypeStruct((NHW, c2p), f32),
        compiler_params=cparams,
        cost_estimate=pl.CostEstimate(
            flops=6 * NHW * c2p, transcendentals=0,
            bytes_accessed=NHW * c2p * (2 + 2 + 4)),
    )(y_pre.reshape(NHW, c2p), x2d, sc2, sh2)

    out = out2d.reshape(N, H, W, c2p)[..., :C2]
    return jnp.transpose(out, (0, 3, 1, 2))


def residual_block_forward(x_nchw, w1, g1, be1, w2, g2, be2):
    """x_nchw: (N, 2C, H, W). w1: (2C, C). w2: (3, 3, C, 2C) (kh, kw, cin, cout).
    Conv biases are intentionally not used: a per-channel bias cancels exactly
    under train-mode BatchNorm."""
    N, C2, H, W = x_nchw.shape
    NHW = N * H * W
    c2p = _round_up(C2, LANES)

    # Generation-aware tiling: v5e/v6e expose 128 MiB VMEM -> big row tiles and
    # a high scoped-VMEM limit; v7x exposes 64 MiB per core -> smaller ones.
    vmem_cap = _vmem_capacity_bytes()
    vmem_limit = int(min(vmem_cap * 3 // 4, 96 * 1024 * 1024))
    row_cap = 8192 if vmem_cap >= 100 * 1024 * 1024 else 4096
    row_cap = min(row_cap, max(16, (vmem_limit // 2) // (16 * c2p)), NHW)
    row_tile = _pick_row_tile(NHW, row_cap)

    return _forward_impl(x_nchw, w1, g1, be1, w2, g2, be2,
                         row_tile=row_tile, vmem_limit=vmem_limit)


def init_params(channels, key):
    """Deterministic params in PyTorch layouts, plus matmul-layout versions."""
    C, C2 = channels, channels * 2
    k1, k2, k3, k4 = jax.random.split(key, 4)
    bound1 = 1.0 / math.sqrt(C2 * 1 * 1)           # conv1 fan_in
    w1_pt = jax.random.uniform(k1, (C, C2, 1, 1), jnp.float32, -bound1, bound1)
    b1_pt = jax.random.uniform(k2, (C,), jnp.float32, -bound1, bound1)
    bound2 = 1.0 / math.sqrt(C * 3 * 3)            # conv2 fan_in
    w2_pt = jax.random.uniform(k3, (C2, C, 3, 3), jnp.float32, -bound2, bound2)
    b2_pt = jax.random.uniform(k4, (C2,), jnp.float32, -bound2, bound2)
    return dict(
        # matmul layouts (conv biases are NOT passed to the kernels: a
        # per-channel bias cancels exactly under train-mode BatchNorm)
        w1=jnp.transpose(w1_pt[:, :, 0, 0], (1, 0)),           # (2C, C)
        w2=jnp.transpose(w2_pt, (2, 3, 1, 0)),                 # (3, 3, C, 2C)
        g1=jnp.ones((C,), jnp.float32), be1=jnp.zeros((C,), jnp.float32),
        g2=jnp.ones((C2,), jnp.float32), be2=jnp.zeros((C2,), jnp.float32),
        # PyTorch-layout copies (with biases) for the pure-JAX reference.
        w1_pt=w1_pt, b1_pt=b1_pt, w2_pt=w2_pt, b2_pt=b2_pt,
    )


def _reference_forward(x, p):
    """Pure-JAX f32 reference mirroring the PyTorch module (NCHW, train BN)."""
    def bn(h, gamma, beta):
        mean = jnp.mean(h, axis=(0, 2, 3), keepdims=True)
        var = jnp.mean((h - mean) ** 2, axis=(0, 2, 3), keepdims=True)
        return ((h - mean) * jax.lax.rsqrt(var + EPS)
                * gamma.reshape(1, -1, 1, 1) + beta.reshape(1, -1, 1, 1))

    def lrelu(h):
        return jnp.where(h >= 0, h, NEG_SLOPE * h)

    h = jax.lax.conv_general_dilated(
        x, p["w1_pt"], (1, 1), "VALID",
        dimension_numbers=("NCHW", "OIHW", "NCHW"))
    h = h + p["b1_pt"].reshape(1, -1, 1, 1)
    h = lrelu(bn(h, p["g1"], p["be1"]))
    h = jax.lax.conv_general_dilated(
        h, p["w2_pt"], (1, 1), ((1, 1), (1, 1)),
        dimension_numbers=("NCHW", "OIHW", "NCHW"))
    h = h + p["b2_pt"].reshape(1, -1, 1, 1)
    h = lrelu(bn(h, p["g2"], p["be2"]))
    return h + x


if __name__ == "__main__":
    channels = 4                      # ResidualBlock(4): input has 2*channels = 8
    N, H, W = 2, 16, 16
    key = jax.random.PRNGKey(0)
    kx, kp = jax.random.split(key)
    x = jax.random.normal(kx, (N, 2 * channels, H, W), jnp.float32)

    p = init_params(channels, kp)

    out = residual_block_forward(
        x, p["w1"], p["g1"], p["be1"], p["w2"], p["g2"], p["be2"])
    out = jax.block_until_ready(out)

    assert out.shape == x.shape and out.dtype == jnp.float32

    ref = _reference_forward(x, p)
    err = float(jnp.max(jnp.abs(out - ref)))
    # bf16 storage / MXU operands vs f32 reference; BN renormalization keeps
    # the rounding error well inside this tolerance.
    if err > 1e-1:
        raise AssertionError(f"mismatch vs reference: max abs err = {err}")

    print("KERNEL_OK")
</pallas_src>

<mosaic_0001>
module attributes {stable_mosaic.version = 11 : i64} {
  func.func @conv1_stats_kernel(%arg0: i32, %arg1: memref<512x128xbf16, #tpu.memory_space<vmem>>, %arg2: memref<128x128xbf16, #tpu.memory_space<vmem>>, %arg3: memref<512x128xbf16, #tpu.memory_space<vmem>>, %arg4: memref<1x1x128xf32, #tpu.memory_space<vmem>>, %arg5: memref<1x1x128xf32, #tpu.memory_space<vmem>>) attributes {dimension_semantics = [#tpu.dimension_semantics<parallel>], iteration_bounds = array<i64: 1>, scalar_prefetch = 0 : i64, scratch_operands = 0 : i64, tpu.core_type = #tpu.core_type<tc>, window_params = [{transform_indices = @transform_0, window_bounds = array<i64: 512, 128>}, {pipeline_mode = #tpu.pipeline_mode<synchronous>, transform_indices = @transform_1, window_bounds = array<i64: 128, 128>}, {transform_indices = @transform_2, window_bounds = array<i64: 512, 128>}, {transform_indices = @transform_3, window_bounds = array<i64: 1, 1, 128>}, {transform_indices = @transform_4, window_bounds = array<i64: 1, 1, 128>}]} {
    %c0 = arith.constant 0 : index
    %c0_0 = arith.constant 0 : index
    %0 = vector.load %arg1[%c0, %c0_0] : memref<512x128xbf16, #tpu.memory_space<vmem>>, vector<512x128xbf16>
    %c0_1 = arith.constant 0 : index
    %c0_2 = arith.constant 0 : index
    %1 = vector.load %arg2[%c0_1, %c0_2] : memref<128x128xbf16, #tpu.memory_space<vmem>>, vector<128x128xbf16>
    %cst = arith.constant dense<0.000000e+00> : vector<512x128xf32>
    %2 = tpu.matmul %0, %1, %cst {dimension_numbers = #tpu.dot_dimension_numbers<[1], [0], [0], [1], [0, 0, 1, 1], [], []>} : vector<512x128xbf16>, vector<128x128xbf16>, vector<512x128xf32> -> vector<512x128xf32>
    %3 = arith.truncf %2 : vector<512x128xf32> to vector<512x128xbf16>
    %c0_3 = arith.constant 0 : index
    %c0_4 = arith.constant 0 : index
    %4 = vector.load %arg3[%c0_3, %c0_4] : memref<512x128xbf16, #tpu.memory_space<vmem>>, vector<512x128xbf16>
    tpu.vector_store %arg3[%c0_3, %c0_4], %3 {strides = array<i32>} : memref<512x128xbf16, #tpu.memory_space<vmem>>, vector<512x128xbf16>,
    %5 = arith.extf %3 : vector<512x128xbf16> to vector<512x128xf32>
    %cst_5 = arith.constant dense<0.000000e+00> : vector<128xf32>
    %6 = vector.multi_reduction <add>, %5, %cst_5 [0] : vector<512x128xf32> to vector<128xf32>
    %7 = vector.shape_cast %6 : vector<128xf32> to vector<1x128xf32>
    %8 = vector.shape_cast %7 : vector<1x128xf32> to vector<1x1x128xf32>
    %c0_6 = arith.constant 0 : index
    %c0_7 = arith.constant 0 : index
    %c0_8 = arith.constant 0 : index
    %9 = vector.load %arg4[%c0_6, %c0_7, %c0_8] : memref<1x1x128xf32, #tpu.memory_space<vmem>>, vector<1x1x128xf32>
    tpu.vector_store %arg4[%c0_6, %c0_7, %c0_8], %8 {strides = array<i32>} : memref<1x1x128xf32, #tpu.memory_space<vmem>>, vector<1x1x128xf32>,
    %10 = arith.mulf %5, %5 : vector<512x128xf32>
    %cst_9 = arith.constant dense<0.000000e+00> : vector<128xf32>
    %11 = vector.multi_reduction <add>, %10, %cst_9 [0] : vector<512x128xf32> to vector<128xf32>
    %12 = vector.shape_cast %11 : vector<128xf32> to vector<1x128xf32>
    %13 = vector.shape_cast %12 : vector<1x128xf32> to vector<1x1x128xf32>
    %c0_10 = arith.constant 0 : index
    %c0_11 = arith.constant 0 : index
    %c0_12 = arith.constant 0 : index
    %14 = vector.load %arg5[%c0_10, %c0_11, %c0_12] : memref<1x1x128xf32, #tpu.memory_space<vmem>>, vector<1x1x128xf32>
    tpu.vector_store %arg5[%c0_10, %c0_11, %c0_12], %13 {strides = array<i32>} : memref<1x1x128xf32, #tpu.memory_space<vmem>>, vector<1x1x128xf32>,
    return
  }
  func.func @transform_0(%arg0: i32) -> (i32, i32) {
    %c0_i32 = arith.constant 0 : i32
    %c0_i32_0 = arith.constant 0 : i32
    return %arg0, %c0_i32 : i32, i32
  }
  func.func @transform_1(%arg0: i32) -> (i32, i32) {
    %c0_i32 = arith.constant 0 : i32
    %c0_i32_0 = arith.constant 0 : i32
    %c0_i32_1 = arith.constant 0 : i32
    return %c0_i32, %c0_i32_0 : i32, i32
  }
  func.func @transform_2(%arg0: i32) -> (i32, i32) {
    %c0_i32 = arith.constant 0 : i32
    %c0_i32_0 = arith.constant 0 : i32
    return %arg0, %c0_i32 : i32, i32
  }
  func.func @transform_3(%arg0: i32) -> (i32, i32, i32) {
    %c0_i32 = arith.constant 0 : i32
    %c0_i32_0 = arith.constant 0 : i32
    %c0_i32_1 = arith.constant 0 : i32
    return %arg0, %c0_i32, %c0_i32_0 : i32, i32, i32
  }
  func.func @transform_4(%arg0: i32) -> (i32, i32, i32) {
    %c0_i32 = arith.constant 0 : i32
    %c0_i32_0 = arith.constant 0 : i32
    %c0_i32_1 = arith.constant 0 : i32
    return %arg0, %c0_i32, %c0_i32_0 : i32, i32, i32
  }
}

module attributes {stable_mosaic.version = 11 : i64} {
  func.func @conv2_stats_kernel(%arg0: i32, %arg1: memref<1x256x128xbf16, #tpu.memory_space<vmem>>, %arg2: memref<3x384x128xbf16, #tpu.memory_space<vmem>>, %arg3: memref<1x128xf32, #tpu.memory_space<vmem>>, %arg4: memref<1x128xf32, #tpu.memory_space<vmem>>, %arg5: memref<1x256x128xbf16, #tpu.memory_space<vmem>>, %arg6: memref<1x1x128xf32, #tpu.memory_space<vmem>>, %arg7: memref<1x1x128xf32, #tpu.memory_space<vmem>>) attributes {dimension_semantics = [#tpu.dimension_semantics<parallel>], iteration_bounds = array<i64: 2>, scalar_prefetch = 0 : i64, scratch_operands = 0 : i64, tpu.core_type = #tpu.core_type<tc>, window_params = [{transform_indices = @transform_0, window_bounds = array<i64: 1, 256, 128>}, {pipeline_mode = #tpu.pipeline_mode<synchronous>, transform_indices = @transform_1, window_bounds = array<i64: 3, 384, 128>}, {pipeline_mode = #tpu.pipeline_mode<synchronous>, transform_indices = @transform_2, window_bounds = array<i64: 1, 128>}, {pipeline_mode = #tpu.pipeline_mode<synchronous>, transform_indices = @transform_3, window_bounds = array<i64: 1, 128>}, {transform_indices = @transform_4, window_bounds = array<i64: 1, 256, 128>}, {transform_indices = @transform_5, window_bounds = array<i64: 1, 1, 128>}, {transform_indices = @transform_6, window_bounds = array<i64: 1, 1, 128>}]} {
    %c0 = arith.constant 0 : index
    %c0_0 = arith.constant 0 : index
    %0 = vector.load %arg3[%c0, %c0_0] : memref<1x128xf32, #tpu.memory_space<vmem>>, vector<1x128xf32>
    %1 = arith.truncf %0 : vector<1x128xf32> to vector<1x128xbf16>
    %c0_1 = arith.constant 0 : index
    %c0_2 = arith.constant 0 : index
    %2 = vector.load %arg4[%c0_1, %c0_2] : memref<1x128xf32, #tpu.memory_space<vmem>>, vector<1x128xf32>
    %3 = arith.truncf %2 : vector<1x128xf32> to vector<1x128xbf16>
    %c0_3 = arith.constant 0 : index
    %c0_4 = arith.constant 0 : index
    %c0_5 = arith.constant 0 : index
    %4 = vector.load %arg1[%c0_3, %c0_4, %c0_5] : memref<1x256x128xbf16, #tpu.memory_space<vmem>>, vector<1x256x128xbf16>
    %5 = vector.shape_cast %4 : vector<1x256x128xbf16> to vector<256x128xbf16>
    %6 = vector.broadcast %1 : vector<1x128xbf16> to vector<256x128xbf16>
    %7 = arith.mulf %5, %6 : vector<256x128xbf16>
    %8 = vector.broadcast %3 : vector<1x128xbf16> to vector<256x128xbf16>
    %9 = arith.addf %7, %8 : vector<256x128xbf16>
    %cst = arith.constant 0.000000e+00 : bf16
    %10 = vector.broadcast %cst : bf16 to vector<256x128xbf16>
    %11 = arith.cmpf oge, %9, %10 : vector<256x128xbf16>
    %cst_6 = arith.constant 1.000980e-02 : bf16
    %12 = vector.broadcast %cst_6 : bf16 to vector<256x128xbf16>
    %13 = arith.mulf %12, %9 : vector<256x128xbf16>
    %14 = arith.select %11, %9, %13 : vector<256x128xi1>, vector<256x128xbf16>
    %15 = vector.shape_cast %14 : vector<256x128xbf16> to vector<16x16x128xbf16>
    %cst_7 = arith.constant 0.000000e+00 : bf16
    %16 = vector.broadcast %cst_7 : bf16 to vector<16x1x128xbf16>
    %17 = vector.extract_strided_slice %15 {offsets = [0, 0, 0], sizes = [16, 15, 128], strides = [1, 1, 1]} : vector<16x16x128xbf16> to vector<16x15x128xbf16>
    %18 = tpu.concatenate %16, %17 in 1 : vector<16x1x128xbf16>, vector<16x15x128xbf16> -> vector<16x16x128xbf16>
    %19 = vector.extract_strided_slice %15 {offsets = [0, 1, 0], sizes = [16, 15, 128], strides = [1, 1, 1]} : vector<16x16x128xbf16> to vector<16x15x128xbf16>
    %20 = tpu.concatenate %19, %16 in 1 : vector<16x15x128xbf16>, vector<16x1x128xbf16> -> vector<16x16x128xbf16>
    %21 = tpu.concatenate %18, %15, %20 in 2 : vector<16x16x128xbf16>, vector<16x16x128xbf16>, vector<16x16x128xbf16> -> vector<16x16x384xbf16>
    %22 = vector.shape_cast %21 : vector<16x16x384xbf16> to vector<256x384xbf16>
    %cst_8 = arith.constant 0.000000e+00 : bf16
    %23 = vector.broadcast %cst_8 : bf16 to vector<16x384xbf16>
    %24 = vector.extract_strided_slice %22 {offsets = [0, 0], sizes = [240, 384], strides = [1, 1]} : vector<256x384xbf16> to vector<240x384xbf16>
    %25 = tpu.concatenate %23, %24 in 0 : vector<16x384xbf16>, vector<240x384xbf16> -> vector<256x384xbf16>
    %26 = vector.extract_strided_slice %22 {offsets = [16, 0], sizes = [240, 384], strides = [1, 1]} : vector<256x384xbf16> to vector<240x384xbf16>
    %27 = tpu.concatenate %26, %23 in 0 : vector<240x384xbf16>, vector<16x384xbf16> -> vector<256x384xbf16>
    %c0_9 = arith.constant 0 : index
    %c0_10 = arith.constant 0 : index
    %c0_11 = arith.constant 0 : index
    %28 = vector.load %arg2[%c0_9, %c0_10, %c0_11] : memref<3x384x128xbf16, #tpu.memory_space<vmem>>, vector<1x384x128xbf16>
    %29 = vector.shape_cast %28 : vector<1x384x128xbf16> to vector<384x128xbf16>
    %cst_12 = arith.constant dense<0.000000e+00> : vector<256x128xf32>
    %30 = tpu.matmul %25, %29, %cst_12 {dimension_numbers = #tpu.dot_dimension_numbers<[1], [0], [0], [1], [0, 0, 1, 1], [], []>} : vector<256x384xbf16>, vector<384x128xbf16>, vector<256x128xf32> -> vector<256x128xf32>
    %c1 = arith.constant 1 : index
    %c0_13 = arith.constant 0 : index
    %c0_14 = arith.constant 0 : index
    %31 = vector.load %arg2[%c1, %c0_13, %c0_14] : memref<3x384x128xbf16, #tpu.memory_space<vmem>>, vector<1x384x128xbf16>
    %32 = vector.shape_cast %31 : vector<1x384x128xbf16> to vector<384x128xbf16>
    %cst_15 = arith.constant dense<0.000000e+00> : vector<256x128xf32>
    %33 = tpu.matmul %22, %32, %cst_15 {dimension_numbers = #tpu.dot_dimension_numbers<[1], [0], [0], [1], [0, 0, 1, 1], [], []>} : vector<256x384xbf16>, vector<384x128xbf16>, vector<256x128xf32> -> vector<256x128xf32>
    %34 = arith.addf %30, %33 : vector<256x128xf32>
    %c2 = arith.constant 2 : index
    %c0_16 = arith.constant 0 : index
    %c0_17 = arith.constant 0 : index
    %35 = vector.load %arg2[%c2, %c0_16, %c0_17] : memref<3x384x128xbf16, #tpu.memory_space<vmem>>, vector<1x384x128xbf16>
    %36 = vector.shape_cast %35 : vector<1x384x128xbf16> to vector<384x128xbf16>
    %cst_18 = arith.constant dense<0.000000e+00> : vector<256x128xf32>
    %37 = tpu.matmul %27, %36, %cst_18 {dimension_numbers = #tpu.dot_dimension_numbers<[1], [0], [0], [1], [0, 0, 1, 1], [], []>} : vector<256x384xbf16>, vector<384x128xbf16>, vector<256x128xf32> -> vector<256x128xf32>
    %38 = arith.addf %34, %37 : vector<256x128xf32>
    %39 = arith.truncf %38 : vector<256x128xf32> to vector<256x128xbf16>
    %c0_19 = arith.constant 0 : index
    %c0_20 = arith.constant 0 : index
    %c0_21 = arith.constant 0 : index
    %40 = vector.load %arg5[%c0_19, %c0_20, %c0_21] : memref<1x256x128xbf16, #tpu.memory_space<vmem>>, vector<1x256x128xbf16>
    %41 = vector.shape_cast %40 : vector<1x256x128xbf16> to vector<256x128xbf16>
    %42 = vector.shape_cast %39 : vector<256x128xbf16> to vector<1x256x128xbf16>
    tpu.vector_store %arg5[%c0_19, %c0_20, %c0_21], %42 {strides = array<i32>} : memref<1x256x128xbf16, #tpu.memory_space<vmem>>, vector<1x256x128xbf16>,
    %43 = arith.extf %39 : vector<256x128xbf16> to vector<256x128xf32>
    %cst_22 = arith.constant dense<0.000000e+00> : vector<128xf32>
    %44 = vector.multi_reduction <add>, %43, %cst_22 [0] : vector<256x128xf32> to vector<128xf32>
    %45 = vector.shape_cast %44 : vector<128xf32> to vector<1x128xf32>
    %46 = vector.shape_cast %45 : vector<1x128xf32> to vector<1x1x128xf32>
    %c0_23 = arith.constant 0 : index
    %c0_24 = arith.constant 0 : index
    %c0_25 = arith.constant 0 : index
    %47 = vector.load %arg6[%c0_23, %c0_24, %c0_25] : memref<1x1x128xf32, #tpu.memory_space<vmem>>, vector<1x1x128xf32>
    tpu.vector_store %arg6[%c0_23, %c0_24, %c0_25], %46 {strides = array<i32>} : memref<1x1x128xf32, #tpu.memory_space<vmem>>, vector<1x1x128xf32>,
    %48 = arith.mulf %43, %43 : vector<256x128xf32>
    %cst_26 = arith.constant dense<0.000000e+00> : vector<128xf32>
    %49 = vector.multi_reduction <add>, %48, %cst_26 [0] : vector<256x128xf32> to vector<128xf32>
    %50 = vector.shape_cast %49 : vector<128xf32> to vector<1x128xf32>
    %51 = vector.shape_cast %50 : vector<1x128xf32> to vector<1x1x128xf32>
    %c0_27 = arith.constant 0 : index
    %c0_28 = arith.constant 0 : index
    %c0_29 = arith.constant 0 : index
    %52 = vector.load %arg7[%c0_27, %c0_28, %c0_29] : memref<1x1x128xf32, #tpu.memory_space<vmem>>, vector<1x1x128xf32>
    tpu.vector_store %arg7[%c0_27, %c0_28, %c0_29], %51 {strides = array<i32>} : memref<1x1x128xf32, #tpu.memory_space<vmem>>, vector<1x1x128xf32>,
    return
  }
  func.func @transform_0(%arg0: i32) -> (i32, i32, i32) {
    %c0_i32 = arith.constant 0 : i32
    %c0_i32_0 = arith.constant 0 : i32
    %c0_i32_1 = arith.constant 0 : i32
    return %arg0, %c0_i32, %c0_i32_0 : i32, i32, i32
  }
  func.func @transform_1(%arg0: i32) -> (i32, i32, i32) {
    %c0_i32 = arith.constant 0 : i32
    %c0_i32_0 = arith.constant 0 : i32
    %c0_i32_1 = arith.constant 0 : i32
    %c0_i32_2 = arith.constant 0 : i32
    return %c0_i32, %c0_i32_0, %c0_i32_1 : i32, i32, i32
  }
  func.func @transform_2(%arg0: i32) -> (i32, i32) {
    %c0_i32 = arith.constant 0 : i32
    %c0_i32_0 = arith.constant 0 : i32
    %c0_i32_1 = arith.constant 0 : i32
    return %c0_i32, %c0_i32_0 : i32, i32
  }
  func.func @transform_3(%arg0: i32) -> (i32, i32) {
    %c0_i32 = arith.constant 0 : i32
    %c0_i32_0 = arith.constant 0 : i32
    %c0_i32_1 = arith.constant 0 : i32
    return %c0_i32, %c0_i32_0 : i32, i32
  }
  func.func @transform_4(%arg0: i32) -> (i32, i32, i32) {
    %c0_i32 = arith.constant 0 : i32
    %c0_i32_0 = arith.constant 0 : i32
    %c0_i32_1 = arith.constant 0 : i32
    return %arg0, %c0_i32, %c0_i32_0 : i32, i32, i32
  }
  func.func @transform_5(%arg0: i32) -> (i32, i32, i32) {
    %c0_i32 = arith.constant 0 : i32
    %c0_i32_0 = arith.constant 0 : i32
    %c0_i32_1 = arith.constant 0 : i32
    return %arg0, %c0_i32, %c0_i32_0 : i32, i32, i32
  }
  func.func @transform_6(%arg0: i32) -> (i32, i32, i32) {
    %c0_i32 = arith.constant 0 : i32
    %c0_i32_0 = arith.constant 0 : i32
    %c0_i32_1 = arith.constant 0 : i32
    return %arg0, %c0_i32, %c0_i32_0 : i32, i32, i32
  }
}

module attributes {stable_mosaic.version = 11 : i64} {
  func.func @bn2_residual_kernel(%arg0: i32, %arg1: memref<512x128xbf16, #tpu.memory_space<vmem>>, %arg2: memref<512x128xbf16, #tpu.memory_space<vmem>>, %arg3: memref<1x128xf32, #tpu.memory_space<vmem>>, %arg4: memref<1x128xf32, #tpu.memory_space<vmem>>, %arg5: memref<512x128xf32, #tpu.memory_space<vmem>>) attributes {dimension_semantics = [#tpu.dimension_semantics<parallel>], iteration_bounds = array<i64: 1>, scalar_prefetch = 0 : i64, scratch_operands = 0 : i64, tpu.core_type = #tpu.core_type<tc>, window_params = [{transform_indices = @transform_0, window_bounds = array<i64: 512, 128>}, {transform_indices = @transform_1, window_bounds = array<i64: 512, 128>}, {pipeline_mode = #tpu.pipeline_mode<synchronous>, transform_indices = @transform_2, window_bounds = array<i64: 1, 128>}, {pipeline_mode = #tpu.pipeline_mode<synchronous>, transform_indices = @transform_3, window_bounds = array<i64: 1, 128>}, {transform_indices = @transform_4, window_bounds = array<i64: 512, 128>}]} {
    %c0 = arith.constant 0 : index
    %c0_0 = arith.constant 0 : index
    %0 = vector.load %arg1[%c0, %c0_0] : memref<512x128xbf16, #tpu.memory_space<vmem>>, vector<512x128xbf16>
    %1 = arith.extf %0 : vector<512x128xbf16> to vector<512x128xf32>
    %c0_1 = arith.constant 0 : index
    %c0_2 = arith.constant 0 : index
    %2 = vector.load %arg3[%c0_1, %c0_2] : memref<1x128xf32, #tpu.memory_space<vmem>>, vector<1x128xf32>
    %3 = vector.broadcast %2 : vector<1x128xf32> to vector<512x128xf32>
    %4 = arith.mulf %1, %3 : vector<512x128xf32>
    %c0_3 = arith.constant 0 : index
    %c0_4 = arith.constant 0 : index
    %5 = vector.load %arg4[%c0_3, %c0_4] : memref<1x128xf32, #tpu.memory_space<vmem>>, vector<1x128xf32>
    %6 = vector.broadcast %5 : vector<1x128xf32> to vector<512x128xf32>
    %7 = arith.addf %4, %6 : vector<512x128xf32>
    %cst = arith.constant 0.000000e+00 : f32
    %8 = vector.broadcast %cst : f32 to vector<512x128xf32>
    %9 = arith.cmpf oge, %7, %8 : vector<512x128xf32>
    %cst_5 = arith.constant 0.00999999977 : f32
    %10 = vector.broadcast %cst_5 : f32 to vector<512x128xf32>
    %11 = arith.mulf %10, %7 : vector<512x128xf32>
    %12 = arith.select %9, %7, %11 : vector<512x128xi1>, vector<512x128xf32>
    %c0_6 = arith.constant 0 : index
    %c0_7 = arith.constant 0 : index
    %13 = vector.load %arg2[%c0_6, %c0_7] : memref<512x128xbf16, #tpu.memory_space<vmem>>, vector<512x128xbf16>
    %14 = arith.extf %13 : vector<512x128xbf16> to vector<512x128xf32>
    %15 = arith.addf %12, %14 : vector<512x128xf32>
    %c0_8 = arith.constant 0 : index
    %c0_9 = arith.constant 0 : index
    %16 = vector.load %arg5[%c0_8, %c0_9] : memref<512x128xf32, #tpu.memory_space<vmem>>, vector<512x128xf32>
    tpu.vector_store %arg5[%c0_8, %c0_9], %15 {strides = array<i32>} : memref<512x128xf32, #tpu.memory_space<vmem>>, vector<512x128xf32>,
    return
  }
  func.func @transform_0(%arg0: i32) -> (i32, i32) {
    %c0_i32 = arith.constant 0 : i32
    %c0_i32_0 = arith.constant 0 : i32
    return %arg0, %c0_i32 : i32, i32
  }
  func.func @transform_1(%arg0: i32) -> (i32, i32) {
    %c0_i32 = arith.constant 0 : i32
    %c0_i32_0 = arith.constant 0 : i32
    return %arg0, %c0_i32 : i32, i32
  }
  func.func @transform_2(%arg0: i32) -> (i32, i32) {
    %c0_i32 = arith.constant 0 : i32
    %c0_i32_0 = arith.constant 0 : i32
    %c0_i32_1 = arith.constant 0 : i32
    return %c0_i32, %c0_i32_0 : i32, i32
  }
  func.func @transform_3(%arg0: i32) -> (i32, i32) {
    %c0_i32 = arith.constant 0 : i32
    %c0_i32_0 = arith.constant 0 : i32
    %c0_i32_1 = arith.constant 0 : i32
    return %c0_i32, %c0_i32_0 : i32, i32
  }
  func.func @transform_4(%arg0: i32) -> (i32, i32) {
    %c0_i32 = arith.constant 0 : i32
    %c0_i32_0 = arith.constant 0 : i32
    return %arg0, %c0_i32 : i32, i32
  }
}

</mosaic_0001>

<llo_original>
// kernel: _forward_impl.5
$region0: #{_forward_impl.5}
  #allocation0 [shape = 'u32[]', space=smem, size = 0x4, offset = 0x4, fixed_abs, tag = 'smem constant byte address 0x4 - core index']
  #allocation1 [shape = 'u32[144,128]{1,0:T(1,128)}', space=vmem, size = 0x12000, scoped, tag = 'internal scratch']
  %s0 = inlined_call_operand.vmem [shape: bf16[512,128], index: 0, kind: input, shape index: {}]
  %s1 = inlined_call_operand.vmem [shape: bf16[512,128], index: 1, kind: input, shape index: {}]
  %s2 = inlined_call_operand.vmem [shape: f32[1,128], index: 2, kind: input, shape index: {}]
  %s3 = inlined_call_operand.vmem [shape: f32[1,128], index: 3, kind: input, shape index: {}]
  %s4 = inlined_call_operand.vmem [shape: f32[512,128], index: 4, kind: output, shape index: {}]
  %s5 = sld [smem:[#allocation0]]
  $region26: #{_forward_impl.5} parent=0
    _
  %s7 = ssub.s32 1, %s5
  %s8 = scalar_select 0, %s7, %s5
  // Predicated region
  $region2: #{_forward_impl.5} parent=0 // pred_check
    _
  $region3: #{_forward_impl.5} parent=0 // pred_check_branch
    %10 = sbr.rel (0) target = $region5
  $region4: #{_forward_impl.5} parent=0 // pred_region
    _
  $region5: #{_forward_impl.5} parent=0 // pred_fallthru
    _
  // Predicated region
  $region6: #{_forward_impl.5} parent=0 // pred_check
    _
  $region7: #{_forward_impl.5} parent=0 // pred_check_branch
    %12 = sbr.rel (0) target = $region9
  $region8: #{_forward_impl.5} parent=0 // pred_region
    _
  $region9: #{_forward_impl.5} parent=0 // pred_fallthru
    _
  // Predicated region
  $region10: #{_forward_impl.5} parent=0 // pred_check
    _
  $region11: #{_forward_impl.5} parent=0 // pred_check_branch
    %14 = sbr.rel (0) target = $region13
  $region12: #{_forward_impl.5} parent=0 // pred_region
    _
  $region13: #{_forward_impl.5} parent=0 // pred_fallthru
    _
  // Predicated region
  $region14: #{_forward_impl.5} parent=0 // pred_check
    _
  $region15: #{_forward_impl.5} parent=0 // pred_check_branch
    %16 = sbr.rel (0) target = $region17
  $region16: #{_forward_impl.5} parent=0 // pred_region
    _
  $region17: #{_forward_impl.5} parent=0 // pred_fallthru
    _
  %v17 = vld [vmem:[%s0] sm:$0xf]
  %v18 = vld [vmem:[%s0 + $0x4] sm:$0xf]
  %v19 = vld [vmem:[%s0 + $0x8] sm:$0xf]
  %v20 = vld [vmem:[%s0 + $0xc] sm:$0xf]
  %v21 = vld [vmem:[%s0 + $0x10] sm:$0xf]
  %v22 = vld [vmem:[%s0 + $0x14] sm:$0xf]
  %v23 = vld [vmem:[%s0 + $0x18] sm:$0xf]
  %v24 = vld [vmem:[%s0 + $0x1c] sm:$0xf]
  %v25 = vld [vmem:[%s0 + $0x20] sm:$0xf]
  %v26 = vld [vmem:[%s0 + $0x24] sm:$0xf]
  %v27 = vld [vmem:[%s0 + $0x28] sm:$0xf]
  %v28 = vld [vmem:[%s0 + $0x2c] sm:$0xf]
  %v29 = vld [vmem:[%s0 + $0x30] sm:$0xf]
  %v30 = vld [vmem:[%s0 + $0x34] sm:$0xf]
  %v31 = vld [vmem:[%s0 + $0x38] sm:$0xf]
  %v32 = vld [vmem:[%s0 + $0x3c] sm:$0xf]
  %v33 = vld [vmem:[%s0 + $0x40] sm:$0xf]
  %v34 = vld [vmem:[%s0 + $0x44] sm:$0xf]
  %v35 = vld [vmem:[%s0 + $0x48] sm:$0xf]
  %v36 = vld [vmem:[%s0 + $0x4c] sm:$0xf]
  %v37 = vld [vmem:[%s0 + $0x50] sm:$0xf]
  %v38 = vld [vmem:[%s0 + $0x54] sm:$0xf]
  %v39 = vld [vmem:[%s0 + $0x58] sm:$0xf]
  %v40 = vld [vmem:[%s0 + $0x5c] sm:$0xf]
  %v41 = vld [vmem:[%s0 + $0x60] sm:$0xf]
  %v42 = vld [vmem:[%s0 + $0x64] sm:$0xf]
  %v43 = vld [vmem:[%s0 + $0x68] sm:$0xf]
  %v44 = vld [vmem:[%s0 + $0x6c] sm:$0xf]
  %v45 = vld [vmem:[%s0 + $0x70] sm:$0xf]
  %v46 = vld [vmem:[%s0 + $0x74] sm:$0xf]
  %v47 = vld [vmem:[%s0 + $0x78] sm:$0xf]
  %v48 = vld [vmem:[%s0 + $0x7c] sm:$0xf]
  %v49 = vld [vmem:[%s0 + $0x80] sm:$0xf]
  %v50 = vld [vmem:[%s0 + $0x84] sm:$0xf]
  %v51 = vld [vmem:[%s0 + $0x88] sm:$0xf]
  %v52 = vld [vmem:[%s0 + $0x8c] sm:$0xf]
  %v53 = vld [vmem:[%s0 + $0x90] sm:$0xf]
  %v54 = vld [vmem:[%s0 + $0x94] sm:$0xf]
  %v55 = vld [vmem:[%s0 + $0x98] sm:$0xf]
  %v56 = vld [vmem:[%s0 + $0x9c] sm:$0xf]
  %v57 = vld [vmem:[%s0 + $0xa0] sm:$0xf]
  %v58 = vld [vmem:[%s0 + $0xa4] sm:$0xf]
  %v59 = vld [vmem:[%s0 + $0xa8] sm:$0xf]
  %v60 = vld [vmem:[%s0 + $0xac] sm:$0xf]
  %v61 = vld [vmem:[%s0 + $0xb0] sm:$0xf]
  %v62 = vld [vmem:[%s0 + $0xb4] sm:$0xf]
  %v63 = vld [vmem:[%s0 + $0xb8] sm:$0xf]
  %v64 = vld [vmem:[%s0 + $0xbc] sm:$0xf]
  %v65 = vld [vmem:[%s0 + $0xc0] sm:$0xf]
  %v66 = vld [vmem:[%s0 + $0xc4] sm:$0xf]
  %v67 = vld [vmem:[%s0 + $0xc8] sm:$0xf]
  %v68 = vld [vmem:[%s0 + $0xcc] sm:$0xf]
  %v69 = vld [vmem:[%s0 + $0xd0] sm:$0xf]
  %v70 = vld [vmem:[%s0 + $0xd4] sm:$0xf]
  %v71 = vld [vmem:[%s0 + $0xd8] sm:$0xf]
  %v72 = vld [vmem:[%s0 + $0xdc] sm:$0xf]
  %v73 = vld [vmem:[%s0 + $0xe0] sm:$0xf]
  %v74 = vld [vmem:[%s0 + $0xe4] sm:$0xf]
  %v75 = vld [vmem:[%s0 + $0xe8] sm:$0xf]
  %v76 = vld [vmem:[%s0 + $0xec] sm:$0xf]
  %v77 = vld [vmem:[%s0 + $0xf0] sm:$0xf]
  %v78 = vld [vmem:[%s0 + $0xf4] sm:$0xf]
  %v79 = vld [vmem:[%s0 + $0xf8] sm:$0xf]
  %v80 = vld [vmem:[%s0 + $0xfc] sm:$0xf]
  %v81 = vunpack.c.l.bf16 %v17
  %v82 = vunpack.c.l.bf16 %v18
  %v83 = vunpack.c.l.bf16 %v19
  %v84 = vunpack.c.l.bf16 %v20
  %v85 = vunpack.c.l.bf16 %v21
  %v86 = vunpack.c.l.bf16 %v22
  %v87 = vunpack.c.l.bf16 %v23
  %v88 = vunpack.c.l.bf16 %v24
  %v89 = vunpack.c.l.bf16 %v25
  %v90 = vunpack.c.l.bf16 %v26
  %v91 = vunpack.c.l.bf16 %v27
  %v92 = vunpack.c.l.bf16 %v28
  %v93 = vunpack.c.l.bf16 %v29
  %v94 = vunpack.c.l.bf16 %v30
  %v95 = vunpack.c.l.bf16 %v31
  %v96 = vunpack.c.l.bf16 %v32
  %v97 = vunpack.c.l.bf16 %v33
  %v98 = vunpack.c.l.bf16 %v34
  %v99 = vunpack.c.l.bf16 %v35
  %v100 = vunpack.c.l.bf16 %v36
  %v101 = vunpack.c.l.bf16 %v37
  %v102 = vunpack.c.l.bf16 %v38
  %v103 = vunpack.c.l.bf16 %v39
  %v104 = vunpack.c.l.bf16 %v40
  %v105 = vunpack.c.l.bf16 %v41
  %v106 = vunpack.c.l.bf16 %v42
  %v107 = vunpack.c.l.bf16 %v43
  %v108 = vunpack.c.l.bf16 %v44
  %v109 = vunpack.c.l.bf16 %v45
  %v110 = vunpack.c.l.bf16 %v46
  %v111 = vunpack.c.l.bf16 %v47
  %v112 = vunpack.c.l.bf16 %v48
  %v113 = vunpack.c.l.bf16 %v49
  %v114 = vunpack.c.l.bf16 %v50
  %v115 = vunpack.c.l.bf16 %v51
  %v116 = vunpack.c.l.bf16 %v52
  %v117 = vunpack.c.l.bf16 %v53
  %v118 = vunpack.c.l.bf16 %v54
  %v119 = vunpack.c.l.bf16 %v55
  %v120 = vunpack.c.l.bf16 %v56
  %v121 = vunpack.c.l.bf16 %v57
  %v122 = vunpack.c.l.bf16 %v58
  %v123 = vunpack.c.l.bf16 %v59
  %v124 = vunpack.c.l.bf16 %v60
  %v125 = vunpack.c.l.bf16 %v61
  %v126 = vunpack.c.l.bf16 %v62
  %v127 = vunpack.c.l.bf16 %v63
  %v128 = vunpack.c.l.bf16 %v64
  %v129 = vunpack.c.l.bf16 %v65
  %v130 = vunpack.c.l.bf16 %v66
  %v131 = vunpack.c.l.bf16 %v67
  %v132 = vunpack.c.l.bf16 %v68
  %v133 = vunpack.c.l.bf16 %v69
  %v134 = vunpack.c.l.bf16 %v70
  %v135 = vunpack.c.l.bf16 %v71
  %v136 = vunpack.c.l.bf16 %v72
  %v137 = vunpack.c.l.bf16 %v73
  %v138 = vunpack.c.l.bf16 %v74
  %v139 = vunpack.c.l.bf16 %v75
  %v140 = vunpack.c.l.bf16 %v76
  %v141 = vunpack.c.l.bf16 %v77
  %v142 = vunpack.c.l.bf16 %v78
  %v143 = vunpack.c.l.bf16 %v79
  %v144 = vunpack.c.l.bf16 %v80
  %v145 = vld [vmem:[%s2] sm:$0x1]
  %v147 = vlaneseq
  %v148 = vshrl.u32 %v147, 7
  %v149 = vsub.s32 0, %v148
  %v150 = vrot.slane %v145, %v149
  %v152 = vmul.f32 %v81, %v150
  %v153 = vmul.f32 %v82, %v150
  %v154 = vmul.f32 %v83, %v150
  %v155 = vmul.f32 %v84, %v150
  %v156 = vmul.f32 %v85, %v150
  %v157 = vmul.f32 %v86, %v150
  %v158 = vmul.f32 %v87, %v150
  %v159 = vmul.f32 %v88, %v150
  %v160 = vmul.f32 %v89, %v150
  %v161 = vmul.f32 %v90, %v150
  %v162 = vmul.f32 %v91, %v150
  %v163 = vmul.f32 %v92, %v150
  %v164 = vmul.f32 %v93, %v150
  %v165 = vmul.f32 %v94, %v150
  %v166 = vmul.f32 %v95, %v150
  %v167 = vmul.f32 %v96, %v150
  %v168 = vmul.f32 %v97, %v150
  %v169 = vmul.f32 %v98, %v150
  %v170 = vmul.f32 %v99, %v150
  %v171 = vmul.f32 %v100, %v150
  %v172 = vmul.f32 %v101, %v150
  %v173 = vmul.f32 %v102, %v150
  %v174 = vmul.f32 %v103, %v150
  %v175 = vmul.f32 %v104, %v150
  %v176 = vmul.f32 %v105, %v150
  %v177 = vmul.f32 %v106, %v150
  %v178 = vmul.f32 %v107, %v150
  %v179 = vmul.f32 %v108, %v150
  %v180 = vmul.f32 %v109, %v150
  %v181 = vmul.f32 %v110, %v150
  %v182 = vmul.f32 %v111, %v150
  %v183 = vmul.f32 %v112, %v150
  %v184 = vmul.f32 %v113, %v150
  %v185 = vmul.f32 %v114, %v150
  %v186 = vmul.f32 %v115, %v150
  %v187 = vmul.f32 %v116, %v150
  %v188 = vmul.f32 %v117, %v150
  %v189 = vmul.f32 %v118, %v150
  %v190 = vmul.f32 %v119, %v150
  %v191 = vmul.f32 %v120, %v150
  %v192 = vmul.f32 %v121, %v150
  %v193 = vmul.f32 %v122, %v150
  %v194 = vmul.f32 %v123, %v150
  %v195 = vmul.f32 %v124, %v150
  %v196 = vmul.f32 %v125, %v150
  %v197 = vmul.f32 %v126, %v150
  %v198 = vmul.f32 %v127, %v150
  %v199 = vmul.f32 %v128, %v150
  %v200 = vmul.f32 %v129, %v150
  %v201 = vmul.f32 %v130, %v150
  %v202 = vmul.f32 %v131, %v150
  %v203 = vmul.f32 %v132, %v150
  %v204 = vmul.f32 %v133, %v150
  %v205 = vmul.f32 %v134, %v150
  %v206 = vmul.f32 %v135, %v150
  %v207 = vmul.f32 %v136, %v150
  %v208 = vmul.f32 %v137, %v150
  %v209 = vmul.f32 %v138, %v150
  %v210 = vmul.f32 %v139, %v150
  %v211 = vmul.f32 %v140, %v150
  %v212 = vmul.f32 %v141, %v150
  %v213 = vmul.f32 %v142, %v150
  %v214 = vmul.f32 %v143, %v150
  %v215 = vmul.f32 %v144, %v150
  %v216 = vld [vmem:[%s3] sm:$0x1]
  %v218 = vlaneseq
  %v219 = vshrl.u32 %v218, 7
  %v220 = vsub.s32 0, %v219
  %v221 = vrot.slane %v216, %v220
  %v223 = vadd.f32 %v152, %v221
  %v224 = vadd.f32 %v153, %v221
  %v225 = vadd.f32 %v154, %v221
  %v226 = vadd.f32 %v155, %v221
  %v227 = vadd.f32 %v156, %v221
  %v228 = vadd.f32 %v157, %v221
  %v229 = vadd.f32 %v158, %v221
  %v230 = vadd.f32 %v159, %v221
  %v231 = vadd.f32 %v160, %v221
  %v232 = vadd.f32 %v161, %v221
  %v233 = vadd.f32 %v162, %v221
  %v234 = vadd.f32 %v163, %v221
  %v235 = vadd.f32 %v164, %v221
  %v236 = vadd.f32 %v165, %v221
  %v237 = vadd.f32 %v166, %v221
  %v238 = vadd.f32 %v167, %v221
  %v239 = vadd.f32 %v168, %v221
  %v240 = vadd.f32 %v169, %v221
  %v241 = vadd.f32 %v170, %v221
  %v242 = vadd.f32 %v171, %v221
  %v243 = vadd.f32 %v172, %v221
  %v244 = vadd.f32 %v173, %v221
  %v245 = vadd.f32 %v174, %v221
  %v246 = vadd.f32 %v175, %v221
  %v247 = vadd.f32 %v176, %v221
  %v248 = vadd.f32 %v177, %v221
  %v249 = vadd.f32 %v178, %v221
  %v250 = vadd.f32 %v179, %v221
  %v251 = vadd.f32 %v180, %v221
  %v252 = vadd.f32 %v181, %v221
  %v253 = vadd.f32 %v182, %v221
  %v254 = vadd.f32 %v183, %v221
  %v255 = vadd.f32 %v184, %v221
  %v256 = vadd.f32 %v185, %v221
  %v257 = vadd.f32 %v186, %v221
  %v258 = vadd.f32 %v187, %v221
  %v259 = vadd.f32 %v188, %v221
  %v260 = vadd.f32 %v189, %v221
  %v261 = vadd.f32 %v190, %v221
  %v262 = vadd.f32 %v191, %v221
  %v263 = vadd.f32 %v192, %v221
  %v264 = vadd.f32 %v193, %v221
  %v265 = vadd.f32 %v194, %v221
  %v266 = vadd.f32 %v195, %v221
  %v267 = vadd.f32 %v196, %v221
  %v268 = vadd.f32 %v197, %v221
  %v269 = vadd.f32 %v198, %v221
  %v270 = vadd.f32 %v199, %v221
  %v271 = vadd.f32 %v200, %v221
  %v272 = vadd.f32 %v201, %v221
  %v273 = vadd.f32 %v202, %v221
  %v274 = vadd.f32 %v203, %v221
  %v275 = vadd.f32 %v204, %v221
  %v276 = vadd.f32 %v205, %v221
  %v277 = vadd.f32 %v206, %v221
  %v278 = vadd.f32 %v207, %v221
  %v279 = vadd.f32 %v208, %v221
  %v280 = vadd.f32 %v209, %v221
  %v281 = vadd.f32 %v210, %v221
  %v282 = vadd.f32 %v211, %v221
  %v283 = vadd.f32 %v212, %v221
  %v284 = vadd.f32 %v213, %v221
  %v285 = vadd.f32 %v214, %v221
  %v286 = vadd.f32 %v215, %v221
  %vm287 = vcmp.ge.f32.partialorder %v223, 0.0
  %vm288 = vcmp.ge.f32.partialorder %v224, 0.0
  %vm289 = vcmp.ge.f32.partialorder %v225, 0.0
  %vm290 = vcmp.ge.f32.partialorder %v226, 0.0
  %vm291 = vcmp.ge.f32.partialorder %v227, 0.0
  %vm292 = vcmp.ge.f32.partialorder %v228, 0.0
  %vm293 = vcmp.ge.f32.partialorder %v229, 0.0
  %vm294 = vcmp.ge.f32.partialorder %v230, 0.0
  %vm295 = vcmp.ge.f32.partialorder %v231, 0.0
  %vm296 = vcmp.ge.f32.partialorder %v232, 0.0
  %vm297 = vcmp.ge.f32.partialorder %v233, 0.0
  %vm298 = vcmp.ge.f32.partialorder %v234, 0.0
  %vm299 = vcmp.ge.f32.partialorder %v235, 0.0
  %vm300 = vcmp.ge.f32.partialorder %v236, 0.0
  %vm301 = vcmp.ge.f32.partialorder %v237, 0.0
  %vm302 = vcmp.ge.f32.partialorder %v238, 0.0
  %vm303 = vcmp.ge.f32.partialorder %v239, 0.0
  %vm304 = vcmp.ge.f32.partialorder %v240, 0.0
  %vm305 = vcmp.ge.f32.partialorder %v241, 0.0
  %vm306 = vcmp.ge.f32.partialorder %v242, 0.0
  %vm307 = vcmp.ge.f32.partialorder %v243, 0.0
  %vm308 = vcmp.ge.f32.partialorder %v244, 0.0
  %vm309 = vcmp.ge.f32.partialorder %v245, 0.0
  %vm310 = vcmp.ge.f32.partialorder %v246, 0.0
  %vm311 = vcmp.ge.f32.partialorder %v247, 0.0
  %vm312 = vcmp.ge.f32.partialorder %v248, 0.0
  %vm313 = vcmp.ge.f32.partialorder %v249, 0.0
  %vm314 = vcmp.ge.f32.partialorder %v250, 0.0
  %vm315 = vcmp.ge.f32.partialorder %v251, 0.0
  %vm316 = vcmp.ge.f32.partialorder %v252, 0.0
  %vm317 = vcmp.ge.f32.partialorder %v253, 0.0
  %vm318 = vcmp.ge.f32.partialorder %v254, 0.0
  %vm319 = vcmp.ge.f32.partialorder %v255, 0.0
  %vm320 = vcmp.ge.f32.partialorder %v256, 0.0
  %vm321 = vcmp.ge.f32.partialorder %v257, 0.0
  %vm322 = vcmp.ge.f32.partialorder %v258, 0.0
  %vm323 = vcmp.ge.f32.partialorder %v259, 0.0
  %vm324 = vcmp.ge.f32.partialorder %v260, 0.0
  %vm325 = vcmp.ge.f32.partialorder %v261, 0.0
  %vm326 = vcmp.ge.f32.partialorder %v262, 0.0
  %vm327 = vcmp.ge.f32.partialorder %v263, 0.0
  %vm328 = vcmp.ge.f32.partialorder %v264, 0.0
  %vm329 = vcmp.ge.f32.partialorder %v265, 0.0
  %vm330 = vcmp.ge.f32.partialorder %v266, 0.0
  %vm331 = vcmp.ge.f32.partialorder %v267, 0.0
  %vm332 = vcmp.ge.f32.partialorder %v268, 0.0
  %vm333 = vcmp.ge.f32.partialorder %v269, 0.0
  %vm334 = vcmp.ge.f32.partialorder %v270, 0.0
  %vm335 = vcmp.ge.f32.partialorder %v271, 0.0
  %vm336 = vcmp.ge.f32.partialorder %v272, 0.0
  %vm337 = vcmp.ge.f32.partialorder %v273, 0.0
  %vm338 = vcmp.ge.f32.partialorder %v274, 0.0
  %vm339 = vcmp.ge.f32.partialorder %v275, 0.0
  %vm340 = vcmp.ge.f32.partialorder %v276, 0.0
  %vm341 = vcmp.ge.f32.partialorder %v277, 0.0
  %vm342 = vcmp.ge.f32.partialorder %v278, 0.0
  %vm343 = vcmp.ge.f32.partialorder %v279, 0.0
  %vm344 = vcmp.ge.f32.partialorder %v280, 0.0
  %vm345 = vcmp.ge.f32.partialorder %v281, 0.0
  %vm346 = vcmp.ge.f32.partialorder %v282, 0.0
  %vm347 = vcmp.ge.f32.partialorder %v283, 0.0
  %vm348 = vcmp.ge.f32.partialorder %v284, 0.0
  %vm349 = vcmp.ge.f32.partialorder %v285, 0.0
  %vm350 = vcmp.ge.f32.partialorder %v286, 0.0
  %v351 = vmul.f32 %v223, 0.01
  %v352 = vmul.f32 %v224, 0.01
  %v353 = vmul.f32 %v225, 0.01
  %v354 = vmul.f32 %v226, 0.01
  %v355 = vmul.f32 %v227, 0.01
  %v356 = vmul.f32 %v228, 0.01
  %v357 = vmul.f32 %v229, 0.01
  %v358 = vmul.f32 %v230, 0.01
  %v359 = vmul.f32 %v231, 0.01
  %v360 = vmul.f32 %v232, 0.01
  %v361 = vmul.f32 %v233, 0.01
  %v362 = vmul.f32 %v234, 0.01
  %v363 = vmul.f32 %v235, 0.01
  %v364 = vmul.f32 %v236, 0.01
  %v365 = vmul.f32 %v237, 0.01
  %v366 = vmul.f32 %v238, 0.01
  %v367 = vmul.f32 %v239, 0.01
  %v368 = vmul.f32 %v240, 0.01
  %v369 = vmul.f32 %v241, 0.01
  %v370 = vmul.f32 %v242, 0.01
  %v371 = vmul.f32 %v243, 0.01
  %v372 = vmul.f32 %v244, 0.01
  %v373 = vmul.f32 %v245, 0.01
  %v374 = vmul.f32 %v246, 0.01
  %v375 = vmul.f32 %v247, 0.01
  %v376 = vmul.f32 %v248, 0.01
  %v377 = vmul.f32 %v249, 0.01
  %v378 = vmul.f32 %v250, 0.01
  %v379 = vmul.f32 %v251, 0.01
  %v380 = vmul.f32 %v252, 0.01
  %v381 = vmul.f32 %v253, 0.01
  %v382 = vmul.f32 %v254, 0.01
  %v383 = vmul.f32 %v255, 0.01
  %v384 = vmul.f32 %v256, 0.01
  %v385 = vmul.f32 %v257, 0.01
  %v386 = vmul.f32 %v258, 0.01
  %v387 = vmul.f32 %v259, 0.01
  %v388 = vmul.f32 %v260, 0.01
  %v389 = vmul.f32 %v261, 0.01
  %v390 = vmul.f32 %v262, 0.01
  %v391 = vmul.f32 %v263, 0.01
  %v392 = vmul.f32 %v264, 0.01
  %v393 = vmul.f32 %v265, 0.01
  %v394 = vmul.f32 %v266, 0.01
  %v395 = vmul.f32 %v267, 0.01
  %v396 = vmul.f32 %v268, 0.01
  %v397 = vmul.f32 %v269, 0.01
  %v398 = vmul.f32 %v270, 0.01
  %v399 = vmul.f32 %v271, 0.01
  %v400 = vmul.f32 %v272, 0.01
  %v401 = vmul.f32 %v273, 0.01
  %v402 = vmul.f32 %v274, 0.01
  %v403 = vmul.f32 %v275, 0.01
  %v404 = vmul.f32 %v276, 0.01
  %v405 = vmul.f32 %v277, 0.01
  %v406 = vmul.f32 %v278, 0.01
  %v407 = vmul.f32 %v279, 0.01
  %v408 = vmul.f32 %v280, 0.01
  %v409 = vmul.f32 %v281, 0.01
  %v410 = vmul.f32 %v282, 0.01
  %v411 = vmul.f32 %v283, 0.01
  %v412 = vmul.f32 %v284, 0.01
  %v413 = vmul.f32 %v285, 0.01
  %v414 = vmul.f32 %v286, 0.01
  %v415 = vsel %vm287, %v223, %v351
  %v416 = vsel %vm288, %v224, %v352
  %v417 = vsel %vm289, %v225, %v353
  %v418 = vsel %vm290, %v226, %v354
  %v419 = vsel %vm291, %v227, %v355
  %v420 = vsel %vm292, %v228, %v356
  %v421 = vsel %vm293, %v229, %v357
  %v422 = vsel %vm294, %v230, %v358
  %v423 = vsel %vm295, %v231, %v359
  %v424 = vsel %vm296, %v232, %v360
  %v425 = vsel %vm297, %v233, %v361
  %v426 = vsel %vm298, %v234, %v362
  %v427 = vsel %vm299, %v235, %v363
  %v428 = vsel %vm300, %v236, %v364
  %v429 = vsel %vm301, %v237, %v365
  %v430 = vsel %vm302, %v238, %v366
  %v431 = vsel %vm303, %v239, %v367
  %v432 = vsel %vm304, %v240, %v368
  %v433 = vsel %vm305, %v241, %v369
  %v434 = vsel %vm306, %v242, %v370
  %v435 = vsel %vm307, %v243, %v371
  %v436 = vsel %vm308, %v244, %v372
  %v437 = vsel %vm309, %v245, %v373
  %v438 = vsel %vm310, %v246, %v374
  %v439 = vsel %vm311, %v247, %v375
  %v440 = vsel %vm312, %v248, %v376
  %v441 = vsel %vm313, %v249, %v377
  %v442 = vsel %vm314, %v250, %v378
  %v443 = vsel %vm315, %v251, %v379
  %v444 = vsel %vm316, %v252, %v380
  %v445 = vsel %vm317, %v253, %v381
  %v446 = vsel %vm318, %v254, %v382
  %v447 = vsel %vm319, %v255, %v383
  %v448 = vsel %vm320, %v256, %v384
  %v449 = vsel %vm321, %v257, %v385
  %v450 = vsel %vm322, %v258, %v386
  %v451 = vsel %vm323, %v259, %v387
  %v452 = vsel %vm324, %v260, %v388
  %v453 = vsel %vm325, %v261, %v389
  %v454 = vsel %vm326, %v262, %v390
  %v455 = vsel %vm327, %v263, %v391
  %v456 = vsel %vm328, %v264, %v392
  %v457 = vsel %vm329, %v265, %v393
  %v458 = vsel %vm330, %v266, %v394
  %v459 = vsel %vm331, %v267, %v395
  %v460 = vsel %vm332, %v268, %v396
  %v461 = vsel %vm333, %v269, %v397
  %v462 = vsel %vm334, %v270, %v398
  %v463 = vsel %vm335, %v271, %v399
  %v464 = vsel %vm336, %v272, %v400
  %v465 = vsel %vm337, %v273, %v401
  %v466 = vsel %vm338, %v274, %v402
  %v467 = vsel %vm339, %v275, %v403
  %v468 = vsel %vm340, %v276, %v404
  %v469 = vsel %vm341, %v277, %v405
  %v470 = vsel %vm342, %v278, %v406
  %v471 = vsel %vm343, %v279, %v407
  %v472 = vsel %vm344, %v280, %v408
  %v473 = vsel %vm345, %v281, %v409
  %v474 = vsel %vm346, %v282, %v410
  %v475 = vsel %vm347, %v283, %v411
  %v476 = vsel %vm348, %v284, %v412
  %v477 = vsel %vm349, %v285, %v413
  %v478 = vsel %vm350, %v286, %v414
  %v479 = vld [vmem:[%s1] sm:$0xf]
  %v480 = vld [vmem:[%s1 + $0x4] sm:$0xf]
  %v481 = vld [vmem:[%s1 + $0x8] sm:$0xf]
  %v482 = vld [vmem:[%s1 + $0xc] sm:$0xf]
  %v483 = vld [vmem:[%s1 + $0x10] sm:$0xf]
  %v484 = vld [vmem:[%s1 + $0x14] sm:$0xf]
  %v485 = vld [vmem:[%s1 + $0x18] sm:$0xf]
  %v486 = vld [vmem:[%s1 + $0x1c] sm:$0xf]
  %v487 = vld [vmem:[%s1 + $0x20] sm:$0xf]
  %v488 = vld [vmem:[%s1 + $0x24] sm:$0xf]
  %v489 = vld [vmem:[%s1 + $0x28] sm:$0xf]
  %v490 = vld [vmem:[%s1 + $0x2c] sm:$0xf]
  %v491 = vld [vmem:[%s1 + $0x30] sm:$0xf]
  %v492 = vld [vmem:[%s1 + $0x34] sm:$0xf]
  %v493 = vld [vmem:[%s1 + $0x38] sm:$0xf]
  %v494 = vld [vmem:[%s1 + $0x3c] sm:$0xf]
  %v495 = vld [vmem:[%s1 + $0x40] sm:$0xf]
  %v496 = vld [vmem:[%s1 + $0x44] sm:$0xf]
  %v497 = vld [vmem:[%s1 + $0x48] sm:$0xf]
  %v498 = vld [vmem:[%s1 + $0x4c] sm:$0xf]
  %v499 = vld [vmem:[%s1 + $0x50] sm:$0xf]
  %v500 = vld [vmem:[%s1 + $0x54] sm:$0xf]
  %v501 = vld [vmem:[%s1 + $0x58] sm:$0xf]
  %v502 = vld [vmem:[%s1 + $0x5c] sm:$0xf]
  %v503 = vld [vmem:[%s1 + $0x60] sm:$0xf]
  %v504 = vld [vmem:[%s1 + $0x64] sm:$0xf]
  %v505 = vld [vmem:[%s1 + $0x68] sm:$0xf]
  %v506 = vld [vmem:[%s1 + $0x6c] sm:$0xf]
  %v507 = vld [vmem:[%s1 + $0x70] sm:$0xf]
  %v508 = vld [vmem:[%s1 + $0x74] sm:$0xf]
  %v509 = vld [vmem:[%s1 + $0x78] sm:$0xf]
  %v510 = vld [vmem:[%s1 + $0x7c] sm:$0xf]
  %v511 = vld [vmem:[%s1 + $0x80] sm:$0xf]
  %v512 = vld [vmem:[%s1 + $0x84] sm:$0xf]
  %v513 = vld [vmem:[%s1 + $0x88] sm:$0xf]
  %v514 = vld [vmem:[%s1 + $0x8c] sm:$0xf]
  %v515 = vld [vmem:[%s1 + $0x90] sm:$0xf]
  %v516 = vld [vmem:[%s1 + $0x94] sm:$0xf]
  %v517 = vld [vmem:[%s1 + $0x98] sm:$0xf]
  %v518 = vld [vmem:[%s1 + $0x9c] sm:$0xf]
  %v519 = vld [vmem:[%s1 + $0xa0] sm:$0xf]
  %v520 = vld [vmem:[%s1 + $0xa4] sm:$0xf]
  %v521 = vld [vmem:[%s1 + $0xa8] sm:$0xf]
  %v522 = vld [vmem:[%s1 + $0xac] sm:$0xf]
  %v523 = vld [vmem:[%s1 + $0xb0] sm:$0xf]
  %v524 = vld [vmem:[%s1 + $0xb4] sm:$0xf]
  %v525 = vld [vmem:[%s1 + $0xb8] sm:$0xf]
  %v526 = vld [vmem:[%s1 + $0xbc] sm:$0xf]
  %v527 = vld [vmem:[%s1 + $0xc0] sm:$0xf]
  %v528 = vld [vmem:[%s1 + $0xc4] sm:$0xf]
  %v529 = vld [vmem:[%s1 + $0xc8] sm:$0xf]
  %v530 = vld [vmem:[%s1 + $0xcc] sm:$0xf]
  %v531 = vld [vmem:[%s1 + $0xd0] sm:$0xf]
  %v532 = vld [vmem:[%s1 + $0xd4] sm:$0xf]
  %v533 = vld [vmem:[%s1 + $0xd8] sm:$0xf]
  %v534 = vld [vmem:[%s1 + $0xdc] sm:$0xf]
  %v535 = vld [vmem:[%s1 + $0xe0] sm:$0xf]
  %v536 = vld [vmem:[%s1 + $0xe4] sm:$0xf]
  %v537 = vld [vmem:[%s1 + $0xe8] sm:$0xf]
  %v538 = vld [vmem:[%s1 + $0xec] sm:$0xf]
  %v539 = vld [vmem:[%s1 + $0xf0] sm:$0xf]
  %v540 = vld [vmem:[%s1 + $0xf4] sm:$0xf]
  %v541 = vld [vmem:[%s1 + $0xf8] sm:$0xf]
  %v542 = vld [vmem:[%s1 + $0xfc] sm:$0xf]
  %v543 = vunpack.c.l.bf16 %v479
  %v544 = vunpack.c.l.bf16 %v480
  %v545 = vunpack.c.l.bf16 %v481
  %v546 = vunpack.c.l.bf16 %v482
  %v547 = vunpack.c.l.bf16 %v483
  %v548 = vunpack.c.l.bf16 %v484
  %v549 = vunpack.c.l.bf16 %v485
  %v550 = vunpack.c.l.bf16 %v486
  %v551 = vunpack.c.l.bf16 %v487
  %v552 = vunpack.c.l.bf16 %v488
  %v553 = vunpack.c.l.bf16 %v489
  %v554 = vunpack.c.l.bf16 %v490
  %v555 = vunpack.c.l.bf16 %v491
  %v556 = vunpack.c.l.bf16 %v492
  %v557 = vunpack.c.l.bf16 %v493
  %v558 = vunpack.c.l.bf16 %v494
  %v559 = vunpack.c.l.bf16 %v495
  %v560 = vunpack.c.l.bf16 %v496
  %v561 = vunpack.c.l.bf16 %v497
  %v562 = vunpack.c.l.bf16 %v498
  %v563 = vunpack.c.l.bf16 %v499
  %v564 = vunpack.c.l.bf16 %v500
  %v565 = vunpack.c.l.bf16 %v501
  %v566 = vunpack.c.l.bf16 %v502
  %v567 = vunpack.c.l.bf16 %v503
  %v568 = vunpack.c.l.bf16 %v504
  %v569 = vunpack.c.l.bf16 %v505
  %v570 = vunpack.c.l.bf16 %v506
  %v571 = vunpack.c.l.bf16 %v507
  %v572 = vunpack.c.l.bf16 %v508
  %v573 = vunpack.c.l.bf16 %v509
  %v574 = vunpack.c.l.bf16 %v510
  %v575 = vunpack.c.l.bf16 %v511
  %v576 = vunpack.c.l.bf16 %v512
  %v577 = vunpack.c.l.bf16 %v513
  %v578 = vunpack.c.l.bf16 %v514
  %v579 = vunpack.c.l.bf16 %v515
  %v580 = vunpack.c.l.bf16 %v516
  %v581 = vunpack.c.l.bf16 %v517
  %v582 = vunpack.c.l.bf16 %v518
  %v583 = vunpack.c.l.bf16 %v519
  %v584 = vunpack.c.l.bf16 %v520
  %v585 = vunpack.c.l.bf16 %v521
  %v586 = vunpack.c.l.bf16 %v522
  %v587 = vunpack.c.l.bf16 %v523
  %v588 = vunpack.c.l.bf16 %v524
  %v589 = vunpack.c.l.bf16 %v525
  %v590 = vunpack.c.l.bf16 %v526
  %v591 = vunpack.c.l.bf16 %v527
  %v592 = vunpack.c.l.bf16 %v528
  %v593 = vunpack.c.l.bf16 %v529
  %v594 = vunpack.c.l.bf16 %v530
  %v595 = vunpack.c.l.bf16 %v531
  %v596 = vunpack.c.l.bf16 %v532
  %v597 = vunpack.c.l.bf16 %v533
  %v598 = vunpack.c.l.bf16 %v534
  %v599 = vunpack.c.l.bf16 %v535
  %v600 = vunpack.c.l.bf16 %v536
  %v601 = vunpack.c.l.bf16 %v537
  %v602 = vunpack.c.l.bf16 %v538
  %v603 = vunpack.c.l.bf16 %v539
  %v604 = vunpack.c.l.bf16 %v540
  %v605 = vunpack.c.l.bf16 %v541
  %v606 = vunpack.c.l.bf16 %v542
  %v607 = vadd.f32 %v415, %v543
  %v608 = vadd.f32 %v416, %v544
  %v609 = vadd.f32 %v417, %v545
  %v610 = vadd.f32 %v418, %v546
  %v611 = vadd.f32 %v419, %v547
  %v612 = vadd.f32 %v420, %v548
  %v613 = vadd.f32 %v421, %v549
  %v614 = vadd.f32 %v422, %v550
  %v615 = vadd.f32 %v423, %v551
  %v616 = vadd.f32 %v424, %v552
  %v617 = vadd.f32 %v425, %v553
  %v618 = vadd.f32 %v426, %v554
  %v619 = vadd.f32 %v427, %v555
  %v620 = vadd.f32 %v428, %v556
  %v621 = vadd.f32 %v429, %v557
  %v622 = vadd.f32 %v430, %v558
  %v623 = vadd.f32 %v431, %v559
  %v624 = vadd.f32 %v432, %v560
  %v625 = vadd.f32 %v433, %v561
  %v626 = vadd.f32 %v434, %v562
  %v627 = vadd.f32 %v435, %v563
  %v628 = vadd.f32 %v436, %v564
  %v629 = vadd.f32 %v437, %v565
  %v630 = vadd.f32 %v438, %v566
  %v631 = vadd.f32 %v439, %v567
  %v632 = vadd.f32 %v440, %v568
  %v633 = vadd.f32 %v441, %v569
  %v634 = vadd.f32 %v442, %v570
  %v635 = vadd.f32 %v443, %v571
  %v636 = vadd.f32 %v444, %v572
  %v637 = vadd.f32 %v445, %v573
  %v638 = vadd.f32 %v446, %v574
  %v639 = vadd.f32 %v447, %v575
  %v640 = vadd.f32 %v448, %v576
  %v641 = vadd.f32 %v449, %v577
  %v642 = vadd.f32 %v450, %v578
  %v643 = vadd.f32 %v451, %v579
  %v644 = vadd.f32 %v452, %v580
  %v645 = vadd.f32 %v453, %v581
  %v646 = vadd.f32 %v454, %v582
  %v647 = vadd.f32 %v455, %v583
  %v648 = vadd.f32 %v456, %v584
  %v649 = vadd.f32 %v457, %v585
  %v650 = vadd.f32 %v458, %v586
  %v651 = vadd.f32 %v459, %v587
  %v652 = vadd.f32 %v460, %v588
  %v653 = vadd.f32 %v461, %v589
  %v654 = vadd.f32 %v462, %v590
  %v655 = vadd.f32 %v463, %v591
  %v656 = vadd.f32 %v464, %v592
  %v657 = vadd.f32 %v465, %v593
  %v658 = vadd.f32 %v466, %v594
  %v659 = vadd.f32 %v467, %v595
  %v660 = vadd.f32 %v468, %v596
  %v661 = vadd.f32 %v469, %v597
  %v662 = vadd.f32 %v470, %v598
  %v663 = vadd.f32 %v471, %v599
  %v664 = vadd.f32 %v472, %v600
  %v665 = vadd.f32 %v473, %v601
  %v666 = vadd.f32 %v474, %v602
  %v667 = vadd.f32 %v475, %v603
  %v668 = vadd.f32 %v476, %v604
  %v669 = vadd.f32 %v477, %v605
  %v670 = vadd.f32 %v478, %v606
  %671 = vst [vmem:[%s4] sm:$0xff] %v607
  %672 = vst [vmem:[%s4 + $0x8] sm:$0xff] %v608
  %673 = vst [vmem:[%s4 + $0x10] sm:$0xff] %v609
  %674 = vst [vmem:[%s4 + $0x18] sm:$0xff] %v610
  %675 = vst [vmem:[%s4 + $0x20] sm:$0xff] %v611
  %676 = vst [vmem:[%s4 + $0x28] sm:$0xff] %v612
  %677 = vst [vmem:[%s4 + $0x30] sm:$0xff] %v613
  %678 = vst [vmem:[%s4 + $0x38] sm:$0xff] %v614
  %679 = vst [vmem:[%s4 + $0x40] sm:$0xff] %v615
  %680 = vst [vmem:[%s4 + $0x48] sm:$0xff] %v616
  %681 = vst [vmem:[%s4 + $0x50] sm:$0xff] %v617
  %682 = vst [vmem:[%s4 + $0x58] sm:$0xff] %v618
  %683 = vst [vmem:[%s4 + $0x60] sm:$0xff] %v619
  %684 = vst [vmem:[%s4 + $0x68] sm:$0xff] %v620
  %685 = vst [vmem:[%s4 + $0x70] sm:$0xff] %v621
  %686 = vst [vmem:[%s4 + $0x78] sm:$0xff] %v622
  %687 = vst [vmem:[%s4 + $0x80] sm:$0xff] %v623
  %688 = vst [vmem:[%s4 + $0x88] sm:$0xff] %v624
  %689 = vst [vmem:[%s4 + $0x90] sm:$0xff] %v625
  %690 = vst [vmem:[%s4 + $0x98] sm:$0xff] %v626
  %691 = vst [vmem:[%s4 + $0xa0] sm:$0xff] %v627
  %692 = vst [vmem:[%s4 + $0xa8] sm:$0xff] %v628
  %693 = vst [vmem:[%s4 + $0xb0] sm:$0xff] %v629
  %694 = vst [vmem:[%s4 + $0xb8] sm:$0xff] %v630
  %695 = vst [vmem:[%s4 + $0xc0] sm:$0xff] %v631
  %696 = vst [vmem:[%s4 + $0xc8] sm:$0xff] %v632
  %697 = vst [vmem:[%s4 + $0xd0] sm:$0xff] %v633
  %698 = vst [vmem:[%s4 + $0xd8] sm:$0xff] %v634
  %699 = vst [vmem:[%s4 + $0xe0] sm:$0xff] %v635
  %700 = vst [vmem:[%s4 + $0xe8] sm:$0xff] %v636
  %701 = vst [vmem:[%s4 + $0xf0] sm:$0xff] %v637
  %702 = vst [vmem:[%s4 + $0xf8] sm:$0xff] %v638
  %703 = vst [vmem:[%s4 + $0x100] sm:$0xff] %v639
  %704 = vst [vmem:[%s4 + $0x108] sm:$0xff] %v640
  %705 = vst [vmem:[%s4 + $0x110] sm:$0xff] %v641
  %706 = vst [vmem:[%s4 + $0x118] sm:$0xff] %v642
  %707 = vst [vmem:[%s4 + $0x120] sm:$0xff] %v643
  %708 = vst [vmem:[%s4 + $0x128] sm:$0xff] %v644
  %709 = vst [vmem:[%s4 + $0x130] sm:$0xff] %v645
  %710 = vst [vmem:[%s4 + $0x138] sm:$0xff] %v646
  %711 = vst [vmem:[%s4 + $0x140] sm:$0xff] %v647
  %712 = vst [vmem:[%s4 + $0x148] sm:$0xff] %v648
  %713 = vst [vmem:[%s4 + $0x150] sm:$0xff] %v649
  %714 = vst [vmem:[%s4 + $0x158] sm:$0xff] %v650
  %715 = vst [vmem:[%s4 + $0x160] sm:$0xff] %v651
  %716 = vst [vmem:[%s4 + $0x168] sm:$0xff] %v652
  %717 = vst [vmem:[%s4 + $0x170] sm:$0xff] %v653
  %718 = vst [vmem:[%s4 + $0x178] sm:$0xff] %v654
  %719 = vst [vmem:[%s4 + $0x180] sm:$0xff] %v655
  %720 = vst [vmem:[%s4 + $0x188] sm:$0xff] %v656
  %721 = vst [vmem:[%s4 + $0x190] sm:$0xff] %v657
  %722 = vst [vmem:[%s4 + $0x198] sm:$0xff] %v658
  %723 = vst [vmem:[%s4 + $0x1a0] sm:$0xff] %v659
  %724 = vst [vmem:[%s4 + $0x1a8] sm:$0xff] %v660
  %725 = vst [vmem:[%s4 + $0x1b0] sm:$0xff] %v661
  %726 = vst [vmem:[%s4 + $0x1b8] sm:$0xff] %v662
  %727 = vst [vmem:[%s4 + $0x1c0] sm:$0xff] %v663
  %728 = vst [vmem:[%s4 + $0x1c8] sm:$0xff] %v664
  %729 = vst [vmem:[%s4 + $0x1d0] sm:$0xff] %v665
  %730 = vst [vmem:[%s4 + $0x1d8] sm:$0xff] %v666
  %731 = vst [vmem:[%s4 + $0x1e0] sm:$0xff] %v667
  %732 = vst [vmem:[%s4 + $0x1e8] sm:$0xff] %v668
  %733 = vst [vmem:[%s4 + $0x1f0] sm:$0xff] %v669
  %734 = vst [vmem:[%s4 + $0x1f8] sm:$0xff] %v670
  // Predicated region
  $region18: #{_forward_impl.5} parent=0 // pred_check
    _
  $region19: #{_forward_impl.5} parent=0 // pred_check_branch
    %736 = sbr.rel (0) target = $region21
  $region20: #{_forward_impl.5} parent=0 // pred_region
    _
  $region21: #{_forward_impl.5} parent=0 // pred_fallthru
    _
  // Predicated region
  $region22: #{_forward_impl.5} parent=0 // pred_check
    _
  $region23: #{_forward_impl.5} parent=0 // pred_check_branch
    %738 = sbr.rel (0) target = $region25
  $region24: #{_forward_impl.5} parent=0 // pred_region
    _
  $region25: #{_forward_impl.5} parent=0 // pred_fallthru
    _

// kernel: _forward_impl.3
$region0: #{_forward_impl.3}
  #allocation0 [shape = 'u32[]', space=smem, size = 0x4, offset = 0x4, fixed_abs, tag = 'smem constant byte address 0x4 - core index']
  #allocation1 [shape = 'u32[144,128]{1,0:T(1,128)}', space=vmem, size = 0x12000, scoped, tag = 'internal scratch']
  %s0 = inlined_call_operand.vmem [shape: bf16[512,128], index: 0, kind: input, shape index: {}]
  %s1 = inlined_call_operand.vmem [shape: bf16[128,128], index: 1, kind: input, shape index: {}]
  %s2 = inlined_call_operand.vmem [shape: bf16[512,128], index: 2, kind: output, shape index: {0}]
  %s3 = inlined_call_operand.vmem [shape: f32[1,1,128], index: 3, kind: output, shape index: {1}]
  %s4 = inlined_call_operand.vmem [shape: f32[1,1,128], index: 4, kind: output, shape index: {2}]
  %5 = xla_tuple %s2, %s3, %s4
  %s6 = sld [smem:[#allocation0]]
  $region34: #{_forward_impl.3} parent=0
    _
  %s8 = ssub.s32 1, %s6
  %s9 = scalar_select 0, %s8, %s6
  // Predicated region
  $region2: #{_forward_impl.3} parent=0 // pred_check
    _
  $region3: #{_forward_impl.3} parent=0 // pred_check_branch
    %11 = sbr.rel (0) target = $region5
  $region4: #{_forward_impl.3} parent=0 // pred_region
    _
  $region5: #{_forward_impl.3} parent=0 // pred_fallthru
    _
  // Predicated region
  $region6: #{_forward_impl.3} parent=0 // pred_check
    _
  $region7: #{_forward_impl.3} parent=0 // pred_check_branch
    %13 = sbr.rel (0) target = $region9
  $region8: #{_forward_impl.3} parent=0 // pred_region
    _
  $region9: #{_forward_impl.3} parent=0 // pred_fallthru
    _
  %v15 = vld [vmem:[%s0] sm:$0xf]
  %v16 = vld [vmem:[%s0 + $0x4] sm:$0xf]
  %v17 = vld [vmem:[%s0 + $0x8] sm:$0xf]
  %v18 = vld [vmem:[%s0 + $0xc] sm:$0xf]
  %v19 = vld [vmem:[%s0 + $0x10] sm:$0xf]
  %v20 = vld [vmem:[%s0 + $0x14] sm:$0xf]
  %v21 = vld [vmem:[%s0 + $0x18] sm:$0xf]
  %v22 = vld [vmem:[%s0 + $0x1c] sm:$0xf]
  %v23 = vld [vmem:[%s0 + $0x20] sm:$0xf]
  %v24 = vld [vmem:[%s0 + $0x24] sm:$0xf]
  %v25 = vld [vmem:[%s0 + $0x28] sm:$0xf]
  %v26 = vld [vmem:[%s0 + $0x2c] sm:$0xf]
  %v27 = vld [vmem:[%s0 + $0x30] sm:$0xf]
  %v28 = vld [vmem:[%s0 + $0x34] sm:$0xf]
  %v29 = vld [vmem:[%s0 + $0x38] sm:$0xf]
  %v30 = vld [vmem:[%s0 + $0x3c] sm:$0xf]
  %v31 = vld [vmem:[%s0 + $0x40] sm:$0xf]
  %v32 = vld [vmem:[%s0 + $0x44] sm:$0xf]
  %v33 = vld [vmem:[%s0 + $0x48] sm:$0xf]
  %v34 = vld [vmem:[%s0 + $0x4c] sm:$0xf]
  %v35 = vld [vmem:[%s0 + $0x50] sm:$0xf]
  %v36 = vld [vmem:[%s0 + $0x54] sm:$0xf]
  %v37 = vld [vmem:[%s0 + $0x58] sm:$0xf]
  %v38 = vld [vmem:[%s0 + $0x5c] sm:$0xf]
  %v39 = vld [vmem:[%s0 + $0x60] sm:$0xf]
  %v40 = vld [vmem:[%s0 + $0x64] sm:$0xf]
  %v41 = vld [vmem:[%s0 + $0x68] sm:$0xf]
  %v42 = vld [vmem:[%s0 + $0x6c] sm:$0xf]
  %v43 = vld [vmem:[%s0 + $0x70] sm:$0xf]
  %v44 = vld [vmem:[%s0 + $0x74] sm:$0xf]
  %v45 = vld [vmem:[%s0 + $0x78] sm:$0xf]
  %v46 = vld [vmem:[%s0 + $0x7c] sm:$0xf]
  %v47 = vld [vmem:[%s0 + $0x80] sm:$0xf]
  %v48 = vld [vmem:[%s0 + $0x84] sm:$0xf]
  %v49 = vld [vmem:[%s0 + $0x88] sm:$0xf]
  %v50 = vld [vmem:[%s0 + $0x8c] sm:$0xf]
  %v51 = vld [vmem:[%s0 + $0x90] sm:$0xf]
  %v52 = vld [vmem:[%s0 + $0x94] sm:$0xf]
  %v53 = vld [vmem:[%s0 + $0x98] sm:$0xf]
  %v54 = vld [vmem:[%s0 + $0x9c] sm:$0xf]
  %v55 = vld [vmem:[%s0 + $0xa0] sm:$0xf]
  %v56 = vld [vmem:[%s0 + $0xa4] sm:$0xf]
  %v57 = vld [vmem:[%s0 + $0xa8] sm:$0xf]
  %v58 = vld [vmem:[%s0 + $0xac] sm:$0xf]
  %v59 = vld [vmem:[%s0 + $0xb0] sm:$0xf]
  %v60 = vld [vmem:[%s0 + $0xb4] sm:$0xf]
  %v61 = vld [vmem:[%s0 + $0xb8] sm:$0xf]
  %v62 = vld [vmem:[%s0 + $0xbc] sm:$0xf]
  %v63 = vld [vmem:[%s0 + $0xc0] sm:$0xf]
  %v64 = vld [vmem:[%s0 + $0xc4] sm:$0xf]
  %v65 = vld [vmem:[%s0 + $0xc8] sm:$0xf]
  %v66 = vld [vmem:[%s0 + $0xcc] sm:$0xf]
  %v67 = vld [vmem:[%s0 + $0xd0] sm:$0xf]
  %v68 = vld [vmem:[%s0 + $0xd4] sm:$0xf]
  %v69 = vld [vmem:[%s0 + $0xd8] sm:$0xf]
  %v70 = vld [vmem:[%s0 + $0xdc] sm:$0xf]
  %v71 = vld [vmem:[%s0 + $0xe0] sm:$0xf]
  %v72 = vld [vmem:[%s0 + $0xe4] sm:$0xf]
  %v73 = vld [vmem:[%s0 + $0xe8] sm:$0xf]
  %v74 = vld [vmem:[%s0 + $0xec] sm:$0xf]
  %v75 = vld [vmem:[%s0 + $0xf0] sm:$0xf]
  %v76 = vld [vmem:[%s0 + $0xf4] sm:$0xf]
  %v77 = vld [vmem:[%s0 + $0xf8] sm:$0xf]
  %v78 = vld [vmem:[%s0 + $0xfc] sm:$0xf]
  %v79 = vld [vmem:[%s1] sm:$0xf]
  %v80 = vld [vmem:[%s1 + $0x4] sm:$0xf]
  %v81 = vld [vmem:[%s1 + $0x8] sm:$0xf]
  %v82 = vld [vmem:[%s1 + $0xc] sm:$0xf]
  %v83 = vld [vmem:[%s1 + $0x10] sm:$0xf]
  %v84 = vld [vmem:[%s1 + $0x14] sm:$0xf]
  %v85 = vld [vmem:[%s1 + $0x18] sm:$0xf]
  %v86 = vld [vmem:[%s1 + $0x1c] sm:$0xf]
  %v87 = vld [vmem:[%s1 + $0x20] sm:$0xf]
  %v88 = vld [vmem:[%s1 + $0x24] sm:$0xf]
  %v89 = vld [vmem:[%s1 + $0x28] sm:$0xf]
  %v90 = vld [vmem:[%s1 + $0x2c] sm:$0xf]
  %v91 = vld [vmem:[%s1 + $0x30] sm:$0xf]
  %v92 = vld [vmem:[%s1 + $0x34] sm:$0xf]
  %v93 = vld [vmem:[%s1 + $0x38] sm:$0xf]
  %v94 = vld [vmem:[%s1 + $0x3c] sm:$0xf]
  %v159 = vunpack.c.l.b16 %v15
  %v160 = vunpack.c.l.b16 %v16
  %v161 = vunpack.c.l.b16 %v17
  %v162 = vunpack.c.l.b16 %v18
  %v163 = vunpack.c.l.b16 %v19
  %v164 = vunpack.c.l.b16 %v20
  %v165 = vunpack.c.l.b16 %v21
  %v166 = vunpack.c.l.b16 %v22
  %v167 = vunpack.c.l.b16 %v23
  %v168 = vunpack.c.l.b16 %v24
  %v169 = vunpack.c.l.b16 %v25
  %v170 = vunpack.c.l.b16 %v26
  %v171 = vunpack.c.l.b16 %v27
  %v172 = vunpack.c.l.b16 %v28
  %v173 = vunpack.c.l.b16 %v29
  %v174 = vunpack.c.l.b16 %v30
  %v175 = vunpack.c.l.b16 %v31
  %v176 = vunpack.c.l.b16 %v32
  %v177 = vunpack.c.l.b16 %v33
  %v178 = vunpack.c.l.b16 %v34
  %v179 = vunpack.c.l.b16 %v35
  %v180 = vunpack.c.l.b16 %v36
  %v181 = vunpack.c.l.b16 %v37
  %v182 = vunpack.c.l.b16 %v38
  %v183 = vunpack.c.l.b16 %v39
  %v184 = vunpack.c.l.b16 %v40
  %v185 = vunpack.c.l.b16 %v41
  %v186 = vunpack.c.l.b16 %v42
  %v187 = vunpack.c.l.b16 %v43
  %v188 = vunpack.c.l.b16 %v44
  %v189 = vunpack.c.l.b16 %v45
  %v190 = vunpack.c.l.b16 %v46
  %v191 = vunpack.c.l.b16 %v47
  %v192 = vunpack.c.l.b16 %v48
  %v193 = vunpack.c.l.b16 %v49
  %v194 = vunpack.c.l.b16 %v50
  %v195 = vunpack.c.l.b16 %v51
  %v196 = vunpack.c.l.b16 %v52
  %v197 = vunpack.c.l.b16 %v53
  %v198 = vunpack.c.l.b16 %v54
  %v199 = vunpack.c.l.b16 %v55
  %v200 = vunpack.c.l.b16 %v56
  %v201 = vunpack.c.l.b16 %v57
  %v202 = vunpack.c.l.b16 %v58
  %v203 = vunpack.c.l.b16 %v59
  %v204 = vunpack.c.l.b16 %v60
  %v205 = vunpack.c.l.b16 %v61
  %v206 = vunpack.c.l.b16 %v62
  %v207 = vunpack.c.l.b16 %v63
  %v208 = vunpack.c.l.b16 %v64
  %v209 = vunpack.c.l.b16 %v65
  %v210 = vunpack.c.l.b16 %v66
  %v211 = vunpack.c.l.b16 %v67
  %v212 = vunpack.c.l.b16 %v68
  %v213 = vunpack.c.l.b16 %v69
  %v214 = vunpack.c.l.b16 %v70
  %v215 = vunpack.c.l.b16 %v71
  %v216 = vunpack.c.l.b16 %v72
  %v217 = vunpack.c.l.b16 %v73
  %v218 = vunpack.c.l.b16 %v74
  %v219 = vunpack.c.l.b16 %v75
  %v220 = vunpack.c.l.b16 %v76
  %v221 = vunpack.c.l.b16 %v77
  %v222 = vunpack.c.l.b16 %v78
  %v223 = vpack.c.b16 %v160, %v159
  %v224 = vpack.c.b16 %v162, %v161
  %v225 = vpack.c.b16 %v164, %v163
  %v226 = vpack.c.b16 %v166, %v165
  %v227 = vpack.c.b16 %v168, %v167
  %v228 = vpack.c.b16 %v170, %v169
  %v229 = vpack.c.b16 %v172, %v171
  %v230 = vpack.c.b16 %v174, %v173
  %v231 = vpack.c.b16 %v176, %v175
  %v232 = vpack.c.b16 %v178, %v177
  %v233 = vpack.c.b16 %v180, %v179
  %v234 = vpack.c.b16 %v182, %v181
  %v235 = vpack.c.b16 %v184, %v183
  %v236 = vpack.c.b16 %v186, %v185
  %v237 = vpack.c.b16 %v188, %v187
  %v238 = vpack.c.b16 %v190, %v189
  %v239 = vpack.c.b16 %v192, %v191
  %v240 = vpack.c.b16 %v194, %v193
  %v241 = vpack.c.b16 %v196, %v195
  %v242 = vpack.c.b16 %v198, %v197
  %v243 = vpack.c.b16 %v200, %v199
  %v244 = vpack.c.b16 %v202, %v201
  %v245 = vpack.c.b16 %v204, %v203
  %v246 = vpack.c.b16 %v206, %v205
  %v247 = vpack.c.b16 %v208, %v207
  %v248 = vpack.c.b16 %v210, %v209
  %v249 = vpack.c.b16 %v212, %v211
  %v250 = vpack.c.b16 %v214, %v213
  %v251 = vpack.c.b16 %v216, %v215
  %v252 = vpack.c.b16 %v218, %v217
  %v253 = vpack.c.b16 %v220, %v219
  %v254 = vpack.c.b16 %v222, %v221
  %v303 = vunpack.c.l.b16 %v79
  %v304 = vunpack.c.l.b16 %v80
  %v305 = vunpack.c.l.b16 %v81
  %v306 = vunpack.c.l.b16 %v82
  %v307 = vunpack.c.l.b16 %v83
  %v308 = vunpack.c.l.b16 %v84
  %v309 = vunpack.c.l.b16 %v85
  %v310 = vunpack.c.l.b16 %v86
  %v311 = vunpack.c.l.b16 %v87
  %v312 = vunpack.c.l.b16 %v88
  %v313 = vunpack.c.l.b16 %v89
  %v314 = vunpack.c.l.b16 %v90
  %v315 = vunpack.c.l.b16 %v91
  %v316 = vunpack.c.l.b16 %v92
  %v317 = vunpack.c.l.b16 %v93
  %v318 = vunpack.c.l.b16 %v94
  %v319 = vpack.c.b16 %v304, %v303
  %v320 = vpack.c.b16 %v306, %v305
  %v321 = vpack.c.b16 %v308, %v307
  %v322 = vpack.c.b16 %v310, %v309
  %v323 = vpack.c.b16 %v312, %v311
  %v324 = vpack.c.b16 %v314, %v313
  %v325 = vpack.c.b16 %v316, %v315
  %v326 = vpack.c.b16 %v318, %v317
  %335 = vmatprep.subr.bf16.mxu0 0
  %336 = vmatpush1.bf16.msra.mxu0 %v319
  %337 = vmatprep.subr.bf16.mxu0 0
  %338 = vmatpush1.bf16.msra.mxu0 %v320
  %339 = vmatprep.subr.bf16.mxu0 0
  %340 = vmatpush1.bf16.msra.mxu0 %v321
  %341 = vmatprep.subr.bf16.mxu0 0
  %342 = vmatpush1.bf16.msra.mxu0 %v322
  %343 = vmatprep.subr.bf16.mxu0 0
  %344 = vmatpush1.bf16.msra.mxu0 %v323
  %345 = vmatprep.subr.bf16.mxu0 0
  %346 = vmatpush1.bf16.msra.mxu0 %v324
  %347 = vmatprep.subr.bf16.mxu0 0
  %348 = vmatpush1.bf16.msra.mxu0 %v325
  %349 = vmatprep.subr.bf16.mxu0 0
  %350 = vmatpush1.bf16.msra.mxu0 %v326
  %351 = vmatprep.subr.bf16.mxu0 0
  %352 = vmatpush1.bf16.msra.mxu0 0
  %353 = vmatprep.subr.bf16.mxu0 0
  %354 = vmatpush1.bf16.msra.mxu0 0
  %355 = vmatprep.subr.bf16.mxu0 0
  %356 = vmatpush1.bf16.msra.mxu0 0
  %357 = vmatprep.subr.bf16.mxu0 0
  %358 = vmatpush1.bf16.msra.mxu0 0
  %359 = vmatprep.subr.bf16.mxu0 0
  %360 = vmatpush1.bf16.msra.mxu0 0
  %361 = vmatprep.subr.bf16.mxu0 0
  %362 = vmatpush1.bf16.msra.mxu0 0
  %363 = vmatprep.subr.bf16.mxu0 0
  %364 = vmatpush1.bf16.msra.mxu0 0
  %365 = vmatprep.subr.bf16.mxu0 0
  %366 = vmatpush1.bf16.msra.mxu0 0
  %367 = vmatprep.mubr.bf16.mxu0 0
  %368 = vmatmul.mubr.bf16.gmra.mrb[0].mxu0 %v223
  %v369 = vpop.f32.mrb[0].mxu0
  %v370 = vadd.f32 0.0, %v369
  %v371 = vpop.f32.mrb[0].mxu0
  %v372 = vpop.f32.mrb[0].mxu0
  %v373 = vadd.f32 0.0, %v372
  %v374 = vpop.f32.mrb[0].mxu0
  %375 = vmatprep.mubr.bf16.mxu0 0
  %376 = vmatmul.mubr.bf16.gmra.mrb[0].mxu0 %v224
  %v377 = vpop.f32.mrb[0].mxu0
  %v378 = vadd.f32 0.0, %v377
  %v379 = vpop.f32.mrb[0].mxu0
  %v380 = vpop.f32.mrb[0].mxu0
  %v381 = vadd.f32 0.0, %v380
  %v382 = vpop.f32.mrb[0].mxu0
  %383 = vmatprep.mubr.bf16.mxu0 0
  %384 = vmatmul.mubr.bf16.gmra.mrb[0].mxu0 %v225
  %v385 = vpop.f32.mrb[0].mxu0
  %v386 = vadd.f32 0.0, %v385
  %v387 = vpop.f32.mrb[0].mxu0
  %v388 = vpop.f32.mrb[0].mxu0
  %v389 = vadd.f32 0.0, %v388
  %v390 = vpop.f32.mrb[0].mxu0
  %391 = vmatprep.mubr.bf16.mxu0 0
  %392 = vmatmul.mubr.bf16.gmra.mrb[0].mxu0 %v226
  %v393 = vpop.f32.mrb[0].mxu0
  %v394 = vadd.f32 0.0, %v393
  %v395 = vpop.f32.mrb[0].mxu0
  %v396 = vpop.f32.mrb[0].mxu0
  %v397 = vadd.f32 0.0, %v396
  %v398 = vpop.f32.mrb[0].mxu0
  %399 = vmatprep.mubr.bf16.mxu0 0
  %400 = vmatmul.mubr.bf16.gmra.mrb[0].mxu0 %v227
  %v401 = vpop.f32.mrb[0].mxu0
  %v402 = vadd.f32 0.0, %v401
  %v403 = vpop.f32.mrb[0].mxu0
  %v404 = vpop.f32.mrb[0].mxu0
  %v405 = vadd.f32 0.0, %v404
  %v406 = vpop.f32.mrb[0].mxu0
  %407 = vmatprep.mubr.bf16.mxu0 0
  %408 = vmatmul.mubr.bf16.gmra.mrb[0].mxu0 %v228
  %v409 = vpop.f32.mrb[0].mxu0
  %v410 = vadd.f32 0.0, %v409
  %v411 = vpop.f32.mrb[0].mxu0
  %v412 = vpop.f32.mrb[0].mxu0
  %v413 = vadd.f32 0.0, %v412
  %v414 = vpop.f32.mrb[0].mxu0
  %415 = vmatprep.mubr.bf16.mxu0 0
  %416 = vmatmul.mubr.bf16.gmra.mrb[0].mxu0 %v229
  %v417 = vpop.f32.mrb[0].mxu0
  %v418 = vadd.f32 0.0, %v417
  %v419 = vpop.f32.mrb[0].mxu0
  %v420 = vpop.f32.mrb[0].mxu0
  %v421 = vadd.f32 0.0, %v420
  %v422 = vpop.f32.mrb[0].mxu0
  %423 = vmatprep.mubr.bf16.mxu0 0
  %424 = vmatmul.mubr.bf16.gmra.mrb[0].mxu0 %v230
  %v425 = vpop.f32.mrb[0].mxu0
  %v426 = vadd.f32 0.0, %v425
  %v427 = vpop.f32.mrb[0].mxu0
  %v428 = vpop.f32.mrb[0].mxu0
  %v429 = vadd.f32 0.0, %v428
  %v430 = vpop.f32.mrb[0].mxu0
  %431 = vmatprep.mubr.bf16.mxu0 0
  %432 = vmatmul.mubr.bf16.gmra.mrb[0].mxu0 %v231
  %v433 = vpop.f32.mrb[0].mxu0
  %v434 = vadd.f32 0.0, %v433
  %v435 = vpop.f32.mrb[0].mxu0
  %v436 = vpop.f32.mrb[0].mxu0
  %v437 = vadd.f32 0.0, %v436
  %v438 = vpop.f32.mrb[0].mxu0
  %439 = vmatprep.mubr.bf16.mxu0 0
  %440 = vmatmul.mubr.bf16.gmra.mrb[0].mxu0 %v232
  %v441 = vpop.f32.mrb[0].mxu0
  %v442 = vadd.f32 0.0, %v441
  %v443 = vpop.f32.mrb[0].mxu0
  %v444 = vpop.f32.mrb[0].mxu0
  %v445 = vadd.f32 0.0, %v444
  %v446 = vpop.f32.mrb[0].mxu0
  %447 = vmatprep.mubr.bf16.mxu0 0
  %448 = vmatmul.mubr.bf16.gmra.mrb[0].mxu0 %v233
  %v449 = vpop.f32.mrb[0].mxu0
  %v450 = vadd.f32 0.0, %v449
  %v451 = vpop.f32.mrb[0].mxu0
  %v452 = vpop.f32.mrb[0].mxu0
  %v453 = vadd.f32 0.0, %v452
  %v454 = vpop.f32.mrb[0].mxu0
  %455 = vmatprep.mubr.bf16.mxu0 0
  %456 = vmatmul.mubr.bf16.gmra.mrb[0].mxu0 %v234
  %v457 = vpop.f32.mrb[0].mxu0
  %v458 = vadd.f32 0.0, %v457
  %v459 = vpop.f32.mrb[0].mxu0
  %v460 = vpop.f32.mrb[0].mxu0
  %v461 = vadd.f32 0.0, %v460
  %v462 = vpop.f32.mrb[0].mxu0
  %463 = vmatprep.mubr.bf16.mxu0 0
  %464 = vmatmul.mubr.bf16.gmra.mrb[0].mxu0 %v235
  %v465 = vpop.f32.mrb[0].mxu0
  %v466 = vadd.f32 0.0, %v465
  %v467 = vpop.f32.mrb[0].mxu0
  %v468 = vpop.f32.mrb[0].mxu0
  %v469 = vadd.f32 0.0, %v468
  %v470 = vpop.f32.mrb[0].mxu0
  %471 = vmatprep.mubr.bf16.mxu0 0
  %472 = vmatmul.mubr.bf16.gmra.mrb[0].mxu0 %v236
  %v473 = vpop.f32.mrb[0].mxu0
  %v474 = vadd.f32 0.0, %v473
  %v475 = vpop.f32.mrb[0].mxu0
  %v476 = vpop.f32.mrb[0].mxu0
  %v477 = vadd.f32 0.0, %v476
  %v478 = vpop.f32.mrb[0].mxu0
  %479 = vmatprep.mubr.bf16.mxu0 0
  %480 = vmatmul.mubr.bf16.gmra.mrb[0].mxu0 %v237
  %v481 = vpop.f32.mrb[0].mxu0
  %v482 = vadd.f32 0.0, %v481
  %v483 = vpop.f32.mrb[0].mxu0
  %v484 = vpop.f32.mrb[0].mxu0
  %v485 = vadd.f32 0.0, %v484
  %v486 = vpop.f32.mrb[0].mxu0
  %487 = vmatprep.mubr.bf16.mxu0 0
  %488 = vmatmul.mubr.bf16.gmra.mrb[0].mxu0 %v238
  %v489 = vpop.f32.mrb[0].mxu0
  %v490 = vadd.f32 0.0, %v489
  %v491 = vpop.f32.mrb[0].mxu0
  %v492 = vpop.f32.mrb[0].mxu0
  %v493 = vadd.f32 0.0, %v492
  %v494 = vpop.f32.mrb[0].mxu0
  %495 = vmatprep.mubr.bf16.mxu0 0
  %496 = vmatmul.mubr.bf16.gmra.mrb[0].mxu0 %v239
  %v497 = vpop.f32.mrb[0].mxu0
  %v498 = vadd.f32 0.0, %v497
  %v499 = vpop.f32.mrb[0].mxu0
  %v500 = vpop.f32.mrb[0].mxu0
  %v501 = vadd.f32 0.0, %v500
  %v502 = vpop.f32.mrb[0].mxu0
  %503 = vmatprep.mubr.bf16.mxu0 0
  %504 = vmatmul.mubr.bf16.gmra.mrb[0].mxu0 %v240
  %v505 = vpop.f32.mrb[0].mxu0
  %v506 = vadd.f32 0.0, %v505
  %v507 = vpop.f32.mrb[0].mxu0
  %v508 = vpop.f32.mrb[0].mxu0
  %v509 = vadd.f32 0.0, %v508
  %v510 = vpop.f32.mrb[0].mxu0
  %511 = vmatprep.mubr.bf16.mxu0 0
  %512 = vmatmul.mubr.bf16.gmra.mrb[0].mxu0 %v241
  %v513 = vpop.f32.mrb[0].mxu0
  %v514 = vadd.f32 0.0, %v513
  %v515 = vpop.f32.mrb[0].mxu0
  %v516 = vpop.f32.mrb[0].mxu0
  %v517 = vadd.f32 0.0, %v516
  %v518 = vpop.f32.mrb[0].mxu0
  %519 = vmatprep.mubr.bf16.mxu0 0
  %520 = vmatmul.mubr.bf16.gmra.mrb[0].mxu0 %v242
  %v521 = vpop.f32.mrb[0].mxu0
  %v522 = vadd.f32 0.0, %v521
  %v523 = vpop.f32.mrb[0].mxu0
  %v524 = vpop.f32.mrb[0].mxu0
  %v525 = vadd.f32 0.0, %v524
  %v526 = vpop.f32.mrb[0].mxu0
  %527 = vmatprep.mubr.bf16.mxu0 0
  %528 = vmatmul.mubr.bf16.gmra.mrb[0].mxu0 %v243
  %v529 = vpop.f32.mrb[0].mxu0
  %v530 = vadd.f32 0.0, %v529
  %v531 = vpop.f32.mrb[0].mxu0
  %v532 = vpop.f32.mrb[0].mxu0
  %v533 = vadd.f32 0.0, %v532
  %v534 = vpop.f32.mrb[0].mxu0
  %535 = vmatprep.mubr.bf16.mxu0 0
  %536 = vmatmul.mubr.bf16.gmra.mrb[0].mxu0 %v244
  %v537 = vpop.f32.mrb[0].mxu0
  %v538 = vadd.f32 0.0, %v537
  %v539 = vpop.f32.mrb[0].mxu0
  %v540 = vpop.f32.mrb[0].mxu0
  %v541 = vadd.f32 0.0, %v540
  %v542 = vpop.f32.mrb[0].mxu0
  %543 = vmatprep.mubr.bf16.mxu0 0
  %544 = vmatmul.mubr.bf16.gmra.mrb[0].mxu0 %v245
  %v545 = vpop.f32.mrb[0].mxu0
  %v546 = vadd.f32 0.0, %v545
  %v547 = vpop.f32.mrb[0].mxu0
  %v548 = vpop.f32.mrb[0].mxu0
  %v549 = vadd.f32 0.0, %v548
  %v550 = vpop.f32.mrb[0].mxu0
  %551 = vmatprep.mubr.bf16.mxu0 0
  %552 = vmatmul.mubr.bf16.gmra.mrb[0].mxu0 %v246
  %v553 = vpop.f32.mrb[0].mxu0
  %v554 = vadd.f32 0.0, %v553
  %v555 = vpop.f32.mrb[0].mxu0
  %v556 = vpop.f32.mrb[0].mxu0
  %v557 = vadd.f32 0.0, %v556
  %v558 = vpop.f32.mrb[0].mxu0
  %559 = vmatprep.mubr.bf16.mxu0 0
  %560 = vmatmul.mubr.bf16.gmra.mrb[0].mxu0 %v247
  %v561 = vpop.f32.mrb[0].mxu0
  %v562 = vadd.f32 0.0, %v561
  %v563 = vpop.f32.mrb[0].mxu0
  %v564 = vpop.f32.mrb[0].mxu0
  %v565 = vadd.f32 0.0, %v564
  %v566 = vpop.f32.mrb[0].mxu0
  %567 = vmatprep.mubr.bf16.mxu0 0
  %568 = vmatmul.mubr.bf16.gmra.mrb[0].mxu0 %v248
  %v569 = vpop.f32.mrb[0].mxu0
  %v570 = vadd.f32 0.0, %v569
  %v571 = vpop.f32.mrb[0].mxu0
  %v572 = vpop.f32.mrb[0].mxu0
  %v573 = vadd.f32 0.0, %v572
  %v574 = vpop.f32.mrb[0].mxu0
  %575 = vmatprep.mubr.bf16.mxu0 0
  %576 = vmatmul.mubr.bf16.gmra.mrb[0].mxu0 %v249
  %v577 = vpop.f32.mrb[0].mxu0
  %v578 = vadd.f32 0.0, %v577
  %v579 = vpop.f32.mrb[0].mxu0
  %v580 = vpop.f32.mrb[0].mxu0
  %v581 = vadd.f32 0.0, %v580
  %v582 = vpop.f32.mrb[0].mxu0
  %583 = vmatprep.mubr.bf16.mxu0 0
  %584 = vmatmul.mubr.bf16.gmra.mrb[0].mxu0 %v250
  %v585 = vpop.f32.mrb[0].mxu0
  %v586 = vadd.f32 0.0, %v585
  %v587 = vpop.f32.mrb[0].mxu0
  %v588 = vpop.f32.mrb[0].mxu0
  %v589 = vadd.f32 0.0, %v588
  %v590 = vpop.f32.mrb[0].mxu0
  %591 = vmatprep.mubr.bf16.mxu0 0
  %592 = vmatmul.mubr.bf16.gmra.mrb[0].mxu0 %v251
  %v593 = vpop.f32.mrb[0].mxu0
  %v594 = vadd.f32 0.0, %v593
  %v595 = vpop.f32.mrb[0].mxu0
  %v596 = vpop.f32.mrb[0].mxu0
  %v597 = vadd.f32 0.0, %v596
  %v598 = vpop.f32.mrb[0].mxu0
  %599 = vmatprep.mubr.bf16.mxu0 0
  %600 = vmatmul.mubr.bf16.gmra.mrb[0].mxu0 %v252
  %v601 = vpop.f32.mrb[0].mxu0
  %v602 = vadd.f32 0.0, %v601
  %v603 = vpop.f32.mrb[0].mxu0
  %v604 = vpop.f32.mrb[0].mxu0
  %v605 = vadd.f32 0.0, %v604
  %v606 = vpop.f32.mrb[0].mxu0
  %607 = vmatprep.mubr.bf16.mxu0 0
  %608 = vmatmul.mubr.bf16.gmra.mrb[0].mxu0 %v253
  %v609 = vpop.f32.mrb[0].mxu0
  %v610 = vadd.f32 0.0, %v609
  %v611 = vpop.f32.mrb[0].mxu0
  %v612 = vpop.f32.mrb[0].mxu0
  %v613 = vadd.f32 0.0, %v612
  %v614 = vpop.f32.mrb[0].mxu0
  %615 = vmatprep.mubr.bf16.mxu0 0
  %616 = vmatmul.mubr.bf16.gmra.mrb[0].mxu0 %v254
  %v617 = vpop.f32.mrb[0].mxu0
  %v618 = vadd.f32 0.0, %v617
  %v619 = vpop.f32.mrb[0].mxu0
  %v620 = vpop.f32.mrb[0].mxu0
  %v621 = vadd.f32 0.0, %v620
  %v622 = vpop.f32.mrb[0].mxu0
  %623 = vdwg.mxu0
  %v624 = vpack.c.bf16 %v373, %v370
  %v625 = vpack.c.bf16 %v381, %v378
  %v626 = vpack.c.bf16 %v389, %v386
  %v627 = vpack.c.bf16 %v397, %v394
  %v628 = vpack.c.bf16 %v405, %v402
  %v629 = vpack.c.bf16 %v413, %v410
  %v630 = vpack.c.bf16 %v421, %v418
  %v631 = vpack.c.bf16 %v429, %v426
  %v632 = vpack.c.bf16 %v437, %v434
  %v633 = vpack.c.bf16 %v445, %v442
  %v634 = vpack.c.bf16 %v453, %v450
  %v635 = vpack.c.bf16 %v461, %v458
  %v636 = vpack.c.bf16 %v469, %v466
  %v637 = vpack.c.bf16 %v477, %v474
  %v638 = vpack.c.bf16 %v485, %v482
  %v639 = vpack.c.bf16 %v493, %v490
  %v640 = vpack.c.bf16 %v501, %v498
  %v641 = vpack.c.bf16 %v509, %v506
  %v642 = vpack.c.bf16 %v517, %v514
  %v643 = vpack.c.bf16 %v525, %v522
  %v644 = vpack.c.bf16 %v533, %v530
  %v645 = vpack.c.bf16 %v541, %v538
  %v646 = vpack.c.bf16 %v549, %v546
  %v647 = vpack.c.bf16 %v557, %v554
  %v648 = vpack.c.bf16 %v565, %v562
  %v649 = vpack.c.bf16 %v573, %v570
  %v650 = vpack.c.bf16 %v581, %v578
  %v651 = vpack.c.bf16 %v589, %v586
  %v652 = vpack.c.bf16 %v597, %v594
  %v653 = vpack.c.bf16 %v605, %v602
  %v654 = vpack.c.bf16 %v613, %v610
  %v655 = vpack.c.bf16 %v621, %v618
  %v688 = vunpack.c.l.b16 %v624
  %v689 = vunpack.c.h.b16 %v624
  %v690 = vunpack.c.l.b16 %v625
  %v691 = vunpack.c.h.b16 %v625
  %v692 = vunpack.c.l.b16 %v626
  %v693 = vunpack.c.h.b16 %v626
  %v694 = vunpack.c.l.b16 %v627
  %v695 = vunpack.c.h.b16 %v627
  %v696 = vunpack.c.l.b16 %v628
  %v697 = vunpack.c.h.b16 %v628
  %v698 = vunpack.c.l.b16 %v629
  %v699 = vunpack.c.h.b16 %v629
  %v700 = vunpack.c.l.b16 %v630
  %v701 = vunpack.c.h.b16 %v630
  %v702 = vunpack.c.l.b16 %v631
  %v703 = vunpack.c.h.b16 %v631
  %v704 = vunpack.c.l.b16 %v632
  %v705 = vunpack.c.h.b16 %v632
  %v706 = vunpack.c.l.b16 %v633
  %v707 = vunpack.c.h.b16 %v633
  %v708 = vunpack.c.l.b16 %v634
  %v709 = vunpack.c.h.b16 %v634
  %v710 = vunpack.c.l.b16 %v635
  %v711 = vunpack.c.h.b16 %v635
  %v712 = vunpack.c.l.b16 %v636
  %v713 = vunpack.c.h.b16 %v636
  %v714 = vunpack.c.l.b16 %v637
  %v715 = vunpack.c.h.b16 %v637
  %v716 = vunpack.c.l.b16 %v638
  %v717 = vunpack.c.h.b16 %v638
  %v718 = vunpack.c.l.b16 %v639
  %v719 = vunpack.c.h.b16 %v639
  %v720 = vunpack.c.l.b16 %v640
  %v721 = vunpack.c.h.b16 %v640
  %v722 = vunpack.c.l.b16 %v641
  %v723 = vunpack.c.h.b16 %v641
  %v724 = vunpack.c.l.b16 %v642
  %v725 = vunpack.c.h.b16 %v642
  %v726 = vunpack.c.l.b16 %v643
  %v727 = vunpack.c.h.b16 %v643
  %v728 = vunpack.c.l.b16 %v644
  %v729 = vunpack.c.h.b16 %v644
  %v730 = vunpack.c.l.b16 %v645
  %v731 = vunpack.c.h.b16 %v645
  %v732 = vunpack.c.l.b16 %v646
  %v733 = vunpack.c.h.b16 %v646
  %v734 = vunpack.c.l.b16 %v647
  %v735 = vunpack.c.h.b16 %v647
  %v736 = vunpack.c.l.b16 %v648
  %v737 = vunpack.c.h.b16 %v648
  %v738 = vunpack.c.l.b16 %v649
  %v739 = vunpack.c.h.b16 %v649
  %v740 = vunpack.c.l.b16 %v650
  %v741 = vunpack.c.h.b16 %v650
  %v742 = vunpack.c.l.b16 %v651
  %v743 = vunpack.c.h.b16 %v651
  %v744 = vunpack.c.l.b16 %v652
  %v745 = vunpack.c.h.b16 %v652
  %v746 = vunpack.c.l.b16 %v653
  %v747 = vunpack.c.h.b16 %v653
  %v748 = vunpack.c.l.b16 %v654
  %v749 = vunpack.c.h.b16 %v654
  %v750 = vunpack.c.l.b16 %v655
  %v751 = vunpack.c.h.b16 %v655
  %v752 = vpack.c.b16 %v688, %v688
  %v753 = vpack.c.b16 %v689, %v689
  %v754 = vpack.c.b16 %v690, %v690
  %v755 = vpack.c.b16 %v691, %v691
  %v756 = vpack.c.b16 %v692, %v692
  %v757 = vpack.c.b16 %v693, %v693
  %v758 = vpack.c.b16 %v694, %v694
  %v759 = vpack.c.b16 %v695, %v695
  %v760 = vpack.c.b16 %v696, %v696
  %v761 = vpack.c.b16 %v697, %v697
  %v762 = vpack.c.b16 %v698, %v698
  %v763 = vpack.c.b16 %v699, %v699
  %v764 = vpack.c.b16 %v700, %v700
  %v765 = vpack.c.b16 %v701, %v701
  %v766 = vpack.c.b16 %v702, %v702
  %v767 = vpack.c.b16 %v703, %v703
  %v768 = vpack.c.b16 %v704, %v704
  %v769 = vpack.c.b16 %v705, %v705
  %v770 = vpack.c.b16 %v706, %v706
  %v771 = vpack.c.b16 %v707, %v707
  %v772 = vpack.c.b16 %v708, %v708
  %v773 = vpack.c.b16 %v709, %v709
  %v774 = vpack.c.b16 %v710, %v710
  %v775 = vpack.c.b16 %v711, %v711
  %v776 = vpack.c.b16 %v712, %v712
  %v777 = vpack.c.b16 %v713, %v713
  %v778 = vpack.c.b16 %v714, %v714
  %v779 = vpack.c.b16 %v715, %v715
  %v780 = vpack.c.b16 %v716, %v716
  %v781 = vpack.c.b16 %v717, %v717
  %v782 = vpack.c.b16 %v718, %v718
  %v783 = vpack.c.b16 %v719, %v719
  %v784 = vpack.c.b16 %v720, %v720
  %v785 = vpack.c.b16 %v721, %v721
  %v786 = vpack.c.b16 %v722, %v722
  %v787 = vpack.c.b16 %v723, %v723
  %v788 = vpack.c.b16 %v724, %v724
  %v789 = vpack.c.b16 %v725, %v725
  %v790 = vpack.c.b16 %v726, %v726
  %v791 = vpack.c.b16 %v727, %v727
  %v792 = vpack.c.b16 %v728, %v728
  %v793 = vpack.c.b16 %v729, %v729
  %v794 = vpack.c.b16 %v730, %v730
  %v795 = vpack.c.b16 %v731, %v731
  %v796 = vpack.c.b16 %v732, %v732
  %v797 = vpack.c.b16 %v733, %v733
  %v798 = vpack.c.b16 %v734, %v734
  %v799 = vpack.c.b16 %v735, %v735
  %v800 = vpack.c.b16 %v736, %v736
  %v801 = vpack.c.b16 %v737, %v737
  %v802 = vpack.c.b16 %v738, %v738
  %v803 = vpack.c.b16 %v739, %v739
  %v804 = vpack.c.b16 %v740, %v740
  %v805 = vpack.c.b16 %v741, %v741
  %v806 = vpack.c.b16 %v742, %v742
  %v807 = vpack.c.b16 %v743, %v743
  %v808 = vpack.c.b16 %v744, %v744
  %v809 = vpack.c.b16 %v745, %v745
  %v810 = vpack.c.b16 %v746, %v746
  %v811 = vpack.c.b16 %v747, %v747
  %v812 = vpack.c.b16 %v748, %v748
  %v813 = vpack.c.b16 %v749, %v749
  %v814 = vpack.c.b16 %v750, %v750
  %v815 = vpack.c.b16 %v751, %v751
  %880 = vst [vmem:[%s2] sm:$0xf] %v752
  %881 = vst [vmem:[%s2 + $0x4] sm:$0xf] %v753
  %882 = vst [vmem:[%s2 + $0x8] sm:$0xf] %v754
  %883 = vst [vmem:[%s2 + $0xc] sm:$0xf] %v755
  %884 = vst [vmem:[%s2 + $0x10] sm:$0xf] %v756
  %885 = vst [vmem:[%s2 + $0x14] sm:$0xf] %v757
  %886 = vst [vmem:[%s2 + $0x18] sm:$0xf] %v758
  %887 = vst [vmem:[%s2 + $0x1c] sm:$0xf] %v759
  %888 = vst [vmem:[%s2 + $0x20] sm:$0xf] %v760
  %889 = vst [vmem:[%s2 + $0x24] sm:$0xf] %v761
  %890 = vst [vmem:[%s2 + $0x28] sm:$0xf] %v762
  %891 = vst [vmem:[%s2 + $0x2c] sm:$0xf] %v763
  %892 = vst [vmem:[%s2 + $0x30] sm:$0xf] %v764
  %893 = vst [vmem:[%s2 + $0x34] sm:$0xf] %v765
  %894 = vst [vmem:[%s2 + $0x38] sm:$0xf] %v766
  %895 = vst [vmem:[%s2 + $0x3c] sm:$0xf] %v767
  %896 = vst [vmem:[%s2 + $0x40] sm:$0xf] %v768
  %897 = vst [vmem:[%s2 + $0x44] sm:$0xf] %v769
  %898 = vst [vmem:[%s2 + $0x48] sm:$0xf] %v770
  %899 = vst [vmem:[%s2 + $0x4c] sm:$0xf] %v771
  %900 = vst [vmem:[%s2 + $0x50] sm:$0xf] %v772
  %901 = vst [vmem:[%s2 + $0x54] sm:$0xf] %v773
  %902 = vst [vmem:[%s2 + $0x58] sm:$0xf] %v774
  %903 = vst [vmem:[%s2 + $0x5c] sm:$0xf] %v775
  %904 = vst [vmem:[%s2 + $0x60] sm:$0xf] %v776
  %905 = vst [vmem:[%s2 + $0x64] sm:$0xf] %v777
  %906 = vst [vmem:[%s2 + $0x68] sm:$0xf] %v778
  %907 = vst [vmem:[%s2 + $0x6c] sm:$0xf] %v779
  %908 = vst [vmem:[%s2 + $0x70] sm:$0xf] %v780
  %909 = vst [vmem:[%s2 + $0x74] sm:$0xf] %v781
  %910 = vst [vmem:[%s2 + $0x78] sm:$0xf] %v782
  %911 = vst [vmem:[%s2 + $0x7c] sm:$0xf] %v783
  %912 = vst [vmem:[%s2 + $0x80] sm:$0xf] %v784
  %913 = vst [vmem:[%s2 + $0x84] sm:$0xf] %v785
  %914 = vst [vmem:[%s2 + $0x88] sm:$0xf] %v786
  %915 = vst [vmem:[%s2 + $0x8c] sm:$0xf] %v787
  %916 = vst [vmem:[%s2 + $0x90] sm:$0xf] %v788
  %917 = vst [vmem:[%s2 + $0x94] sm:$0xf] %v789
  %918 = vst [vmem:[%s2 + $0x98] sm:$0xf] %v790
  %919 = vst [vmem:[%s2 + $0x9c] sm:$0xf] %v791
  %920 = vst [vmem:[%s2 + $0xa0] sm:$0xf] %v792
  %921 = vst [vmem:[%s2 + $0xa4] sm:$0xf] %v793
  %922 = vst [vmem:[%s2 + $0xa8] sm:$0xf] %v794
  %923 = vst [vmem:[%s2 + $0xac] sm:$0xf] %v795
  %924 = vst [vmem:[%s2 + $0xb0] sm:$0xf] %v796
  %925 = vst [vmem:[%s2 + $0xb4] sm:$0xf] %v797
  %926 = vst [vmem:[%s2 + $0xb8] sm:$0xf] %v798
  %927 = vst [vmem:[%s2 + $0xbc] sm:$0xf] %v799
  %928 = vst [vmem:[%s2 + $0xc0] sm:$0xf] %v800
  %929 = vst [vmem:[%s2 + $0xc4] sm:$0xf] %v801
  %930 = vst [vmem:[%s2 + $0xc8] sm:$0xf] %v802
  %931 = vst [vmem:[%s2 + $0xcc] sm:$0xf] %v803
  %932 = vst [vmem:[%s2 + $0xd0] sm:$0xf] %v804
  %933 = vst [vmem:[%s2 + $0xd4] sm:$0xf] %v805
  %934 = vst [vmem:[%s2 + $0xd8] sm:$0xf] %v806
  %935 = vst [vmem:[%s2 + $0xdc] sm:$0xf] %v807
  %936 = vst [vmem:[%s2 + $0xe0] sm:$0xf] %v808
  %937 = vst [vmem:[%s2 + $0xe4] sm:$0xf] %v809
  %938 = vst [vmem:[%s2 + $0xe8] sm:$0xf] %v810
  %939 = vst [vmem:[%s2 + $0xec] sm:$0xf] %v811
  %940 = vst [vmem:[%s2 + $0xf0] sm:$0xf] %v812
  %941 = vst [vmem:[%s2 + $0xf4] sm:$0xf] %v813
  %942 = vst [vmem:[%s2 + $0xf8] sm:$0xf] %v814
  %943 = vst [vmem:[%s2 + $0xfc] sm:$0xf] %v815
  %v944 = vunpack.c.l.bf16 %v624
  %v945 = vunpack.c.h.bf16 %v624
  %v946 = vunpack.c.l.bf16 %v625
  %v947 = vunpack.c.h.bf16 %v625
  %v948 = vunpack.c.l.bf16 %v626
  %v949 = vunpack.c.h.bf16 %v626
  %v950 = vunpack.c.l.bf16 %v627
  %v951 = vunpack.c.h.bf16 %v627
  %v952 = vunpack.c.l.bf16 %v628
  %v953 = vunpack.c.h.bf16 %v628
  %v954 = vunpack.c.l.bf16 %v629
  %v955 = vunpack.c.h.bf16 %v629
  %v956 = vunpack.c.l.bf16 %v630
  %v957 = vunpack.c.h.bf16 %v630
  %v958 = vunpack.c.l.bf16 %v631
  %v959 = vunpack.c.h.bf16 %v631
  %v960 = vunpack.c.l.bf16 %v632
  %v961 = vunpack.c.h.bf16 %v632
  %v962 = vunpack.c.l.bf16 %v633
  %v963 = vunpack.c.h.bf16 %v633
  %v964 = vunpack.c.l.bf16 %v634
  %v965 = vunpack.c.h.bf16 %v634
  %v966 = vunpack.c.l.bf16 %v635
  %v967 = vunpack.c.h.bf16 %v635
  %v968 = vunpack.c.l.bf16 %v636
  %v969 = vunpack.c.h.bf16 %v636
  %v970 = vunpack.c.l.bf16 %v637
  %v971 = vunpack.c.h.bf16 %v637
  %v972 = vunpack.c.l.bf16 %v638
  %v973 = vunpack.c.h.bf16 %v638
  %v974 = vunpack.c.l.bf16 %v639
  %v975 = vunpack.c.h.bf16 %v639
  %v976 = vunpack.c.l.bf16 %v640
  %v977 = vunpack.c.h.bf16 %v640
  %v978 = vunpack.c.l.bf16 %v641
  %v979 = vunpack.c.h.bf16 %v641
  %v980 = vunpack.c.l.bf16 %v642
  %v981 = vunpack.c.h.bf16 %v642
  %v982 = vunpack.c.l.bf16 %v643
  %v983 = vunpack.c.h.bf16 %v643
  %v984 = vunpack.c.l.bf16 %v644
  %v985 = vunpack.c.h.bf16 %v644
  %v986 = vunpack.c.l.bf16 %v645
  %v987 = vunpack.c.h.bf16 %v645
  %v988 = vunpack.c.l.bf16 %v646
  %v989 = vunpack.c.h.bf16 %v646
  %v990 = vunpack.c.l.bf16 %v647
  %v991 = vunpack.c.h.bf16 %v647
  %v992 = vunpack.c.l.bf16 %v648
  %v993 = vunpack.c.h.bf16 %v648
  %v994 = vunpack.c.l.bf16 %v649
  %v995 = vunpack.c.h.bf16 %v649
  %v996 = vunpack.c.l.bf16 %v650
  %v997 = vunpack.c.h.bf16 %v650
  %v998 = vunpack.c.l.bf16 %v651
  %v999 = vunpack.c.h.bf16 %v651
  %v1000 = vunpack.c.l.bf16 %v652
  %v1001 = vunpack.c.h.bf16 %v652
  %v1002 = vunpack.c.l.bf16 %v653
  %v1003 = vunpack.c.h.bf16 %v653
  %v1004 = vunpack.c.l.bf16 %v654
  %v1005 = vunpack.c.h.bf16 %v654
  %v1006 = vunpack.c.l.bf16 %v655
  %v1007 = vunpack.c.h.bf16 %v655
  %v1008 = vadd.f32 %v944, %v945
  %v1009 = vadd.f32 %v1008, %v946
  %v1010 = vadd.f32 %v1009, %v947
  %v1011 = vadd.f32 %v1010, %v948
  %v1012 = vadd.f32 %v1011, %v949
  %v1013 = vadd.f32 %v1012, %v950
  %v1014 = vadd.f32 %v1013, %v951
  %v1015 = vadd.f32 %v1014, %v952
  %v1016 = vadd.f32 %v1015, %v953
  %v1017 = vadd.f32 %v1016, %v954
  %v1018 = vadd.f32 %v1017, %v955
  %v1019 = vadd.f32 %v1018, %v956
  %v1020 = vadd.f32 %v1019, %v957
  %v1021 = vadd.f32 %v1020, %v958
  %v1022 = vadd.f32 %v1021, %v959
  %v1023 = vadd.f32 %v1022, %v960
  %v1024 = vadd.f32 %v1023, %v961
  %v1025 = vadd.f32 %v1024, %v962
  %v1026 = vadd.f32 %v1025, %v963
  %v1027 = vadd.f32 %v1026, %v964
  %v1028 = vadd.f32 %v1027, %v965
  %v1029 = vadd.f32 %v1028, %v966
  %v1030 = vadd.f32 %v1029, %v967
  %v1031 = vadd.f32 %v1030, %v968
  %v1032 = vadd.f32 %v1031, %v969
  %v1033 = vadd.f32 %v1032, %v970
  %v1034 = vadd.f32 %v1033, %v971
  %v1035 = vadd.f32 %v1034, %v972
  %v1036 = vadd.f32 %v1035, %v973
  %v1037 = vadd.f32 %v1036, %v974
  %v1038 = vadd.f32 %v1037, %v975
  %v1039 = vadd.f32 %v1038, %v976
  %v1040 = vadd.f32 %v1039, %v977
  %v1041 = vadd.f32 %v1040, %v978
  %v1042 = vadd.f32 %v1041, %v979
  %v1043 = vadd.f32 %v1042, %v980
  %v1044 = vadd.f32 %v1043, %v981
  %v1045 = vadd.f32 %v1044, %v982
  %v1046 = vadd.f32 %v1045, %v983
  %v1047 = vadd.f32 %v1046, %v984
  %v1048 = vadd.f32 %v1047, %v985
  %v1049 = vadd.f32 %v1048, %v986
  %v1050 = vadd.f32 %v1049, %v987
  %v1051 = vadd.f32 %v1050, %v988
  %v1052 = vadd.f32 %v1051, %v989
  %v1053 = vadd.f32 %v1052, %v990
  %v1054 = vadd.f32 %v1053, %v991
  %v1055 = vadd.f32 %v1054, %v992
  %v1056 = vadd.f32 %v1055, %v993
  %v1057 = vadd.f32 %v1056, %v994
  %v1058 = vadd.f32 %v1057, %v995
  %v1059 = vadd.f32 %v1058, %v996
  %v1060 = vadd.f32 %v1059, %v997
  %v1061 = vadd.f32 %v1060, %v998
  %v1062 = vadd.f32 %v1061, %v999
  %v1063 = vadd.f32 %v1062, %v1000
  %v1064 = vadd.f32 %v1063, %v1001
  %v1065 = vadd.f32 %v1064, %v1002
  %v1066 = vadd.f32 %v1065, %v1003
  %v1067 = vadd.f32 %v1066, %v1004
  %v1068 = vadd.f32 %v1067, %v1005
  %v1069 = vadd.f32 %v1068, %v1006
  %v1070 = vadd.f32 %v1069, %v1007
  %v1071 = vrot.slane %v1070, 4
  %v1072 = vadd.f32 %v1070, %v1071
  %v1073 = vrot.slane %v1072, 2
  %v1074 = vadd.f32 %v1072, %v1073
  %v1075 = vrot.slane %v1074, 1
  %v1076 = vadd.f32 %v1074, %v1075
  %1077 = vst [vmem:[%s3] sm:$0x1] %v1076
  %v1078 = vmul.f32 %v944, %v944
  %v1079 = vmul.f32 %v945, %v945
  %v1080 = vmul.f32 %v946, %v946
  %v1081 = vmul.f32 %v947, %v947
  %v1082 = vmul.f32 %v948, %v948
  %v1083 = vmul.f32 %v949, %v949
  %v1084 = vmul.f32 %v950, %v950
  %v1085 = vmul.f32 %v951, %v951
  %v1086 = vmul.f32 %v952, %v952
  %v1087 = vmul.f32 %v953, %v953
  %v1088 = vmul.f32 %v954, %v954
  %v1089 = vmul.f32 %v955, %v955
  %v1090 = vmul.f32 %v956, %v956
  %v1091 = vmul.f32 %v957, %v957
  %v1092 = vmul.f32 %v958, %v958
  %v1093 = vmul.f32 %v959, %v959
  %v1094 = vmul.f32 %v960, %v960
  %v1095 = vmul.f32 %v961, %v961
  %v1096 = vmul.f32 %v962, %v962
  %v1097 = vmul.f32 %v963, %v963
  %v1098 = vmul.f32 %v964, %v964
  %v1099 = vmul.f32 %v965, %v965
  %v1100 = vmul.f32 %v966, %v966
  %v1101 = vmul.f32 %v967, %v967
  %v1102 = vmul.f32 %v968, %v968
  %v1103 = vmul.f32 %v969, %v969
  %v1104 = vmul.f32 %v970, %v970
  %v1105 = vmul.f32 %v971, %v971
  %v1106 = vmul.f32 %v972, %v972
  %v1107 = vmul.f32 %v973, %v973
  %v1108 = vmul.f32 %v974, %v974
  %v1109 = vmul.f32 %v975, %v975
  %v1110 = vmul.f32 %v976, %v976
  %v1111 = vmul.f32 %v977, %v977
  %v1112 = vmul.f32 %v978, %v978
  %v1113 = vmul.f32 %v979, %v979
  %v1114 = vmul.f32 %v980, %v980
  %v1115 = vmul.f32 %v981, %v981
  %v1116 = vmul.f32 %v982, %v982
  %v1117 = vmul.f32 %v983, %v983
  %v1118 = vmul.f32 %v984, %v984
  %v1119 = vmul.f32 %v985, %v985
  %v1120 = vmul.f32 %v986, %v986
  %v1121 = vmul.f32 %v987, %v987
  %v1122 = vmul.f32 %v988, %v988
  %v1123 = vmul.f32 %v989, %v989
  %v1124 = vmul.f32 %v990, %v990
  %v1125 = vmul.f32 %v991, %v991
  %v1126 = vmul.f32 %v992, %v992
  %v1127 = vmul.f32 %v993, %v993
  %v1128 = vmul.f32 %v994, %v994
  %v1129 = vmul.f32 %v995, %v995
  %v1130 = vmul.f32 %v996, %v996
  %v1131 = vmul.f32 %v997, %v997
  %v1132 = vmul.f32 %v998, %v998
  %v1133 = vmul.f32 %v999, %v999
  %v1134 = vmul.f32 %v1000, %v1000
  %v1135 = vmul.f32 %v1001, %v1001
  %v1136 = vmul.f32 %v1002, %v1002
  %v1137 = vmul.f32 %v1003, %v1003
  %v1138 = vmul.f32 %v1004, %v1004
  %v1139 = vmul.f32 %v1005, %v1005
  %v1140 = vmul.f32 %v1006, %v1006
  %v1141 = vmul.f32 %v1007, %v1007
  %v1142 = vadd.f32 %v1078, %v1079
  %v1143 = vadd.f32 %v1142, %v1080
  %v1144 = vadd.f32 %v1143, %v1081
  %v1145 = vadd.f32 %v1144, %v1082
  %v1146 = vadd.f32 %v1145, %v1083
  %v1147 = vadd.f32 %v1146, %v1084
  %v1148 = vadd.f32 %v1147, %v1085
  %v1149 = vadd.f32 %v1148, %v1086
  %v1150 = vadd.f32 %v1149, %v1087
  %v1151 = vadd.f32 %v1150, %v1088
  %v1152 = vadd.f32 %v1151, %v1089
  %v1153 = vadd.f32 %v1152, %v1090
  %v1154 = vadd.f32 %v1153, %v1091
  %v1155 = vadd.f32 %v1154, %v1092
  %v1156 = vadd.f32 %v1155, %v1093
  %v1157 = vadd.f32 %v1156, %v1094
  %v1158 = vadd.f32 %v1157, %v1095
  %v1159 = vadd.f32 %v1158, %v1096
  %v1160 = vadd.f32 %v1159, %v1097
  %v1161 = vadd.f32 %v1160, %v1098
  %v1162 = vadd.f32 %v1161, %v1099
  %v1163 = vadd.f32 %v1162, %v1100
  %v1164 = vadd.f32 %v1163, %v1101
  %v1165 = vadd.f32 %v1164, %v1102
  %v1166 = vadd.f32 %v1165, %v1103
  %v1167 = vadd.f32 %v1166, %v1104
  %v1168 = vadd.f32 %v1167, %v1105
  %v1169 = vadd.f32 %v1168, %v1106
  %v1170 = vadd.f32 %v1169, %v1107
  %v1171 = vadd.f32 %v1170, %v1108
  %v1172 = vadd.f32 %v1171, %v1109
  %v1173 = vadd.f32 %v1172, %v1110
  %v1174 = vadd.f32 %v1173, %v1111
  %v1175 = vadd.f32 %v1174, %v1112
  %v1176 = vadd.f32 %v1175, %v1113
  %v1177 = vadd.f32 %v1176, %v1114
  %v1178 = vadd.f32 %v1177, %v1115
  %v1179 = vadd.f32 %v1178, %v1116
  %v1180 = vadd.f32 %v1179, %v1117
  %v1181 = vadd.f32 %v1180, %v1118
  %v1182 = vadd.f32 %v1181, %v1119
  %v1183 = vadd.f32 %v1182, %v1120
  %v1184 = vadd.f32 %v1183, %v1121
  %v1185 = vadd.f32 %v1184, %v1122
  %v1186 = vadd.f32 %v1185, %v1123
  %v1187 = vadd.f32 %v1186, %v1124
  %v1188 = vadd.f32 %v1187, %v1125
  %v1189 = vadd.f32 %v1188, %v1126
  %v1190 = vadd.f32 %v1189, %v1127
  %v1191 = vadd.f32 %v1190, %v1128
  %v1192 = vadd.f32 %v1191, %v1129
  %v1193 = vadd.f32 %v1192, %v1130
  %v1194 = vadd.f32 %v1193, %v1131
  %v1195 = vadd.f32 %v1194, %v1132
  %v1196 = vadd.f32 %v1195, %v1133
  %v1197 = vadd.f32 %v1196, %v1134
  %v1198 = vadd.f32 %v1197, %v1135
  %v1199 = vadd.f32 %v1198, %v1136
  %v1200 = vadd.f32 %v1199, %v1137
  %v1201 = vadd.f32 %v1200, %v1138
  %v1202 = vadd.f32 %v1201, %v1139
  %v1203 = vadd.f32 %v1202, %v1140
  %v1204 = vadd.f32 %v1203, %v1141
  %v1205 = vrot.slane %v1204, 4
  %v1206 = vadd.f32 %v1204, %v1205
  %v1207 = vrot.slane %v1206, 2
  %v1208 = vadd.f32 %v1206, %v1207
  %v1209 = vrot.slane %v1208, 1
  %v1210 = vadd.f32 %v1208, %v1209
  %1211 = vst [vmem:[%s4] sm:$0x1] %v1210
  // Predicated region
  $region10: #{_forward_impl.3} parent=0 // pred_check
    _
  $region11: #{_forward_impl.3} parent=0 // pred_check_branch
    %1213 = sbr.rel (0) target = $region13
  $region12: #{_forward_impl.3} parent=0 // pred_region
    _
  $region13: #{_forward_impl.3} parent=0 // pred_fallthru
    _
  // Predicated region
  $region14: #{_forward_impl.3} parent=0 // pred_check
    _
  $region15: #{_forward_impl.3} parent=0 // pred_check_branch
    %1215 = sbr.rel (0) target = $region17
  $region16: #{_forward_impl.3} parent=0 // pred_region
    _
  $region17: #{_forward_impl.3} parent=0 // pred_fallthru
    _
  // Predicated region
  $region18: #{_forward_impl.3} parent=0 // pred_check
    _
  $region19: #{_forward_impl.3} parent=0 // pred_check_branch
    %1217 = sbr.rel (0) target = $region21
  $region20: #{_forward_impl.3} parent=0 // pred_region
    _
  $region21: #{_forward_impl.3} parent=0 // pred_fallthru
    _
  // Predicated region
  $region22: #{_forward_impl.3} parent=0 // pred_check
    _
  $region23: #{_forward_impl.3} parent=0 // pred_check_branch
    %1219 = sbr.rel (0) target = $region25
  $region24: #{_forward_impl.3} parent=0 // pred_region
    _
  $region25: #{_forward_impl.3} parent=0 // pred_fallthru
    _
  // Predicated region
  $region26: #{_forward_impl.3} parent=0 // pred_check
    _
  $region27: #{_forward_impl.3} parent=0 // pred_check_branch
    %1221 = sbr.rel (0) target = $region29
  $region28: #{_forward_impl.3} parent=0 // pred_region
    _
  $region29: #{_forward_impl.3} parent=0 // pred_fallthru
    _
  // Predicated region
  $region30: #{_forward_impl.3} parent=0 // pred_check
    _
  $region31: #{_forward_impl.3} parent=0 // pred_check_branch
    %1223 = sbr.rel (0) target = $region33
  $region32: #{_forward_impl.3} parent=0 // pred_region
    _
  $region33: #{_forward_impl.3} parent=0 // pred_fallthru
    _

// kernel: _forward_impl.4
$region0: #{_forward_impl.4}
  #allocation0 [shape = 'u32[]', space=smem, size = 0x4, offset = 0x4, fixed_abs, tag = 'smem constant byte address 0x4 - core index']
  #allocation1 [shape = 'u32[144,128]{1,0:T(1,128)}', space=vmem, size = 0x12000, scoped, tag = 'internal scratch']
  %s0 = inlined_call_operand.vmem [shape: bf16[2,256,128], index: 0, kind: input, shape index: {}]
  %s1 = inlined_call_operand.vmem [shape: bf16[3,384,128], index: 1, kind: input, shape index: {}]
  %s2 = inlined_call_operand.vmem [shape: f32[1,128], index: 2, kind: input, shape index: {}]
  %s3 = inlined_call_operand.vmem [shape: f32[1,128], index: 3, kind: input, shape index: {}]
  %s4 = inlined_call_operand.vmem [shape: bf16[2,256,128], index: 4, kind: output, shape index: {0}]
  %s5 = inlined_call_operand.vmem [shape: f32[2,1,128], index: 5, kind: output, shape index: {1}]
  %s6 = inlined_call_operand.vmem [shape: f32[2,1,128], index: 6, kind: output, shape index: {2}]
  %7 = xla_tuple %s4, %s5, %s6
  %s8 = sld [smem:[#allocation0]]
  $region65: #{_forward_impl.4} parent=0
    _
  %s10 = ssub.s32 1, %s8
  %s11 = scalar_select 0, %s10, %s8
  loop: start=0, step=1, limit=4
  $region2: #{_forward_impl.4} parent=0 // loop_pre_header
    _
  $region3: #{_forward_impl.4} parent=0 // loop_header
    %s13 = sphi 0, %s17
    %p14 = scmp.ge.s32.totalorder %s13, 4
    %s23 = sphi 0, %s25
    %s26 = sphi 0, %s23
    %s27 = sphi 0, %s26
    %s43 = sphi 0, %s27
    %s47 = sphi 0, %s47
    %s49 = sphi 0, %s47
    %s50 = sphi 0, %s49
    %s64 = sphi 0, %s50
    %s68 = sphi 0, %s68
    %s70 = sphi 0, %s68
    %s71 = sphi 0, %s70
    %s85 = sphi 0, %s71
    %s89 = sphi 0, %s89
    %s91 = sphi 0, %s89
    %s92 = sphi 0, %s91
    %s106 = sphi 0, %s92
    %s112 = sphi 0, %s114
    %s115 = sphi 0, %s112
    %s116 = sphi 0, %s115
    %s132 = sphi 0, %s116
    %s138 = sphi 0, %s140
    %s141 = sphi 0, %s138
    %s142 = sphi 0, %s141
    %s158 = sphi 0, %s142
    %s164 = sphi 0, %s166
    %s167 = sphi 0, %s164
    %s168 = sphi 0, %s167
    %s184 = sphi 0, %s168
  $region4: #{_forward_impl.4} parent=0 // loop_header_branch
    %16 = sbr.rel (%p14) target = $region8
  $region5: #{_forward_impl.4} parent=0 // loop_body
    %s18 = ssub.s32 %s13, 1
    %s19 = ssub.s32 %s13, 2
    %s20 = sadd.s32 %s13, 1
    %s21 = ssub.s32 %s13, %s20
    %p22 = scmp.eq.s32.totalorder %s21, 0
    %s24 = sadd.s32 %s23, 1
    %s25 = scalar_select %p22, %s23, %s24
    %p28 = pneg %p22
    %p29 = scmp.eq.s32.totalorder %s13, 1
    %p30 = por %p28, %p29
    %p31 = scmp.ne.s32.totalorder %s23, %s26
    %p32 = scmp.eq.s32.totalorder %s13, 0
    %p33 = por %p31, %p32
    %p34 = scmp.ne.s32.totalorder %s23, %s26
    %p35 = scmp.eq.s32.totalorder %s18, 1
    %p36 = por %p34, %p35
    %p37 = scmp.ne.s32.totalorder %s26, %s27
    %p38 = scmp.eq.s32.totalorder %s18, 0
    %p39 = por %p37, %p38
    %p40 = scmp.ne.s32.totalorder %s26, %s27
    %p41 = scmp.eq.s32.totalorder %s19, 1
    %p42 = por %p40, %p41
    %p44 = scmp.ne.s32.totalorder %s27, %s43
    %p45 = scmp.eq.s32.totalorder %s19, 0
    %p46 = por %p44, %p45
    %s48 = sadd.s32 %s47, 1
    %p51 = scmp.eq.s32.totalorder %s13, 1
    %p52 = scmp.ne.s32.totalorder %s47, %s49
    %p53 = scmp.eq.s32.totalorder %s13, 0
    %p54 = por %p52, %p53
    %p55 = scmp.ne.s32.totalorder %s47, %s49
    %p56 = scmp.eq.s32.totalorder %s18, 1
    %p57 = por %p55, %p56
    %p58 = scmp.ne.s32.totalorder %s49, %s50
    %p59 = scmp.eq.s32.totalorder %s18, 0
    %p60 = por %p58, %p59
    %p61 = scmp.ne.s32.totalorder %s49, %s50
    %p62 = scmp.eq.s32.totalorder %s19, 1
    %p63 = por %p61, %p62
    %p65 = scmp.ne.s32.totalorder %s50, %s64
    %p66 = scmp.eq.s32.totalorder %s19, 0
    %p67 = por %p65, %p66
    %s69 = sadd.s32 %s68, 1
    %p72 = scmp.eq.s32.totalorder %s13, 1
    %p73 = scmp.ne.s32.totalorder %s68, %s70
    %p74 = scmp.eq.s32.totalorder %s13, 0
    %p75 = por %p73, %p74
    %p76 = scmp.ne.s32.totalorder %s68, %s70
    %p77 = scmp.eq.s32.totalorder %s18, 1
    %p78 = por %p76, %p77
    %p79 = scmp.ne.s32.totalorder %s70, %s71
    %p80 = scmp.eq.s32.totalorder %s18, 0
    %p81 = por %p79, %p80
    %p82 = scmp.ne.s32.totalorder %s70, %s71
    %p83 = scmp.eq.s32.totalorder %s19, 1
    %p84 = por %p82, %p83
    %p86 = scmp.ne.s32.totalorder %s71, %s85
    %p87 = scmp.eq.s32.totalorder %s19, 0
    %p88 = por %p86, %p87
    %s90 = sadd.s32 %s89, 1
    %p93 = scmp.eq.s32.totalorder %s13, 1
    %p94 = scmp.ne.s32.totalorder %s89, %s91
    %p95 = scmp.eq.s32.totalorder %s13, 0
    %p96 = por %p94, %p95
    %p97 = scmp.ne.s32.totalorder %s89, %s91
    %p98 = scmp.eq.s32.totalorder %s18, 1
    %p99 = por %p97, %p98
    %p100 = scmp.ne.s32.totalorder %s91, %s92
    %p101 = scmp.eq.s32.totalorder %s18, 0
    %p102 = por %p100, %p101
    %p103 = scmp.ne.s32.totalorder %s91, %s92
    %p104 = scmp.eq.s32.totalorder %s19, 1
    %p105 = por %p103, %p104
    %p107 = scmp.ne.s32.totalorder %s92, %s106
    %p108 = scmp.eq.s32.totalorder %s19, 0
    %p109 = por %p107, %p108
    %s110 = ssub.s32 %s13, %s20
    %p111 = scmp.eq.s32.totalorder %s110, 0
    %s113 = sadd.s32 %s112, 1
    %s114 = scalar_select %p111, %s112, %s113
    %p117 = pneg %p111
    %p118 = scmp.eq.s32.totalorder %s13, 1
    %p119 = por %p117, %p118
    %p120 = scmp.ne.s32.totalorder %s112, %s115
    %p121 = scmp.eq.s32.totalorder %s13, 0
    %p122 = por %p120, %p121
    %p123 = scmp.ne.s32.totalorder %s112, %s115
    %p124 = scmp.eq.s32.totalorder %s18, 1
    %p125 = por %p123, %p124
    %p126 = scmp.ne.s32.totalorder %s115, %s116
    %p127 = scmp.eq.s32.totalorder %s18, 0
    %p128 = por %p126, %p127
    %p129 = scmp.ne.s32.totalorder %s115, %s116
    %p130 = scmp.eq.s32.totalorder %s19, 1
    %p131 = por %p129, %p130
    %p133 = scmp.ne.s32.totalorder %s116, %s132
    %p134 = scmp.eq.s32.totalorder %s19, 0
    %p135 = por %p133, %p134
    %s136 = ssub.s32 %s13, %s20
    %p137 = scmp.eq.s32.totalorder %s136, 0
    %s139 = sadd.s32 %s138, 1
    %s140 = scalar_select %p137, %s138, %s139
    %p143 = pneg %p137
    %p144 = scmp.eq.s32.totalorder %s13, 1
    %p145 = por %p143, %p144
    %p146 = scmp.ne.s32.totalorder %s138, %s141
    %p147 = scmp.eq.s32.totalorder %s13, 0
    %p148 = por %p146, %p147
    %p149 = scmp.ne.s32.totalorder %s138, %s141
    %p150 = scmp.eq.s32.totalorder %s18, 1
    %p151 = por %p149, %p150
    %p152 = scmp.ne.s32.totalorder %s141, %s142
    %p153 = scmp.eq.s32.totalorder %s18, 0
    %p154 = por %p152, %p153
    %p155 = scmp.ne.s32.totalorder %s141, %s142
    %p156 = scmp.eq.s32.totalorder %s19, 1
    %p157 = por %p155, %p156
    %p159 = scmp.ne.s32.totalorder %s142, %s158
    %p160 = scmp.eq.s32.totalorder %s19, 0
    %p161 = por %p159, %p160
    %s162 = ssub.s32 %s13, %s20
    %p163 = scmp.eq.s32.totalorder %s162, 0
    %s165 = sadd.s32 %s164, 1
    %s166 = scalar_select %p163, %s164, %s165
    %p169 = pneg %p163
    %p170 = scmp.eq.s32.totalorder %s13, 1
    %p171 = por %p169, %p170
    %p172 = scmp.ne.s32.totalorder %s164, %s167
    %p173 = scmp.eq.s32.totalorder %s13, 0
    %p174 = por %p172, %p173
    %p175 = scmp.ne.s32.totalorder %s164, %s167
    %p176 = scmp.eq.s32.totalorder %s18, 1
    %p177 = por %p175, %p176
    %p178 = scmp.ne.s32.totalorder %s167, %s168
    %p179 = scmp.eq.s32.totalorder %s18, 0
    %p180 = por %p178, %p179
    %p181 = scmp.ne.s32.totalorder %s167, %s168
    %p182 = scmp.eq.s32.totalorder %s19, 1
    %p183 = por %p181, %p182
    %p185 = scmp.ne.s32.totalorder %s168, %s184
    %p186 = scmp.eq.s32.totalorder %s19, 0
    %p187 = por %p185, %p186
    %p188 = scmp.le.s32.totalorder 1, %s13
    %p189 = scmp.lt.s32.totalorder %s13, 3
    %p190 = pnand %p188, %p189
    %p191 = pneg %p190
    // Predicated region
    $region9: #{_forward_impl.4} parent=5 // pred_check
      _
    $region10: #{_forward_impl.4} parent=5 // pred_check_branch
      %193 = sbr.rel (%p190) target = $region12
    $region11: #{_forward_impl.4} parent=5 // pred_region
      %s194 = ssub.s32 %s13, 1
      // Predicated region
      $region13: #{_forward_impl.4} parent=11 // pred_check
        %p195 = pneg %p60
      $region14: #{_forward_impl.4} parent=11 // pred_check_branch
        %197 = sbr.rel (%p195) target = $region16
      $region15: #{_forward_impl.4} parent=11 // pred_region
        _
      $region16: #{_forward_impl.4} parent=11 // pred_fallthru
        _
      // Predicated region
      $region17: #{_forward_impl.4} parent=11 // pred_check
        %p198 = pneg %p81
      $region18: #{_forward_impl.4} parent=11 // pred_check_branch
        %200 = sbr.rel (%p198) target = $region20
      $region19: #{_forward_impl.4} parent=11 // pred_region
        _
      $region20: #{_forward_impl.4} parent=11 // pred_fallthru
        _
      // Predicated region
      $region21: #{_forward_impl.4} parent=11 // pred_check
        %p201 = pneg %p102
      $region22: #{_forward_impl.4} parent=11 // pred_check_branch
        %203 = sbr.rel (%p201) target = $region24
      $region23: #{_forward_impl.4} parent=11 // pred_region
        _
      $region24: #{_forward_impl.4} parent=11 // pred_fallthru
        _
    $region12: #{_forward_impl.4} parent=5 // pred_fallthru
      _
    %p204 = scmp.lt.s32.totalorder %s13, 2
    // Predicated region
    $region25: #{_forward_impl.4} parent=5 // pred_check
      %p205 = pneg %p204
    $region26: #{_forward_impl.4} parent=5 // pred_check_branch
      %207 = sbr.rel (%p205) target = $region28
    $region27: #{_forward_impl.4} parent=5 // pred_region
      // Predicated region
      $region29: #{_forward_impl.4} parent=27 // pred_check
        %p208 = pneg %p33
      $region30: #{_forward_impl.4} parent=27 // pred_check_branch
        %210 = sbr.rel (%p208) target = $region32
      $region31: #{_forward_impl.4} parent=27 // pred_region
        %p211 = scmp.lt.s32.totalorder %s13, 1
        %s212 = scalar_select %p211, %s13, 1
        %s213 = smul.addr %s212, 32
        %s214 = smul.addr %s213, 4
        %s215 = scalar_lea.vmem %s0, %s214
      $region32: #{_forward_impl.4} parent=27 // pred_fallthru
        _
    $region28: #{_forward_impl.4} parent=5 // pred_fallthru
      _
    %p216 = scmp.le.s32.totalorder 1, %s13
    %p217 = scmp.lt.s32.totalorder %s13, 3
    %p218 = pnand %p216, %p217
    %p219 = pneg %p218
    // Predicated region
    $region33: #{_forward_impl.4} parent=5 // pred_check
      _
    $region34: #{_forward_impl.4} parent=5 // pred_check_branch
      %221 = sbr.rel (%p218) target = $region36
    $region35: #{_forward_impl.4} parent=5 // pred_region
      %s222 = ssub.s32 %s13, 1
      %p223 = scmp.lt.s32.totalorder %s18, 1
      %s224 = scalar_select %p223, %s18, 1
      %s225 = smul.addr %s224, 32
      %s226 = smul.addr %s225, 4
      %s227 = scalar_lea.vmem %s0, %s226
      %p228 = pneg %p39
      %p229 = pneg %p36
      %p230 = pneg %p60
      %p231 = pneg %p57
      %p232 = pneg %p81
      %p233 = pneg %p78
      %p234 = pneg %p102
      %p235 = pneg %p99
      %p236 = pneg %p128
      %p237 = pneg %p125
      %p238 = scmp.lt.s32.totalorder %s18, 1
      %s239 = scalar_select %p238, %s18, 1
      %s240 = smul.addr %s239, 32
      %s241 = smul.addr %s240, 4
      %s242 = scalar_lea.vmem %s4, %s241
      %p243 = pneg %p154
      %p244 = pneg %p151
      %p245 = scmp.lt.s32.totalorder %s18, 1
      %s246 = scalar_select %p245, %s18, 1
      %s247 = scalar_lea.vmem %s5, %s246
      %p248 = pneg %p180
      %p249 = pneg %p177
      %p250 = scmp.lt.s32.totalorder %s18, 1
      %s251 = scalar_select %p250, %s18, 1
      %s252 = scalar_lea.vmem %s6, %s251
      %p253 = scmp.lt.s32.totalorder %s18, 1
      %s254 = scalar_select %p253, %s18, 1
      %s255 = smul.addr %s254, 32
      %s256 = smul.addr %s255, 4
      %s257 = scalar_lea.vmem %s0, %s256
      %p258 = scmp.lt.s32.totalorder %s18, 1
      %s259 = scalar_select %p258, %s18, 1
      %s260 = smul.addr %s259, 32
      %s261 = smul.addr %s260, 4
      %s262 = scalar_lea.vmem %s4, %s261
      %p263 = scmp.lt.s32.totalorder %s18, 1
      %s264 = scalar_select %p263, %s18, 1
      %s265 = scalar_lea.vmem %s5, %s264
      %p266 = scmp.lt.s32.totalorder %s18, 1
      %s267 = scalar_select %p266, %s18, 1
      %s268 = scalar_lea.vmem %s6, %s267
      %v271 = vld [vmem:[%s2] sm:$0x1]
      %v272 = vpack.c.bf16 %v271, %v271
      %v273 = vld [vmem:[%s3] sm:$0x1]
      %v274 = vpack.c.bf16 %v273, %v273
      %v275 = vld [vmem:[%s257] sm:$0xf]
      %v276 = vld [vmem:[%s257 + $0x4] sm:$0xf]
      %v277 = vld [vmem:[%s257 + $0x8] sm:$0xf]
      %v278 = vld [vmem:[%s257 + $0xc] sm:$0xf]
      %v279 = vld [vmem:[%s257 + $0x10] sm:$0xf]
      %v280 = vld [vmem:[%s257 + $0x14] sm:$0xf]
      %v281 = vld [vmem:[%s257 + $0x18] sm:$0xf]
      %v282 = vld [vmem:[%s257 + $0x1c] sm:$0xf]
      %v283 = vld [vmem:[%s257 + $0x20] sm:$0xf]
      %v284 = vld [vmem:[%s257 + $0x24] sm:$0xf]
      %v285 = vld [vmem:[%s257 + $0x28] sm:$0xf]
      %v286 = vld [vmem:[%s257 + $0x2c] sm:$0xf]
      %v287 = vld [vmem:[%s257 + $0x30] sm:$0xf]
      %v288 = vld [vmem:[%s257 + $0x34] sm:$0xf]
      %v289 = vld [vmem:[%s257 + $0x38] sm:$0xf]
      %v290 = vld [vmem:[%s257 + $0x3c] sm:$0xf]
      %v291 = vld [vmem:[%s257 + $0x40] sm:$0xf]
      %v292 = vld [vmem:[%s257 + $0x44] sm:$0xf]
      %v293 = vld [vmem:[%s257 + $0x48] sm:$0xf]
      %v294 = vld [vmem:[%s257 + $0x4c] sm:$0xf]
      %v295 = vld [vmem:[%s257 + $0x50] sm:$0xf]
      %v296 = vld [vmem:[%s257 + $0x54] sm:$0xf]
      %v297 = vld [vmem:[%s257 + $0x58] sm:$0xf]
      %v298 = vld [vmem:[%s257 + $0x5c] sm:$0xf]
      %v299 = vld [vmem:[%s257 + $0x60] sm:$0xf]
      %v300 = vld [vmem:[%s257 + $0x64] sm:$0xf]
      %v301 = vld [vmem:[%s257 + $0x68] sm:$0xf]
      %v302 = vld [vmem:[%s257 + $0x6c] sm:$0xf]
      %v303 = vld [vmem:[%s257 + $0x70] sm:$0xf]
      %v304 = vld [vmem:[%s257 + $0x74] sm:$0xf]
      %v305 = vld [vmem:[%s257 + $0x78] sm:$0xf]
      %v306 = vld [vmem:[%s257 + $0x7c] sm:$0xf]
      %v308 = vpack.i.b16 %v272, %v272
      %v310 = vlaneseq
      %v311 = vshrl.u32 %v310, 7
      %v312 = vsub.s32 0, %v311
      %v313 = vrot.slane %v308, %v312
      %v315 = vunpack.c.l.b16 %v313
      %v316 = vpack.c.b16 %v315, %v315
      %v318 = vmul.bf16 %v275, %v316
      %v319 = vmul.bf16 %v276, %v316
      %v320 = vmul.bf16 %v277, %v316
      %v321 = vmul.bf16 %v278, %v316
      %v322 = vmul.bf16 %v279, %v316
      %v323 = vmul.bf16 %v280, %v316
      %v324 = vmul.bf16 %v281, %v316
      %v325 = vmul.bf16 %v282, %v316
      %v326 = vmul.bf16 %v283, %v316
      %v327 = vmul.bf16 %v284, %v316
      %v328 = vmul.bf16 %v285, %v316
      %v329 = vmul.bf16 %v286, %v316
      %v330 = vmul.bf16 %v287, %v316
      %v331 = vmul.bf16 %v288, %v316
      %v332 = vmul.bf16 %v289, %v316
      %v333 = vmul.bf16 %v290, %v316
      %v334 = vmul.bf16 %v291, %v316
      %v335 = vmul.bf16 %v292, %v316
      %v336 = vmul.bf16 %v293, %v316
      %v337 = vmul.bf16 %v294, %v316
      %v338 = vmul.bf16 %v295, %v316
      %v339 = vmul.bf16 %v296, %v316
      %v340 = vmul.bf16 %v297, %v316
      %v341 = vmul.bf16 %v298, %v316
      %v342 = vmul.bf16 %v299, %v316
      %v343 = vmul.bf16 %v300, %v316
      %v344 = vmul.bf16 %v301, %v316
      %v345 = vmul.bf16 %v302, %v316
      %v346 = vmul.bf16 %v303, %v316
      %v347 = vmul.bf16 %v304, %v316
      %v348 = vmul.bf16 %v305, %v316
      %v349 = vmul.bf16 %v306, %v316
      %v351 = vpack.i.b16 %v274, %v274
      %v353 = vlaneseq
      %v354 = vshrl.u32 %v353, 7
      %v355 = vsub.s32 0, %v354
      %v356 = vrot.slane %v351, %v355
      %v358 = vunpack.c.l.b16 %v356
      %v359 = vpack.c.b16 %v358, %v358
      %v361 = vadd.bf16 %v318, %v359
      %v362 = vadd.bf16 %v319, %v359
      %v363 = vadd.bf16 %v320, %v359
      %v364 = vadd.bf16 %v321, %v359
      %v365 = vadd.bf16 %v322, %v359
      %v366 = vadd.bf16 %v323, %v359
      %v367 = vadd.bf16 %v324, %v359
      %v368 = vadd.bf16 %v325, %v359
      %v369 = vadd.bf16 %v326, %v359
      %v370 = vadd.bf16 %v327, %v359
      %v371 = vadd.bf16 %v328, %v359
      %v372 = vadd.bf16 %v329, %v359
      %v373 = vadd.bf16 %v330, %v359
      %v374 = vadd.bf16 %v331, %v359
      %v375 = vadd.bf16 %v332, %v359
      %v376 = vadd.bf16 %v333, %v359
      %v377 = vadd.bf16 %v334, %v359
      %v378 = vadd.bf16 %v335, %v359
      %v379 = vadd.bf16 %v336, %v359
      %v380 = vadd.bf16 %v337, %v359
      %v381 = vadd.bf16 %v338, %v359
      %v382 = vadd.bf16 %v339, %v359
      %v383 = vadd.bf16 %v340, %v359
      %v384 = vadd.bf16 %v341, %v359
      %v385 = vadd.bf16 %v342, %v359
      %v386 = vadd.bf16 %v343, %v359
      %v387 = vadd.bf16 %v344, %v359
      %v388 = vadd.bf16 %v345, %v359
      %v389 = vadd.bf16 %v346, %v359
      %v390 = vadd.bf16 %v347, %v359
      %v391 = vadd.bf16 %v348, %v359
      %v392 = vadd.bf16 %v349, %v359
      %vm393 = vcmp.ge.bf16.partialorder %v361, 0
      %vm394 = vcmp.ge.bf16.partialorder %v362, 0
      %vm395 = vcmp.ge.bf16.partialorder %v363, 0
      %vm396 = vcmp.ge.bf16.partialorder %v364, 0
      %vm397 = vcmp.ge.bf16.partialorder %v365, 0
      %vm398 = vcmp.ge.bf16.partialorder %v366, 0
      %vm399 = vcmp.ge.bf16.partialorder %v367, 0
      %vm400 = vcmp.ge.bf16.partialorder %v368, 0
      %vm401 = vcmp.ge.bf16.partialorder %v369, 0
      %vm402 = vcmp.ge.bf16.partialorder %v370, 0
      %vm403 = vcmp.ge.bf16.partialorder %v371, 0
      %vm404 = vcmp.ge.bf16.partialorder %v372, 0
      %vm405 = vcmp.ge.bf16.partialorder %v373, 0
      %vm406 = vcmp.ge.bf16.partialorder %v374, 0
      %vm407 = vcmp.ge.bf16.partialorder %v375, 0
      %vm408 = vcmp.ge.bf16.partialorder %v376, 0
      %vm409 = vcmp.ge.bf16.partialorder %v377, 0
      %vm410 = vcmp.ge.bf16.partialorder %v378, 0
      %vm411 = vcmp.ge.bf16.partialorder %v379, 0
      %vm412 = vcmp.ge.bf16.partialorder %v380, 0
      %vm413 = vcmp.ge.bf16.partialorder %v381, 0
      %vm414 = vcmp.ge.bf16.partialorder %v382, 0
      %vm415 = vcmp.ge.bf16.partialorder %v383, 0
      %vm416 = vcmp.ge.bf16.partialorder %v384, 0
      %vm417 = vcmp.ge.bf16.partialorder %v385, 0
      %vm418 = vcmp.ge.bf16.partialorder %v386, 0
      %vm419 = vcmp.ge.bf16.partialorder %v387, 0
      %vm420 = vcmp.ge.bf16.partialorder %v388, 0
      %vm421 = vcmp.ge.bf16.partialorder %v389, 0
      %vm422 = vcmp.ge.bf16.partialorder %v390, 0
      %vm423 = vcmp.ge.bf16.partialorder %v391, 0
      %vm424 = vcmp.ge.bf16.partialorder %v392, 0
      %v425 = vmul.bf16 %v361, 1009007652
      %v426 = vmul.bf16 %v362, 1009007652
      %v427 = vmul.bf16 %v363, 1009007652
      %v428 = vmul.bf16 %v364, 1009007652
      %v429 = vmul.bf16 %v365, 1009007652
      %v430 = vmul.bf16 %v366, 1009007652
      %v431 = vmul.bf16 %v367, 1009007652
      %v432 = vmul.bf16 %v368, 1009007652
      %v433 = vmul.bf16 %v369, 1009007652
      %v434 = vmul.bf16 %v370, 1009007652
      %v435 = vmul.bf16 %v371, 1009007652
      %v436 = vmul.bf16 %v372, 1009007652
      %v437 = vmul.bf16 %v373, 1009007652
      %v438 = vmul.bf16 %v374, 1009007652
      %v439 = vmul.bf16 %v375, 1009007652
      %v440 = vmul.bf16 %v376, 1009007652
      %v441 = vmul.bf16 %v377, 1009007652
      %v442 = vmul.bf16 %v378, 1009007652
      %v443 = vmul.bf16 %v379, 1009007652
      %v444 = vmul.bf16 %v380, 1009007652
      %v445 = vmul.bf16 %v381, 1009007652
      %v446 = vmul.bf16 %v382, 1009007652
      %v447 = vmul.bf16 %v383, 1009007652
      %v448 = vmul.bf16 %v384, 1009007652
      %v449 = vmul.bf16 %v385, 1009007652
      %v450 = vmul.bf16 %v386, 1009007652
      %v451 = vmul.bf16 %v387, 1009007652
      %v452 = vmul.bf16 %v388, 1009007652
      %v453 = vmul.bf16 %v389, 1009007652
      %v454 = vmul.bf16 %v390, 1009007652
      %v455 = vmul.bf16 %v391, 1009007652
      %v456 = vmul.bf16 %v392, 1009007652
      %v457 = vsel %vm393, %v361, %v425
      %v458 = vsel %vm394, %v362, %v426
      %v459 = vsel %vm395, %v363, %v427
      %v460 = vsel %vm396, %v364, %v428
      %v461 = vsel %vm397, %v365, %v429
      %v462 = vsel %vm398, %v366, %v430
      %v463 = vsel %vm399, %v367, %v431
      %v464 = vsel %vm400, %v368, %v432
      %v465 = vsel %vm401, %v369, %v433
      %v466 = vsel %vm402, %v370, %v434
      %v467 = vsel %vm403, %v371, %v435
      %v468 = vsel %vm404, %v372, %v436
      %v469 = vsel %vm405, %v373, %v437
      %v470 = vsel %vm406, %v374, %v438
      %v471 = vsel %vm407, %v375, %v439
      %v472 = vsel %vm408, %v376, %v440
      %v473 = vsel %vm409, %v377, %v441
      %v474 = vsel %vm410, %v378, %v442
      %v475 = vsel %vm411, %v379, %v443
      %v476 = vsel %vm412, %v380, %v444
      %v477 = vsel %vm413, %v381, %v445
      %v478 = vsel %vm414, %v382, %v446
      %v479 = vsel %vm415, %v383, %v447
      %v480 = vsel %vm416, %v384, %v448
      %v481 = vsel %vm417, %v385, %v449
      %v482 = vsel %vm418, %v386, %v450
      %v483 = vsel %vm419, %v387, %v451
      %v484 = vsel %vm420, %v388, %v452
      %v485 = vsel %vm421, %v389, %v453
      %v486 = vsel %vm422, %v390, %v454
      %v487 = vsel %vm423, %v391, %v455
      %v488 = vsel %vm424, %v392, %v456
      %v521 = vunpack.c.l.b16 %v457
      %v522 = vunpack.c.l.b16 %v458
      %v523 = vunpack.c.l.b16 %v459
      %v524 = vunpack.c.l.b16 %v460
      %v525 = vunpack.c.l.b16 %v461
      %v526 = vunpack.c.l.b16 %v462
      %v527 = vunpack.c.l.b16 %v463
      %v528 = vunpack.c.l.b16 %v464
      %v529 = vunpack.c.l.b16 %v465
      %v530 = vunpack.c.l.b16 %v466
      %v531 = vunpack.c.l.b16 %v467
      %v532 = vunpack.c.l.b16 %v468
      %v533 = vunpack.c.l.b16 %v469
      %v534 = vunpack.c.l.b16 %v470
      %v535 = vunpack.c.l.b16 %v471
      %v536 = vunpack.c.l.b16 %v472
      %v537 = vunpack.c.l.b16 %v473
      %v538 = vunpack.c.l.b16 %v474
      %v539 = vunpack.c.l.b16 %v475
      %v540 = vunpack.c.l.b16 %v476
      %v541 = vunpack.c.l.b16 %v477
      %v542 = vunpack.c.l.b16 %v478
      %v543 = vunpack.c.l.b16 %v479
      %v544 = vunpack.c.l.b16 %v480
      %v545 = vunpack.c.l.b16 %v481
      %v546 = vunpack.c.l.b16 %v482
      %v547 = vunpack.c.l.b16 %v483
      %v548 = vunpack.c.l.b16 %v484
      %v549 = vunpack.c.l.b16 %v485
      %v550 = vunpack.c.l.b16 %v486
      %v551 = vunpack.c.l.b16 %v487
      %v552 = vunpack.c.l.b16 %v488
      %v553 = vpack.c.b16 %v522, %v521
      %v554 = vpack.c.b16 %v524, %v523
      %v555 = vpack.c.b16 %v526, %v525
      %v556 = vpack.c.b16 %v528, %v527
      %v557 = vpack.c.b16 %v530, %v529
      %v558 = vpack.c.b16 %v532, %v531
      %v559 = vpack.c.b16 %v534, %v533
      %v560 = vpack.c.b16 %v536, %v535
      %v561 = vpack.c.b16 %v538, %v537
      %v562 = vpack.c.b16 %v540, %v539
      %v563 = vpack.c.b16 %v542, %v541
      %v564 = vpack.c.b16 %v544, %v543
      %v565 = vpack.c.b16 %v546, %v545
      %v566 = vpack.c.b16 %v548, %v547
      %v567 = vpack.c.b16 %v550, %v549
      %v568 = vpack.c.b16 %v552, %v551
      %v570 = vshrl.u32 %v553, 16
      %v572 = vrot.slane %v570, 7
      %v573 = vshll.u32 %v553, 16
      %v575 = vor.u32 %v572, %v573
      %v577 = vshrl.u32 %v554, 16
      %v579 = vrot.slane %v577, 7
      %v580 = vshll.u32 %v554, 16
      %v582 = vor.u32 %v579, %v580
      %v584 = vshrl.u32 %v555, 16
      %v586 = vrot.slane %v584, 7
      %v587 = vshll.u32 %v555, 16
      %v589 = vor.u32 %v586, %v587
      %v591 = vshrl.u32 %v556, 16
      %v593 = vrot.slane %v591, 7
      %v594 = vshll.u32 %v556, 16
      %v596 = vor.u32 %v593, %v594
      %v598 = vshrl.u32 %v557, 16
      %v600 = vrot.slane %v598, 7
      %v601 = vshll.u32 %v557, 16
      %v603 = vor.u32 %v600, %v601
      %v605 = vshrl.u32 %v558, 16
      %v607 = vrot.slane %v605, 7
      %v608 = vshll.u32 %v558, 16
      %v610 = vor.u32 %v607, %v608
      %v612 = vshrl.u32 %v559, 16
      %v614 = vrot.slane %v612, 7
      %v615 = vshll.u32 %v559, 16
      %v617 = vor.u32 %v614, %v615
      %v619 = vshrl.u32 %v560, 16
      %v621 = vrot.slane %v619, 7
      %v622 = vshll.u32 %v560, 16
      %v624 = vor.u32 %v621, %v622
      %v626 = vshrl.u32 %v561, 16
      %v628 = vrot.slane %v626, 7
      %v629 = vshll.u32 %v561, 16
      %v631 = vor.u32 %v628, %v629
      %v633 = vshrl.u32 %v562, 16
      %v635 = vrot.slane %v633, 7
      %v636 = vshll.u32 %v562, 16
      %v638 = vor.u32 %v635, %v636
      %v640 = vshrl.u32 %v563, 16
      %v642 = vrot.slane %v640, 7
      %v643 = vshll.u32 %v563, 16
      %v645 = vor.u32 %v642, %v643
      %v647 = vshrl.u32 %v564, 16
      %v649 = vrot.slane %v647, 7
      %v650 = vshll.u32 %v564, 16
      %v652 = vor.u32 %v649, %v650
      %v654 = vshrl.u32 %v565, 16
      %v656 = vrot.slane %v654, 7
      %v657 = vshll.u32 %v565, 16
      %v659 = vor.u32 %v656, %v657
      %v661 = vshrl.u32 %v566, 16
      %v663 = vrot.slane %v661, 7
      %v664 = vshll.u32 %v566, 16
      %v666 = vor.u32 %v663, %v664
      %v668 = vshrl.u32 %v567, 16
      %v670 = vrot.slane %v668, 7
      %v671 = vshll.u32 %v567, 16
      %v673 = vor.u32 %v670, %v671
      %v675 = vshrl.u32 %v568, 16
      %v677 = vrot.slane %v675, 7
      %v678 = vshll.u32 %v568, 16
      %v680 = vor.u32 %v677, %v678
      %vm697 = vcmask 1040384
      %vm698 = vsmask.f32 256
      %vm699 = vmand %vm697, %vm698
      %v700 = vsel %vm699, 0, %v575
      %v701 = vsel %vm699, 0, %v582
      %v702 = vsel %vm699, 0, %v589
      %v703 = vsel %vm699, 0, %v596
      %v704 = vsel %vm699, 0, %v603
      %v705 = vsel %vm699, 0, %v610
      %v706 = vsel %vm699, 0, %v617
      %v707 = vsel %vm699, 0, %v624
      %v708 = vsel %vm699, 0, %v631
      %v709 = vsel %vm699, 0, %v638
      %v710 = vsel %vm699, 0, %v645
      %v711 = vsel %vm699, 0, %v652
      %v712 = vsel %vm699, 0, %v659
      %v713 = vsel %vm699, 0, %v666
      %v714 = vsel %vm699, 0, %v673
      %v715 = vsel %vm699, 0, %v680
      %v716 = vrot.slane %v573, 1
      %v717 = vor.u32 %v570, %v716
      %v718 = vrot.slane %v580, 1
      %v719 = vor.u32 %v577, %v718
      %v720 = vrot.slane %v587, 1
      %v721 = vor.u32 %v584, %v720
      %v722 = vrot.slane %v594, 1
      %v723 = vor.u32 %v591, %v722
      %v724 = vrot.slane %v601, 1
      %v725 = vor.u32 %v598, %v724
      %v726 = vrot.slane %v608, 1
      %v727 = vor.u32 %v605, %v726
      %v728 = vrot.slane %v615, 1
      %v729 = vor.u32 %v612, %v728
      %v730 = vrot.slane %v622, 1
      %v731 = vor.u32 %v619, %v730
      %v732 = vrot.slane %v629, 1
      %v733 = vor.u32 %v626, %v732
      %v734 = vrot.slane %v636, 1
      %v735 = vor.u32 %v633, %v734
      %v736 = vrot.slane %v643, 1
      %v737 = vor.u32 %v640, %v736
      %v738 = vrot.slane %v650, 1
      %v739 = vor.u32 %v647, %v738
      %v740 = vrot.slane %v657, 1
      %v741 = vor.u32 %v654, %v740
      %v742 = vrot.slane %v664, 1
      %v743 = vor.u32 %v661, %v742
      %v744 = vrot.slane %v671, 1
      %v745 = vor.u32 %v668, %v744
      %v746 = vrot.slane %v678, 1
      %v747 = vor.u32 %v675, %v746
      %vm764 = vcmask 1047552
      %vm765 = vsmask.f32 7424
      %vm766 = vmand %vm764, %vm765
      %v767 = vsel %vm766, %v717, 0
      %v768 = vsel %vm766, %v719, 0
      %v769 = vsel %vm766, %v721, 0
      %v770 = vsel %vm766, %v723, 0
      %v771 = vsel %vm766, %v725, 0
      %v772 = vsel %vm766, %v727, 0
      %v773 = vsel %vm766, %v729, 0
      %v774 = vsel %vm766, %v731, 0
      %v775 = vsel %vm766, %v733, 0
      %v776 = vsel %vm766, %v735, 0
      %v777 = vsel %vm766, %v737, 0
      %v778 = vsel %vm766, %v739, 0
      %v779 = vsel %vm766, %v741, 0
      %v780 = vsel %vm766, %v743, 0
      %v781 = vsel %vm766, %v745, 0
      %v782 = vsel %vm766, %v747, 0
      %v799 = vld [vmem:[%s1] sm:$0xf]
      %v800 = vld [vmem:[%s1 + $0x4] sm:$0xf]
      %v801 = vld [vmem:[%s1 + $0x8] sm:$0xf]
      %v802 = vld [vmem:[%s1 + $0xc] sm:$0xf]
      %v803 = vld [vmem:[%s1 + $0x10] sm:$0xf]
      %v804 = vld [vmem:[%s1 + $0x14] sm:$0xf]
      %v805 = vld [vmem:[%s1 + $0x18] sm:$0xf]
      %v806 = vld [vmem:[%s1 + $0x1c] sm:$0xf]
      %v807 = vld [vmem:[%s1 + $0x20] sm:$0xf]
      %v808 = vld [vmem:[%s1 + $0x24] sm:$0xf]
      %v809 = vld [vmem:[%s1 + $0x28] sm:$0xf]
      %v810 = vld [vmem:[%s1 + $0x2c] sm:$0xf]
      %v811 = vld [vmem:[%s1 + $0x30] sm:$0xf]
      %v812 = vld [vmem:[%s1 + $0x34] sm:$0xf]
      %v813 = vld [vmem:[%s1 + $0x38] sm:$0xf]
      %v814 = vld [vmem:[%s1 + $0x3c] sm:$0xf]
      %v815 = vld [vmem:[%s1 + $0x40] sm:$0xf]
      %v816 = vld [vmem:[%s1 + $0x44] sm:$0xf]
      %v817 = vld [vmem:[%s1 + $0x48] sm:$0xf]
      %v818 = vld [vmem:[%s1 + $0x4c] sm:$0xf]
      %v819 = vld [vmem:[%s1 + $0x50] sm:$0xf]
      %v820 = vld [vmem:[%s1 + $0x54] sm:$0xf]
      %v821 = vld [vmem:[%s1 + $0x58] sm:$0xf]
      %v822 = vld [vmem:[%s1 + $0x5c] sm:$0xf]
      %v823 = vld [vmem:[%s1 + $0x60] sm:$0xf]
      %v824 = vld [vmem:[%s1 + $0x64] sm:$0xf]
      %v825 = vld [vmem:[%s1 + $0x68] sm:$0xf]
      %v826 = vld [vmem:[%s1 + $0x6c] sm:$0xf]
      %v827 = vld [vmem:[%s1 + $0x70] sm:$0xf]
      %v828 = vld [vmem:[%s1 + $0x74] sm:$0xf]
      %v829 = vld [vmem:[%s1 + $0x78] sm:$0xf]
      %v830 = vld [vmem:[%s1 + $0x7c] sm:$0xf]
      %v831 = vld [vmem:[%s1 + $0x80] sm:$0xf]
      %v832 = vld [vmem:[%s1 + $0x84] sm:$0xf]
      %v833 = vld [vmem:[%s1 + $0x88] sm:$0xf]
      %v834 = vld [vmem:[%s1 + $0x8c] sm:$0xf]
      %v835 = vld [vmem:[%s1 + $0x90] sm:$0xf]
      %v836 = vld [vmem:[%s1 + $0x94] sm:$0xf]
      %v837 = vld [vmem:[%s1 + $0x98] sm:$0xf]
      %v838 = vld [vmem:[%s1 + $0x9c] sm:$0xf]
      %v839 = vld [vmem:[%s1 + $0xa0] sm:$0xf]
      %v840 = vld [vmem:[%s1 + $0xa4] sm:$0xf]
      %v841 = vld [vmem:[%s1 + $0xa8] sm:$0xf]
      %v842 = vld [vmem:[%s1 + $0xac] sm:$0xf]
      %v843 = vld [vmem:[%s1 + $0xb0] sm:$0xf]
      %v844 = vld [vmem:[%s1 + $0xb4] sm:$0xf]
      %v845 = vld [vmem:[%s1 + $0xb8] sm:$0xf]
      %v846 = vld [vmem:[%s1 + $0xbc] sm:$0xf]
      %s847 = scalar_lea.vmem %s1, 192
      %v848 = vld [vmem:[%s847] sm:$0xf]
      %v849 = vld [vmem:[%s847 + $0x4] sm:$0xf]
      %v850 = vld [vmem:[%s847 + $0x8] sm:$0xf]
      %v851 = vld [vmem:[%s847 + $0xc] sm:$0xf]
      %v852 = vld [vmem:[%s847 + $0x10] sm:$0xf]
      %v853 = vld [vmem:[%s847 + $0x14] sm:$0xf]
      %v854 = vld [vmem:[%s847 + $0x18] sm:$0xf]
      %v855 = vld [vmem:[%s847 + $0x1c] sm:$0xf]
      %v856 = vld [vmem:[%s847 + $0x20] sm:$0xf]
      %v857 = vld [vmem:[%s847 + $0x24] sm:$0xf]
      %v858 = vld [vmem:[%s847 + $0x28] sm:$0xf]
      %v859 = vld [vmem:[%s847 + $0x2c] sm:$0xf]
      %v860 = vld [vmem:[%s847 + $0x30] sm:$0xf]
      %v861 = vld [vmem:[%s847 + $0x34] sm:$0xf]
      %v862 = vld [vmem:[%s847 + $0x38] sm:$0xf]
      %v863 = vld [vmem:[%s847 + $0x3c] sm:$0xf]
      %v864 = vld [vmem:[%s847 + $0x40] sm:$0xf]
      %v865 = vld [vmem:[%s847 + $0x44] sm:$0xf]
      %v866 = vld [vmem:[%s847 + $0x48] sm:$0xf]
      %v867 = vld [vmem:[%s847 + $0x4c] sm:$0xf]
      %v868 = vld [vmem:[%s847 + $0x50] sm:$0xf]
      %v869 = vld [vmem:[%s847 + $0x54] sm:$0xf]
      %v870 = vld [vmem:[%s847 + $0x58] sm:$0xf]
      %v871 = vld [vmem:[%s847 + $0x5c] sm:$0xf]
      %v872 = vld [vmem:[%s847 + $0x60] sm:$0xf]
      %v873 = vld [vmem:[%s847 + $0x64] sm:$0xf]
      %v874 = vld [vmem:[%s847 + $0x68] sm:$0xf]
      %v875 = vld [vmem:[%s847 + $0x6c] sm:$0xf]
      %v876 = vld [vmem:[%s847 + $0x70] sm:$0xf]
      %v877 = vld [vmem:[%s847 + $0x74] sm:$0xf]
      %v878 = vld [vmem:[%s847 + $0x78] sm:$0xf]
      %v879 = vld [vmem:[%s847 + $0x7c] sm:$0xf]
      %v880 = vld [vmem:[%s847 + $0x80] sm:$0xf]
      %v881 = vld [vmem:[%s847 + $0x84] sm:$0xf]
      %v882 = vld [vmem:[%s847 + $0x88] sm:$0xf]
      %v883 = vld [vmem:[%s847 + $0x8c] sm:$0xf]
      %v884 = vld [vmem:[%s847 + $0x90] sm:$0xf]
      %v885 = vld [vmem:[%s847 + $0x94] sm:$0xf]
      %v886 = vld [vmem:[%s847 + $0x98] sm:$0xf]
      %v887 = vld [vmem:[%s847 + $0x9c] sm:$0xf]
      %v888 = vld [vmem:[%s847 + $0xa0] sm:$0xf]
      %v889 = vld [vmem:[%s847 + $0xa4] sm:$0xf]
      %v890 = vld [vmem:[%s847 + $0xa8] sm:$0xf]
      %v891 = vld [vmem:[%s847 + $0xac] sm:$0xf]
      %v892 = vld [vmem:[%s847 + $0xb0] sm:$0xf]
      %v893 = vld [vmem:[%s847 + $0xb4] sm:$0xf]
      %v894 = vld [vmem:[%s847 + $0xb8] sm:$0xf]
      %v895 = vld [vmem:[%s847 + $0xbc] sm:$0xf]
      %v944 = vunpack.c.l.b16 %v848
      %v945 = vunpack.c.l.b16 %v849
      %v946 = vunpack.c.l.b16 %v850
      %v947 = vunpack.c.l.b16 %v851
      %v948 = vunpack.c.l.b16 %v852
      %v949 = vunpack.c.l.b16 %v853
      %v950 = vunpack.c.l.b16 %v854
      %v951 = vunpack.c.l.b16 %v855
      %v952 = vunpack.c.l.b16 %v856
      %v953 = vunpack.c.l.b16 %v857
      %v954 = vunpack.c.l.b16 %v858
      %v955 = vunpack.c.l.b16 %v859
      %v956 = vunpack.c.l.b16 %v860
      %v957 = vunpack.c.l.b16 %v861
      %v958 = vunpack.c.l.b16 %v862
      %v959 = vunpack.c.l.b16 %v863
      %v960 = vunpack.c.l.b16 %v864
      %v961 = vunpack.c.l.b16 %v865
      %v962 = vunpack.c.l.b16 %v866
      %v963 = vunpack.c.l.b16 %v867
      %v964 = vunpack.c.l.b16 %v868
      %v965 = vunpack.c.l.b16 %v869
      %v966 = vunpack.c.l.b16 %v870
      %v967 = vunpack.c.l.b16 %v871
      %v968 = vunpack.c.l.b16 %v872
      %v969 = vunpack.c.l.b16 %v873
      %v970 = vunpack.c.l.b16 %v874
      %v971 = vunpack.c.l.b16 %v875
      %v972 = vunpack.c.l.b16 %v876
      %v973 = vunpack.c.l.b16 %v877
      %v974 = vunpack.c.l.b16 %v878
      %v975 = vunpack.c.l.b16 %v879
      %v976 = vunpack.c.l.b16 %v880
      %v977 = vunpack.c.l.b16 %v881
      %v978 = vunpack.c.l.b16 %v882
      %v979 = vunpack.c.l.b16 %v883
      %v980 = vunpack.c.l.b16 %v884
      %v981 = vunpack.c.l.b16 %v885
      %v982 = vunpack.c.l.b16 %v886
      %v983 = vunpack.c.l.b16 %v887
      %v984 = vunpack.c.l.b16 %v888
      %v985 = vunpack.c.l.b16 %v889
      %v986 = vunpack.c.l.b16 %v890
      %v987 = vunpack.c.l.b16 %v891
      %v988 = vunpack.c.l.b16 %v892
      %v989 = vunpack.c.l.b16 %v893
      %v990 = vunpack.c.l.b16 %v894
      %v991 = vunpack.c.l.b16 %v895
      %v992 = vpack.c.b16 %v945, %v944
      %v993 = vpack.c.b16 %v947, %v946
      %v994 = vpack.c.b16 %v949, %v948
      %v995 = vpack.c.b16 %v951, %v950
      %v996 = vpack.c.b16 %v953, %v952
      %v997 = vpack.c.b16 %v955, %v954
      %v998 = vpack.c.b16 %v957, %v956
      %v999 = vpack.c.b16 %v959, %v958
      %v1000 = vpack.c.b16 %v961, %v960
      %v1001 = vpack.c.b16 %v963, %v962
      %v1002 = vpack.c.b16 %v965, %v964
      %v1003 = vpack.c.b16 %v967, %v966
      %v1004 = vpack.c.b16 %v969, %v968
      %v1005 = vpack.c.b16 %v971, %v970
      %v1006 = vpack.c.b16 %v973, %v972
      %v1007 = vpack.c.b16 %v975, %v974
      %v1008 = vpack.c.b16 %v977, %v976
      %v1009 = vpack.c.b16 %v979, %v978
      %v1010 = vpack.c.b16 %v981, %v980
      %v1011 = vpack.c.b16 %v983, %v982
      %v1012 = vpack.c.b16 %v985, %v984
      %v1013 = vpack.c.b16 %v987, %v986
      %v1014 = vpack.c.b16 %v989, %v988
      %v1015 = vpack.c.b16 %v991, %v990
      %1040 = vmatprep.subr.bf16.mxu0 0
      %1041 = vmatpush1.bf16.msra.mxu0 %v992
      %1042 = vmatprep.subr.bf16.mxu0 0
      %1043 = vmatpush1.bf16.msra.mxu0 %v993
      %1044 = vmatprep.subr.bf16.mxu0 0
      %1045 = vmatpush1.bf16.msra.mxu0 %v994
      %1046 = vmatprep.subr.bf16.mxu0 0
      %1047 = vmatpush1.bf16.msra.mxu0 %v995
      %1048 = vmatprep.subr.bf16.mxu0 0
      %1049 = vmatpush1.bf16.msra.mxu0 %v996
      %1050 = vmatprep.subr.bf16.mxu0 0
      %1051 = vmatpush1.bf16.msra.mxu0 %v997
      %1052 = vmatprep.subr.bf16.mxu0 0
      %1053 = vmatpush1.bf16.msra.mxu0 %v998
      %1054 = vmatprep.subr.bf16.mxu0 0
      %1055 = vmatpush1.bf16.msra.mxu0 %v999
      %1056 = vmatprep.subr.bf16.mxu0 0
      %1057 = vmatpush1.bf16.msra.mxu0 %v1000
      %1058 = vmatprep.subr.bf16.mxu0 0
      %1059 = vmatpush1.bf16.msra.mxu0 %v1001
      %1060 = vmatprep.subr.bf16.mxu0 0
      %1061 = vmatpush1.bf16.msra.mxu0 %v1002
      %1062 = vmatprep.subr.bf16.mxu0 0
      %1063 = vmatpush1.bf16.msra.mxu0 %v1003
      %1064 = vmatprep.subr.bf16.mxu0 0
      %1065 = vmatpush1.bf16.msra.mxu0 %v1004
      %1066 = vmatprep.subr.bf16.mxu0 0
      %1067 = vmatpush1.bf16.msra.mxu0 %v1005
      %1068 = vmatprep.subr.bf16.mxu0 0
      %1069 = vmatpush1.bf16.msra.mxu0 %v1006
      %1070 = vmatprep.subr.bf16.mxu0 0
      %1071 = vmatpush1.bf16.msra.mxu0 %v1007
      %1072 = vmatprep.mubr.bf16.mxu0 %v553
      %1073 = vmatmul.mubr.bf16.gmra.mrb[0].mxu0 %v700
      %v1074 = vpop.f32.mrb[0].mxu0
      %v1075 = vadd.f32 0.0, %v1074
      %v1076 = vpop.f32.mrb[0].mxu0
      %v1077 = vpop.f32.mrb[0].mxu0
      %v1078 = vadd.f32 0.0, %v1077
      %v1079 = vpop.f32.mrb[0].mxu0
      %1080 = vmatprep.mubr.bf16.mxu0 %v554
      %1081 = vmatmul.mubr.bf16.gmra.mrb[0].mxu0 %v701
      %v1082 = vpop.f32.mrb[0].mxu0
      %v1083 = vadd.f32 0.0, %v1082
      %v1084 = vpop.f32.mrb[0].mxu0
      %v1085 = vpop.f32.mrb[0].mxu0
      %v1086 = vadd.f32 0.0, %v1085
      %v1087 = vpop.f32.mrb[0].mxu0
      %1088 = vmatprep.mubr.bf16.mxu0 %v555
      %1089 = vmatmul.mubr.bf16.gmra.mrb[0].mxu0 %v702
      %v1090 = vpop.f32.mrb[0].mxu0
      %v1091 = vadd.f32 0.0, %v1090
      %v1092 = vpop.f32.mrb[0].mxu0
      %v1093 = vpop.f32.mrb[0].mxu0
      %v1094 = vadd.f32 0.0, %v1093
      %v1095 = vpop.f32.mrb[0].mxu0
      %1096 = vmatprep.mubr.bf16.mxu0 %v556
      %1097 = vmatmul.mubr.bf16.gmra.mrb[0].mxu0 %v703
      %v1098 = vpop.f32.mrb[0].mxu0
      %v1099 = vadd.f32 0.0, %v1098
      %v1100 = vpop.f32.mrb[0].mxu0
      %v1101 = vpop.f32.mrb[0].mxu0
      %v1102 = vadd.f32 0.0, %v1101
      %v1103 = vpop.f32.mrb[0].mxu0
      %1104 = vmatprep.mubr.bf16.mxu0 %v557
      %1105 = vmatmul.mubr.bf16.gmra.mrb[0].mxu0 %v704
      %v1106 = vpop.f32.mrb[0].mxu0
      %v1107 = vadd.f32 0.0, %v1106
      %v1108 = vpop.f32.mrb[0].mxu0
      %v1109 = vpop.f32.mrb[0].mxu0
      %v1110 = vadd.f32 0.0, %v1109
      %v1111 = vpop.f32.mrb[0].mxu0
      %1112 = vmatprep.mubr.bf16.mxu0 %v558
      %1113 = vmatmul.mubr.bf16.gmra.mrb[0].mxu0 %v705
      %v1114 = vpop.f32.mrb[0].mxu0
      %v1115 = vadd.f32 0.0, %v1114
      %v1116 = vpop.f32.mrb[0].mxu0
      %v1117 = vpop.f32.mrb[0].mxu0
      %v1118 = vadd.f32 0.0, %v1117
      %v1119 = vpop.f32.mrb[0].mxu0
      %1120 = vmatprep.mubr.bf16.mxu0 %v559
      %1121 = vmatmul.mubr.bf16.gmra.mrb[0].mxu0 %v706
      %v1122 = vpop.f32.mrb[0].mxu0
      %v1123 = vadd.f32 0.0, %v1122
      %v1124 = vpop.f32.mrb[0].mxu0
      %v1125 = vpop.f32.mrb[0].mxu0
      %v1126 = vadd.f32 0.0, %v1125
      %v1127 = vpop.f32.mrb[0].mxu0
      %1128 = vmatprep.mubr.bf16.mxu0 %v560
      %1129 = vmatmul.mubr.bf16.gmra.mrb[0].mxu0 %v707
      %v1130 = vpop.f32.mrb[0].mxu0
      %v1131 = vadd.f32 0.0, %v1130
      %v1132 = vpop.f32.mrb[0].mxu0
      %v1133 = vpop.f32.mrb[0].mxu0
      %v1134 = vadd.f32 0.0, %v1133
      %v1135 = vpop.f32.mrb[0].mxu0
      %1136 = vmatprep.mubr.bf16.mxu0 %v561
      %1137 = vmatmul.mubr.bf16.gmra.mrb[0].mxu0 %v708
      %v1138 = vpop.f32.mrb[0].mxu0
      %v1139 = vadd.f32 0.0, %v1138
      %v1140 = vpop.f32.mrb[0].mxu0
      %v1141 = vpop.f32.mrb[0].mxu0
      %v1142 = vadd.f32 0.0, %v1141
      %v1143 = vpop.f32.mrb[0].mxu0
      %1144 = vmatprep.mubr.bf16.mxu0 %v562
      %1145 = vmatmul.mubr.bf16.gmra.mrb[0].mxu0 %v709
      %v1146 = vpop.f32.mrb[0].mxu0
      %v1147 = vadd.f32 0.0, %v1146
      %v1148 = vpop.f32.mrb[0].mxu0
      %v1149 = vpop.f32.mrb[0].mxu0
      %v1150 = vadd.f32 0.0, %v1149
      %v1151 = vpop.f32.mrb[0].mxu0
      %1152 = vmatprep.mubr.bf16.mxu0 %v563
      %1153 = vmatmul.mubr.bf16.gmra.mrb[0].mxu0 %v710
      %v1154 = vpop.f32.mrb[0].mxu0
      %v1155 = vadd.f32 0.0, %v1154
      %v1156 = vpop.f32.mrb[0].mxu0
      %v1157 = vpop.f32.mrb[0].mxu0
      %v1158 = vadd.f32 0.0, %v1157
      %v1159 = vpop.f32.mrb[0].mxu0
      %1160 = vmatprep.mubr.bf16.mxu0 %v564
      %1161 = vmatmul.mubr.bf16.gmra.mrb[0].mxu0 %v711
      %v1162 = vpop.f32.mrb[0].mxu0
      %v1163 = vadd.f32 0.0, %v1162
      %v1164 = vpop.f32.mrb[0].mxu0
      %v1165 = vpop.f32.mrb[0].mxu0
      %v1166 = vadd.f32 0.0, %v1165
      %v1167 = vpop.f32.mrb[0].mxu0
      %1168 = vmatprep.mubr.bf16.mxu0 %v565
      %1169 = vmatmul.mubr.bf16.gmra.mrb[0].mxu0 %v712
      %v1170 = vpop.f32.mrb[0].mxu0
      %v1171 = vadd.f32 0.0, %v1170
      %v1172 = vpop.f32.mrb[0].mxu0
      %v1173 = vpop.f32.mrb[0].mxu0
      %v1174 = vadd.f32 0.0, %v1173
      %v1175 = vpop.f32.mrb[0].mxu0
      %1176 = vmatprep.mubr.bf16.mxu0 %v566
      %1177 = vmatmul.mubr.bf16.gmra.mrb[0].mxu0 %v713
      %v1178 = vpop.f32.mrb[0].mxu0
      %v1179 = vadd.f32 0.0, %v1178
      %v1180 = vpop.f32.mrb[0].mxu0
      %v1181 = vpop.f32.mrb[0].mxu0
      %v1182 = vadd.f32 0.0, %v1181
      %v1183 = vpop.f32.mrb[0].mxu0
      %1184 = vmatprep.mubr.bf16.mxu0 %v567
      %1185 = vmatmul.mubr.bf16.gmra.mrb[0].mxu0 %v714
      %v1186 = vpop.f32.mrb[0].mxu0
      %v1187 = vadd.f32 0.0, %v1186
      %v1188 = vpop.f32.mrb[0].mxu0
      %v1189 = vpop.f32.mrb[0].mxu0
      %v1190 = vadd.f32 0.0, %v1189
      %v1191 = vpop.f32.mrb[0].mxu0
      %1192 = vmatprep.mubr.bf16.mxu0 %v568
      %1193 = vmatmul.mubr.bf16.gmra.mrb[0].mxu0 %v715
      %v1194 = vpop.f32.mrb[0].mxu0
      %v1195 = vadd.f32 0.0, %v1194
      %v1196 = vpop.f32.mrb[0].mxu0
      %v1197 = vpop.f32.mrb[0].mxu0
      %v1198 = vadd.f32 0.0, %v1197
      %v1199 = vpop.f32.mrb[0].mxu0
      %1200 = vdwg.mxu0
      %1201 = vmatprep.subr.bf16.mxu0 0
      %1202 = vmatpush1.bf16.msra.mxu0 %v1008
      %1203 = vmatprep.subr.bf16.mxu0 0
      %1204 = vmatpush1.bf16.msra.mxu0 %v1009
      %1205 = vmatprep.subr.bf16.mxu0 0
      %1206 = vmatpush1.bf16.msra.mxu0 %v1010
      %1207 = vmatprep.subr.bf16.mxu0 0
      %1208 = vmatpush1.bf16.msra.mxu0 %v1011
      %1209 = vmatprep.subr.bf16.mxu0 0
      %1210 = vmatpush1.bf16.msra.mxu0 %v1012
      %1211 = vmatprep.subr.bf16.mxu0 0
      %1212 = vmatpush1.bf16.msra.mxu0 %v1013
      %1213 = vmatprep.subr.bf16.mxu0 0
      %1214 = vmatpush1.bf16.msra.mxu0 %v1014
      %1215 = vmatprep.subr.bf16.mxu0 0
      %1216 = vmatpush1.bf16.msra.mxu0 %v1015
      %1217 = vmatprep.subr.bf16.mxu0 0
      %1218 = vmatpush1.bf16.msra.mxu0 0
      %1219 = vmatprep.subr.bf16.mxu0 0
      %1220 = vmatpush1.bf16.msra.mxu0 0
      %1221 = vmatprep.subr.bf16.mxu0 0
      %1222 = vmatpush1.bf16.msra.mxu0 0
      %1223 = vmatprep.subr.bf16.mxu0 0
      %1224 = vmatpush1.bf16.msra.mxu0 0
      %1225 = vmatprep.subr.bf16.mxu0 0
      %1226 = vmatpush1.bf16.msra.mxu0 0
      %1227 = vmatprep.subr.bf16.mxu0 0
      %1228 = vmatpush1.bf16.msra.mxu0 0
      %1229 = vmatprep.subr.bf16.mxu0 0
      %1230 = vmatpush1.bf16.msra.mxu0 0
      %1231 = vmatprep.subr.bf16.mxu0 0
      %1232 = vmatpush1.bf16.msra.mxu0 0
      %1233 = vmatprep.mubr.bf16.mxu0 0
      %1234 = vmatmul.mubr.bf16.gmra.mrb[0].mxu0 %v767
      %v1235 = vpop.f32.mrb[0].mxu0
      %v1236 = vadd.f32 %v1075, %v1235
      %v1237 = vpop.f32.mrb[0].mxu0
      %v1238 = vpop.f32.mrb[0].mxu0
      %v1239 = vadd.f32 %v1078, %v1238
      %v1240 = vpop.f32.mrb[0].mxu0
      %1241 = vmatprep.mubr.bf16.mxu0 0
      %1242 = vmatmul.mubr.bf16.gmra.mrb[0].mxu0 %v768
      %v1243 = vpop.f32.mrb[0].mxu0
      %v1244 = vadd.f32 %v1083, %v1243
      %v1245 = vpop.f32.mrb[0].mxu0
      %v1246 = vpop.f32.mrb[0].mxu0
      %v1247 = vadd.f32 %v1086, %v1246
      %v1248 = vpop.f32.mrb[0].mxu0
      %1249 = vmatprep.mubr.bf16.mxu0 0
      %1250 = vmatmul.mubr.bf16.gmra.mrb[0].mxu0 %v769
      %v1251 = vpop.f32.mrb[0].mxu0
      %v1252 = vadd.f32 %v1091, %v1251
      %v1253 = vpop.f32.mrb[0].mxu0
      %v1254 = vpop.f32.mrb[0].mxu0
      %v1255 = vadd.f32 %v1094, %v1254
      %v1256 = vpop.f32.mrb[0].mxu0
      %1257 = vmatprep.mubr.bf16.mxu0 0
      %1258 = vmatmul.mubr.bf16.gmra.mrb[0].mxu0 %v770
      %v1259 = vpop.f32.mrb[0].mxu0
      %v1260 = vadd.f32 %v1099, %v1259
      %v1261 = vpop.f32.mrb[0].mxu0
      %v1262 = vpop.f32.mrb[0].mxu0
      %v1263 = vadd.f32 %v1102, %v1262
      %v1264 = vpop.f32.mrb[0].mxu0
      %1265 = vmatprep.mubr.bf16.mxu0 0
      %1266 = vmatmul.mubr.bf16.gmra.mrb[0].mxu0 %v771
      %v1267 = vpop.f32.mrb[0].mxu0
      %v1268 = vadd.f32 %v1107, %v1267
      %v1269 = vpop.f32.mrb[0].mxu0
      %v1270 = vpop.f32.mrb[0].mxu0
      %v1271 = vadd.f32 %v1110, %v1270
      %v1272 = vpop.f32.mrb[0].mxu0
      %1273 = vmatprep.mubr.bf16.mxu0 0
      %1274 = vmatmul.mubr.bf16.gmra.mrb[0].mxu0 %v772
      %v1275 = vpop.f32.mrb[0].mxu0
      %v1276 = vadd.f32 %v1115, %v1275
      %v1277 = vpop.f32.mrb[0].mxu0
      %v1278 = vpop.f32.mrb[0].mxu0
      %v1279 = vadd.f32 %v1118, %v1278
      %v1280 = vpop.f32.mrb[0].mxu0
      %1281 = vmatprep.mubr.bf16.mxu0 0
      %1282 = vmatmul.mubr.bf16.gmra.mrb[0].mxu0 %v773
      %v1283 = vpop.f32.mrb[0].mxu0
      %v1284 = vadd.f32 %v1123, %v1283
      %v1285 = vpop.f32.mrb[0].mxu0
      %v1286 = vpop.f32.mrb[0].mxu0
      %v1287 = vadd.f32 %v1126, %v1286
      %v1288 = vpop.f32.mrb[0].mxu0
      %1289 = vmatprep.mubr.bf16.mxu0 0
      %1290 = vmatmul.mubr.bf16.gmra.mrb[0].mxu0 %v774
      %v1291 = vpop.f32.mrb[0].mxu0
      %v1292 = vadd.f32 %v1131, %v1291
      %v1293 = vpop.f32.mrb[0].mxu0
      %v1294 = vpop.f32.mrb[0].mxu0
      %v1295 = vadd.f32 %v1134, %v1294
      %v1296 = vpop.f32.mrb[0].mxu0
      %1297 = vmatprep.mubr.bf16.mxu0 0
      %1298 = vmatmul.mubr.bf16.gmra.mrb[0].mxu0 %v775
      %v1299 = vpop.f32.mrb[0].mxu0
      %v1300 = vadd.f32 %v1139, %v1299
      %v1301 = vpop.f32.mrb[0].mxu0
      %v1302 = vpop.f32.mrb[0].mxu0
      %v1303 = vadd.f32 %v1142, %v1302
      %v1304 = vpop.f32.mrb[0].mxu0
      %1305 = vmatprep.mubr.bf16.mxu0 0
      %1306 = vmatmul.mubr.bf16.gmra.mrb[0].mxu0 %v776
      %v1307 = vpop.f32.mrb[0].mxu0
      %v1308 = vadd.f32 %v1147, %v1307
      %v1309 = vpop.f32.mrb[0].mxu0
      %v1310 = vpop.f32.mrb[0].mxu0
      %v1311 = vadd.f32 %v1150, %v1310
      %v1312 = vpop.f32.mrb[0].mxu0
      %1313 = vmatprep.mubr.bf16.mxu0 0
      %1314 = vmatmul.mubr.bf16.gmra.mrb[0].mxu0 %v777
      %v1315 = vpop.f32.mrb[0].mxu0
      %v1316 = vadd.f32 %v1155, %v1315
      %v1317 = vpop.f32.mrb[0].mxu0
      %v1318 = vpop.f32.mrb[0].mxu0
      %v1319 = vadd.f32 %v1158, %v1318
      %v1320 = vpop.f32.mrb[0].mxu0
      %1321 = vmatprep.mubr.bf16.mxu0 0
      %1322 = vmatmul.mubr.bf16.gmra.mrb[0].mxu0 %v778
      %v1323 = vpop.f32.mrb[0].mxu0
      %v1324 = vadd.f32 %v1163, %v1323
      %v1325 = vpop.f32.mrb[0].mxu0
      %v1326 = vpop.f32.mrb[0].mxu0
      %v1327 = vadd.f32 %v1166, %v1326
      %v1328 = vpop.f32.mrb[0].mxu0
      %1329 = vmatprep.mubr.bf16.mxu0 0
      %1330 = vmatmul.mubr.bf16.gmra.mrb[0].mxu0 %v779
      %v1331 = vpop.f32.mrb[0].mxu0
      %v1332 = vadd.f32 %v1171, %v1331
      %v1333 = vpop.f32.mrb[0].mxu0
      %v1334 = vpop.f32.mrb[0].mxu0
      %v1335 = vadd.f32 %v1174, %v1334
      %v1336 = vpop.f32.mrb[0].mxu0
      %1337 = vmatprep.mubr.bf16.mxu0 0
      %1338 = vmatmul.mubr.bf16.gmra.mrb[0].mxu0 %v780
      %v1339 = vpop.f32.mrb[0].mxu0
      %v1340 = vadd.f32 %v1179, %v1339
      %v1341 = vpop.f32.mrb[0].mxu0
      %v1342 = vpop.f32.mrb[0].mxu0
      %v1343 = vadd.f32 %v1182, %v1342
      %v1344 = vpop.f32.mrb[0].mxu0
      %1345 = vmatprep.mubr.bf16.mxu0 0
      %1346 = vmatmul.mubr.bf16.gmra.mrb[0].mxu0 %v781
      %v1347 = vpop.f32.mrb[0].mxu0
      %v1348 = vadd.f32 %v1187, %v1347
      %v1349 = vpop.f32.mrb[0].mxu0
      %v1350 = vpop.f32.mrb[0].mxu0
      %v1351 = vadd.f32 %v1190, %v1350
      %v1352 = vpop.f32.mrb[0].mxu0
      %1353 = vmatprep.mubr.bf16.mxu0 0
      %1354 = vmatmul.mubr.bf16.gmra.mrb[0].mxu0 %v782
      %v1355 = vpop.f32.mrb[0].mxu0
      %v1356 = vadd.f32 %v1195, %v1355
      %v1357 = vpop.f32.mrb[0].mxu0
      %v1358 = vpop.f32.mrb[0].mxu0
      %v1359 = vadd.f32 %v1198, %v1358
      %v1360 = vpop.f32.mrb[0].mxu0
      %1361 = vdwg.mxu0
      %v1410 = vunpack.c.l.b16 %v799
      %v1411 = vunpack.c.l.b16 %v800
      %v1412 = vunpack.c.l.b16 %v801
      %v1413 = vunpack.c.l.b16 %v802
      %v1414 = vunpack.c.l.b16 %v803
      %v1415 = vunpack.c.l.b16 %v804
      %v1416 = vunpack.c.l.b16 %v805
      %v1417 = vunpack.c.l.b16 %v806
      %v1418 = vunpack.c.l.b16 %v807
      %v1419 = vunpack.c.l.b16 %v808
      %v1420 = vunpack.c.l.b16 %v809
      %v1421 = vunpack.c.l.b16 %v810
      %v1422 = vunpack.c.l.b16 %v811
      %v1423 = vunpack.c.l.b16 %v812
      %v1424 = vunpack.c.l.b16 %v813
      %v1425 = vunpack.c.l.b16 %v814
      %v1426 = vunpack.c.l.b16 %v815
      %v1427 = vunpack.c.l.b16 %v816
      %v1428 = vunpack.c.l.b16 %v817
      %v1429 = vunpack.c.l.b16 %v818
      %v1430 = vunpack.c.l.b16 %v819
      %v1431 = vunpack.c.l.b16 %v820
      %v1432 = vunpack.c.l.b16 %v821
      %v1433 = vunpack.c.l.b16 %v822
      %v1434 = vunpack.c.l.b16 %v823
      %v1435 = vunpack.c.l.b16 %v824
      %v1436 = vunpack.c.l.b16 %v825
      %v1437 = vunpack.c.l.b16 %v826
      %v1438 = vunpack.c.l.b16 %v827
      %v1439 = vunpack.c.l.b16 %v828
      %v1440 = vunpack.c.l.b16 %v829
      %v1441 = vunpack.c.l.b16 %v830
      %v1442 = vunpack.c.l.b16 %v831
      %v1443 = vunpack.c.l.b16 %v832
      %v1444 = vunpack.c.l.b16 %v833
      %v1445 = vunpack.c.l.b16 %v834
      %v1446 = vunpack.c.l.b16 %v835
      %v1447 = vunpack.c.l.b16 %v836
      %v1448 = vunpack.c.l.b16 %v837
      %v1449 = vunpack.c.l.b16 %v838
      %v1450 = vunpack.c.l.b16 %v839
      %v1451 = vunpack.c.l.b16 %v840
      %v1452 = vunpack.c.l.b16 %v841
      %v1453 = vunpack.c.l.b16 %v842
      %v1454 = vunpack.c.l.b16 %v843
      %v1455 = vunpack.c.l.b16 %v844
      %v1456 = vunpack.c.l.b16 %v845
      %v1457 = vunpack.c.l.b16 %v846
      %v1458 = vpack.c.b16 %v1411, %v1410
      %v1459 = vpack.c.b16 %v1413, %v1412
      %v1460 = vpack.c.b16 %v1415, %v1414
      %v1461 = vpack.c.b16 %v1417, %v1416
      %v1462 = vpack.c.b16 %v1419, %v1418
      %v1463 = vpack.c.b16 %v1421, %v1420
      %v1464 = vpack.c.b16 %v1423, %v1422
      %v1465 = vpack.c.b16 %v1425, %v1424
      %v1466 = vpack.c.b16 %v1427, %v1426
      %v1467 = vpack.c.b16 %v1429, %v1428
      %v1468 = vpack.c.b16 %v1431, %v1430
      %v1469 = vpack.c.b16 %v1433, %v1432
      %v1470 = vpack.c.b16 %v1435, %v1434
      %v1471 = vpack.c.b16 %v1437, %v1436
      %v1472 = vpack.c.b16 %v1439, %v1438
      %v1473 = vpack.c.b16 %v1441, %v1440
      %v1474 = vpack.c.b16 %v1443, %v1442
      %v1475 = vpack.c.b16 %v1445, %v1444
      %v1476 = vpack.c.b16 %v1447, %v1446
      %v1477 = vpack.c.b16 %v1449, %v1448
      %v1478 = vpack.c.b16 %v1451, %v1450
      %v1479 = vpack.c.b16 %v1453, %v1452
      %v1480 = vpack.c.b16 %v1455, %v1454
      %v1481 = vpack.c.b16 %v1457, %v1456
      %1506 = vmatprep.subr.bf16.mxu0 0
      %1507 = vmatpush1.bf16.msra.mxu0 %v1458
      %1508 = vmatprep.subr.bf16.mxu0 0
      %1509 = vmatpush1.bf16.msra.mxu0 %v1459
      %1510 = vmatprep.subr.bf16.mxu0 0
      %1511 = vmatpush1.bf16.msra.mxu0 %v1460
      %1512 = vmatprep.subr.bf16.mxu0 0
      %1513 = vmatpush1.bf16.msra.mxu0 %v1461
      %1514 = vmatprep.subr.bf16.mxu0 0
      %1515 = vmatpush1.bf16.msra.mxu0 %v1462
      %1516 = vmatprep.subr.bf16.mxu0 0
      %1517 = vmatpush1.bf16.msra.mxu0 %v1463
      %1518 = vmatprep.subr.bf16.mxu0 0
      %1519 = vmatpush1.bf16.msra.mxu0 %v1464
      %1520 = vmatprep.subr.bf16.mxu0 0
      %1521 = vmatpush1.bf16.msra.mxu0 %v1465
      %1522 = vmatprep.subr.bf16.mxu0 0
      %1523 = vmatpush1.bf16.msra.mxu0 %v1466
      %1524 = vmatprep.subr.bf16.mxu0 0
      %1525 = vmatpush1.bf16.msra.mxu0 %v1467
      %1526 = vmatprep.subr.bf16.mxu0 0
      %1527 = vmatpush1.bf16.msra.mxu0 %v1468
      %1528 = vmatprep.subr.bf16.mxu0 0
      %1529 = vmatpush1.bf16.msra.mxu0 %v1469
      %1530 = vmatprep.subr.bf16.mxu0 0
      %1531 = vmatpush1.bf16.msra.mxu0 %v1470
      %1532 = vmatprep.subr.bf16.mxu0 0
      %1533 = vmatpush1.bf16.msra.mxu0 %v1471
      %1534 = vmatprep.subr.bf16.mxu0 0
      %1535 = vmatpush1.bf16.msra.mxu0 %v1472
      %1536 = vmatprep.subr.bf16.mxu0 0
      %1537 = vmatpush1.bf16.msra.mxu0 %v1473
      %1538 = vmatprep.mubr.bf16.mxu0 0
      %1539 = vmatmul.mubr.bf16.gmra.mrb[0].mxu0 0
      %v1540 = vpop.f32.mrb[0].mxu0
      %v1541 = vadd.f32 %v1236, %v1540
      %v1542 = vpop.f32.mrb[0].mxu0
      %v1543 = vpop.f32.mrb[0].mxu0
      %v1544 = vadd.f32 %v1239, %v1543
      %v1545 = vpop.f32.mrb[0].mxu0
      %1546 = vmatprep.mubr.bf16.mxu0 %v553
      %1547 = vmatmul.mubr.bf16.gmra.mrb[0].mxu0 %v700
      %v1548 = vpop.f32.mrb[0].mxu0
      %v1549 = vadd.f32 %v1244, %v1548
      %v1550 = vpop.f32.mrb[0].mxu0
      %v1551 = vpop.f32.mrb[0].mxu0
      %v1552 = vadd.f32 %v1247, %v1551
      %v1553 = vpop.f32.mrb[0].mxu0
      %1554 = vmatprep.mubr.bf16.mxu0 %v554
      %1555 = vmatmul.mubr.bf16.gmra.mrb[0].mxu0 %v701
      %v1556 = vpop.f32.mrb[0].mxu0
      %v1557 = vadd.f32 %v1252, %v1556
      %v1558 = vpop.f32.mrb[0].mxu0
      %v1559 = vpop.f32.mrb[0].mxu0
      %v1560 = vadd.f32 %v1255, %v1559
      %v1561 = vpop.f32.mrb[0].mxu0
      %1562 = vmatprep.mubr.bf16.mxu0 %v555
      %1563 = vmatmul.mubr.bf16.gmra.mrb[0].mxu0 %v702
      %v1564 = vpop.f32.mrb[0].mxu0
      %v1565 = vadd.f32 %v1260, %v1564
      %v1566 = vpop.f32.mrb[0].mxu0
      %v1567 = vpop.f32.mrb[0].mxu0
      %v1568 = vadd.f32 %v1263, %v1567
      %v1569 = vpop.f32.mrb[0].mxu0
      %1570 = vmatprep.mubr.bf16.mxu0 %v556
      %1571 = vmatmul.mubr.bf16.gmra.mrb[0].mxu0 %v703
      %v1572 = vpop.f32.mrb[0].mxu0
      %v1573 = vadd.f32 %v1268, %v1572
      %v1574 = vpop.f32.mrb[0].mxu0
      %v1575 = vpop.f32.mrb[0].mxu0
      %v1576 = vadd.f32 %v1271, %v1575
      %v1577 = vpop.f32.mrb[0].mxu0
      %1578 = vmatprep.mubr.bf16.mxu0 %v557
      %1579 = vmatmul.mubr.bf16.gmra.mrb[0].mxu0 %v704
      %v1580 = vpop.f32.mrb[0].mxu0
      %v1581 = vadd.f32 %v1276, %v1580
      %v1582 = vpop.f32.mrb[0].mxu0
      %v1583 = vpop.f32.mrb[0].mxu0
      %v1584 = vadd.f32 %v1279, %v1583
      %v1585 = vpop.f32.mrb[0].mxu0
      %1586 = vmatprep.mubr.bf16.mxu0 %v558
      %1587 = vmatmul.mubr.bf16.gmra.mrb[0].mxu0 %v705
      %v1588 = vpop.f32.mrb[0].mxu0
      %v1589 = vadd.f32 %v1284, %v1588
      %v1590 = vpop.f32.mrb[0].mxu0
      %v1591 = vpop.f32.mrb[0].mxu0
      %v1592 = vadd.f32 %v1287, %v1591
      %v1593 = vpop.f32.mrb[0].mxu0
      %1594 = vmatprep.mubr.bf16.mxu0 %v559
      %1595 = vmatmul.mubr.bf16.gmra.mrb[0].mxu0 %v706
      %v1596 = vpop.f32.mrb[0].mxu0
      %v1597 = vadd.f32 %v1292, %v1596
      %v1598 = vpop.f32.mrb[0].mxu0
      %v1599 = vpop.f32.mrb[0].mxu0
      %v1600 = vadd.f32 %v1295, %v1599
      %v1601 = vpop.f32.mrb[0].mxu0
      %1602 = vmatprep.mubr.bf16.mxu0 %v560
      %1603 = vmatmul.mubr.bf16.gmra.mrb[0].mxu0 %v707
      %v1604 = vpop.f32.mrb[0].mxu0
      %v1605 = vadd.f32 %v1300, %v1604
      %v1606 = vpop.f32.mrb[0].mxu0
      %v1607 = vpop.f32.mrb[0].mxu0
      %v1608 = vadd.f32 %v1303, %v1607
      %v1609 = vpop.f32.mrb[0].mxu0
      %1610 = vmatprep.mubr.bf16.mxu0 %v561
      %1611 = vmatmul.mubr.bf16.gmra.mrb[0].mxu0 %v708
      %v1612 = vpop.f32.mrb[0].mxu0
      %v1613 = vadd.f32 %v1308, %v1612
      %v1614 = vpop.f32.mrb[0].mxu0
      %v1615 = vpop.f32.mrb[0].mxu0
      %v1616 = vadd.f32 %v1311, %v1615
      %v1617 = vpop.f32.mrb[0].mxu0
      %1618 = vmatprep.mubr.bf16.mxu0 %v562
      %1619 = vmatmul.mubr.bf16.gmra.mrb[0].mxu0 %v709
      %v1620 = vpop.f32.mrb[0].mxu0
      %v1621 = vadd.f32 %v1316, %v1620
      %v1622 = vpop.f32.mrb[0].mxu0
      %v1623 = vpop.f32.mrb[0].mxu0
      %v1624 = vadd.f32 %v1319, %v1623
      %v1625 = vpop.f32.mrb[0].mxu0
      %1626 = vmatprep.mubr.bf16.mxu0 %v563
      %1627 = vmatmul.mubr.bf16.gmra.mrb[0].mxu0 %v710
      %v1628 = vpop.f32.mrb[0].mxu0
      %v1629 = vadd.f32 %v1324, %v1628
      %v1630 = vpop.f32.mrb[0].mxu0
      %v1631 = vpop.f32.mrb[0].mxu0
      %v1632 = vadd.f32 %v1327, %v1631
      %v1633 = vpop.f32.mrb[0].mxu0
      %1634 = vmatprep.mubr.bf16.mxu0 %v564
      %1635 = vmatmul.mubr.bf16.gmra.mrb[0].mxu0 %v711
      %v1636 = vpop.f32.mrb[0].mxu0
      %v1637 = vadd.f32 %v1332, %v1636
      %v1638 = vpop.f32.mrb[0].mxu0
      %v1639 = vpop.f32.mrb[0].mxu0
      %v1640 = vadd.f32 %v1335, %v1639
      %v1641 = vpop.f32.mrb[0].mxu0
      %1642 = vmatprep.mubr.bf16.mxu0 %v565
      %1643 = vmatmul.mubr.bf16.gmra.mrb[0].mxu0 %v712
      %v1644 = vpop.f32.mrb[0].mxu0
      %v1645 = vadd.f32 %v1340, %v1644
      %v1646 = vpop.f32.mrb[0].mxu0
      %v1647 = vpop.f32.mrb[0].mxu0
      %v1648 = vadd.f32 %v1343, %v1647
      %v1649 = vpop.f32.mrb[0].mxu0
      %1650 = vmatprep.mubr.bf16.mxu0 %v566
      %1651 = vmatmul.mubr.bf16.gmra.mrb[0].mxu0 %v713
      %v1652 = vpop.f32.mrb[0].mxu0
      %v1653 = vadd.f32 %v1348, %v1652
      %v1654 = vpop.f32.mrb[0].mxu0
      %v1655 = vpop.f32.mrb[0].mxu0
      %v1656 = vadd.f32 %v1351, %v1655
      %v1657 = vpop.f32.mrb[0].mxu0
      %1658 = vmatprep.mubr.bf16.mxu0 %v567
      %1659 = vmatmul.mubr.bf16.gmra.mrb[0].mxu0 %v714
      %v1660 = vpop.f32.mrb[0].mxu0
      %v1661 = vadd.f32 %v1356, %v1660
      %v1662 = vpop.f32.mrb[0].mxu0
      %v1663 = vpop.f32.mrb[0].mxu0
      %v1664 = vadd.f32 %v1359, %v1663
      %v1665 = vpop.f32.mrb[0].mxu0
      %1666 = vdwg.mxu0
      %1667 = vmatprep.subr.bf16.mxu0 0
      %1668 = vmatpush1.bf16.msra.mxu0 %v1474
      %1669 = vmatprep.subr.bf16.mxu0 0
      %1670 = vmatpush1.bf16.msra.mxu0 %v1475
      %1671 = vmatprep.subr.bf16.mxu0 0
      %1672 = vmatpush1.bf16.msra.mxu0 %v1476
      %1673 = vmatprep.subr.bf16.mxu0 0
      %1674 = vmatpush1.bf16.msra.mxu0 %v1477
      %1675 = vmatprep.subr.bf16.mxu0 0
      %1676 = vmatpush1.bf16.msra.mxu0 %v1478
      %1677 = vmatprep.subr.bf16.mxu0 0
      %1678 = vmatpush1.bf16.msra.mxu0 %v1479
      %1679 = vmatprep.subr.bf16.mxu0 0
      %1680 = vmatpush1.bf16.msra.mxu0 %v1480
      %1681 = vmatprep.subr.bf16.mxu0 0
      %1682 = vmatpush1.bf16.msra.mxu0 %v1481
      %1683 = vmatprep.subr.bf16.mxu0 0
      %1684 = vmatpush1.bf16.msra.mxu0 0
      %1685 = vmatprep.subr.bf16.mxu0 0
      %1686 = vmatpush1.bf16.msra.mxu0 0
      %1687 = vmatprep.subr.bf16.mxu0 0
      %1688 = vmatpush1.bf16.msra.mxu0 0
      %1689 = vmatprep.subr.bf16.mxu0 0
      %1690 = vmatpush1.bf16.msra.mxu0 0
      %1691 = vmatprep.subr.bf16.mxu0 0
      %1692 = vmatpush1.bf16.msra.mxu0 0
      %1693 = vmatprep.subr.bf16.mxu0 0
      %1694 = vmatpush1.bf16.msra.mxu0 0
      %1695 = vmatprep.subr.bf16.mxu0 0
      %1696 = vmatpush1.bf16.msra.mxu0 0
      %1697 = vmatprep.subr.bf16.mxu0 0
      %1698 = vmatpush1.bf16.msra.mxu0 0
      %1699 = vmatprep.mubr.bf16.mxu0 0
      %1700 = vmatmul.mubr.bf16.gmra.mrb[0].mxu0 0
      %v1701 = vpop.f32.mrb[0].mxu0
      %v1702 = vadd.f32 %v1541, %v1701
      %v1703 = vpop.f32.mrb[0].mxu0
      %v1704 = vpop.f32.mrb[0].mxu0
      %v1705 = vadd.f32 %v1544, %v1704
      %v1706 = vpop.f32.mrb[0].mxu0
      %1707 = vmatprep.mubr.bf16.mxu0 0
      %1708 = vmatmul.mubr.bf16.gmra.mrb[0].mxu0 %v767
      %v1709 = vpop.f32.mrb[0].mxu0
      %v1710 = vadd.f32 %v1549, %v1709
      %v1711 = vpop.f32.mrb[0].mxu0
      %v1712 = vpop.f32.mrb[0].mxu0
      %v1713 = vadd.f32 %v1552, %v1712
      %v1714 = vpop.f32.mrb[0].mxu0
      %1715 = vmatprep.mubr.bf16.mxu0 0
      %1716 = vmatmul.mubr.bf16.gmra.mrb[0].mxu0 %v768
      %v1717 = vpop.f32.mrb[0].mxu0
      %v1718 = vadd.f32 %v1557, %v1717
      %v1719 = vpop.f32.mrb[0].mxu0
      %v1720 = vpop.f32.mrb[0].mxu0
      %v1721 = vadd.f32 %v1560, %v1720
      %v1722 = vpop.f32.mrb[0].mxu0
      %1723 = vmatprep.mubr.bf16.mxu0 0
      %1724 = vmatmul.mubr.bf16.gmra.mrb[0].mxu0 %v769
      %v1725 = vpop.f32.mrb[0].mxu0
      %v1726 = vadd.f32 %v1565, %v1725
      %v1727 = vpop.f32.mrb[0].mxu0
      %v1728 = vpop.f32.mrb[0].mxu0
      %v1729 = vadd.f32 %v1568, %v1728
      %v1730 = vpop.f32.mrb[0].mxu0
      %1731 = vmatprep.mubr.bf16.mxu0 0
      %1732 = vmatmul.mubr.bf16.gmra.mrb[0].mxu0 %v770
      %v1733 = vpop.f32.mrb[0].mxu0
      %v1734 = vadd.f32 %v1573, %v1733
      %v1735 = vpop.f32.mrb[0].mxu0
      %v1736 = vpop.f32.mrb[0].mxu0
      %v1737 = vadd.f32 %v1576, %v1736
      %v1738 = vpop.f32.mrb[0].mxu0
      %1739 = vmatprep.mubr.bf16.mxu0 0
      %1740 = vmatmul.mubr.bf16.gmra.mrb[0].mxu0 %v771
      %v1741 = vpop.f32.mrb[0].mxu0
      %v1742 = vadd.f32 %v1581, %v1741
      %v1743 = vpop.f32.mrb[0].mxu0
      %v1744 = vpop.f32.mrb[0].mxu0
      %v1745 = vadd.f32 %v1584, %v1744
      %v1746 = vpop.f32.mrb[0].mxu0
      %1747 = vmatprep.mubr.bf16.mxu0 0
      %1748 = vmatmul.mubr.bf16.gmra.mrb[0].mxu0 %v772
      %v1749 = vpop.f32.mrb[0].mxu0
      %v1750 = vadd.f32 %v1589, %v1749
      %v1751 = vpop.f32.mrb[0].mxu0
      %v1752 = vpop.f32.mrb[0].mxu0
      %v1753 = vadd.f32 %v1592, %v1752
      %v1754 = vpop.f32.mrb[0].mxu0
      %1755 = vmatprep.mubr.bf16.mxu0 0
      %1756 = vmatmul.mubr.bf16.gmra.mrb[0].mxu0 %v773
      %v1757 = vpop.f32.mrb[0].mxu0
      %v1758 = vadd.f32 %v1597, %v1757
      %v1759 = vpop.f32.mrb[0].mxu0
      %v1760 = vpop.f32.mrb[0].mxu0
      %v1761 = vadd.f32 %v1600, %v1760
      %v1762 = vpop.f32.mrb[0].mxu0
      %1763 = vmatprep.mubr.bf16.mxu0 0
      %1764 = vmatmul.mubr.bf16.gmra.mrb[0].mxu0 %v774
      %v1765 = vpop.f32.mrb[0].mxu0
      %v1766 = vadd.f32 %v1605, %v1765
      %v1767 = vpop.f32.mrb[0].mxu0
      %v1768 = vpop.f32.mrb[0].mxu0
      %v1769 = vadd.f32 %v1608, %v1768
      %v1770 = vpop.f32.mrb[0].mxu0
      %1771 = vmatprep.mubr.bf16.mxu0 0
      %1772 = vmatmul.mubr.bf16.gmra.mrb[0].mxu0 %v775
      %v1773 = vpop.f32.mrb[0].mxu0
      %v1774 = vadd.f32 %v1613, %v1773
      %v1775 = vpop.f32.mrb[0].mxu0
      %v1776 = vpop.f32.mrb[0].mxu0
      %v1777 = vadd.f32 %v1616, %v1776
      %v1778 = vpop.f32.mrb[0].mxu0
      %1779 = vmatprep.mubr.bf16.mxu0 0
      %1780 = vmatmul.mubr.bf16.gmra.mrb[0].mxu0 %v776
      %v1781 = vpop.f32.mrb[0].mxu0
      %v1782 = vadd.f32 %v1621, %v1781
      %v1783 = vpop.f32.mrb[0].mxu0
      %v1784 = vpop.f32.mrb[0].mxu0
      %v1785 = vadd.f32 %v1624, %v1784
      %v1786 = vpop.f32.mrb[0].mxu0
      %1787 = vmatprep.mubr.bf16.mxu0 0
      %1788 = vmatmul.mubr.bf16.gmra.mrb[0].mxu0 %v777
      %v1789 = vpop.f32.mrb[0].mxu0
      %v1790 = vadd.f32 %v1629, %v1789
      %v1791 = vpop.f32.mrb[0].mxu0
      %v1792 = vpop.f32.mrb[0].mxu0
      %v1793 = vadd.f32 %v1632, %v1792
      %v1794 = vpop.f32.mrb[0].mxu0
      %1795 = vmatprep.mubr.bf16.mxu0 0
      %1796 = vmatmul.mubr.bf16.gmra.mrb[0].mxu0 %v778
      %v1797 = vpop.f32.mrb[0].mxu0
      %v1798 = vadd.f32 %v1637, %v1797
      %v1799 = vpop.f32.mrb[0].mxu0
      %v1800 = vpop.f32.mrb[0].mxu0
      %v1801 = vadd.f32 %v1640, %v1800
      %v1802 = vpop.f32.mrb[0].mxu0
      %1803 = vmatprep.mubr.bf16.mxu0 0
      %1804 = vmatmul.mubr.bf16.gmra.mrb[0].mxu0 %v779
      %v1805 = vpop.f32.mrb[0].mxu0
      %v1806 = vadd.f32 %v1645, %v1805
      %v1807 = vpop.f32.mrb[0].mxu0
      %v1808 = vpop.f32.mrb[0].mxu0
      %v1809 = vadd.f32 %v1648, %v1808
      %v1810 = vpop.f32.mrb[0].mxu0
      %1811 = vmatprep.mubr.bf16.mxu0 0
      %1812 = vmatmul.mubr.bf16.gmra.mrb[0].mxu0 %v780
      %v1813 = vpop.f32.mrb[0].mxu0
      %v1814 = vadd.f32 %v1653, %v1813
      %v1815 = vpop.f32.mrb[0].mxu0
      %v1816 = vpop.f32.mrb[0].mxu0
      %v1817 = vadd.f32 %v1656, %v1816
      %v1818 = vpop.f32.mrb[0].mxu0
      %1819 = vmatprep.mubr.bf16.mxu0 0
      %1820 = vmatmul.mubr.bf16.gmra.mrb[0].mxu0 %v781
      %v1821 = vpop.f32.mrb[0].mxu0
      %v1822 = vadd.f32 %v1661, %v1821
      %v1823 = vpop.f32.mrb[0].mxu0
      %v1824 = vpop.f32.mrb[0].mxu0
      %v1825 = vadd.f32 %v1664, %v1824
      %v1826 = vpop.f32.mrb[0].mxu0
      %1827 = vdwg.mxu0
      %s1828 = scalar_lea.vmem %s1, 384
      %v1829 = vld [vmem:[%s1828] sm:$0xf]
      %v1830 = vld [vmem:[%s1828 + $0x4] sm:$0xf]
      %v1831 = vld [vmem:[%s1828 + $0x8] sm:$0xf]
      %v1832 = vld [vmem:[%s1828 + $0xc] sm:$0xf]
      %v1833 = vld [vmem:[%s1828 + $0x10] sm:$0xf]
      %v1834 = vld [vmem:[%s1828 + $0x14] sm:$0xf]
      %v1835 = vld [vmem:[%s1828 + $0x18] sm:$0xf]
      %v1836 = vld [vmem:[%s1828 + $0x1c] sm:$0xf]
      %v1837 = vld [vmem:[%s1828 + $0x20] sm:$0xf]
      %v1838 = vld [vmem:[%s1828 + $0x24] sm:$0xf]
      %v1839 = vld [vmem:[%s1828 + $0x28] sm:$0xf]
      %v1840 = vld [vmem:[%s1828 + $0x2c] sm:$0xf]
      %v1841 = vld [vmem:[%s1828 + $0x30] sm:$0xf]
      %v1842 = vld [vmem:[%s1828 + $0x34] sm:$0xf]
      %v1843 = vld [vmem:[%s1828 + $0x38] sm:$0xf]
      %v1844 = vld [vmem:[%s1828 + $0x3c] sm:$0xf]
      %v1845 = vld [vmem:[%s1828 + $0x40] sm:$0xf]
      %v1846 = vld [vmem:[%s1828 + $0x44] sm:$0xf]
      %v1847 = vld [vmem:[%s1828 + $0x48] sm:$0xf]
      %v1848 = vld [vmem:[%s1828 + $0x4c] sm:$0xf]
      %v1849 = vld [vmem:[%s1828 + $0x50] sm:$0xf]
      %v1850 = vld [vmem:[%s1828 + $0x54] sm:$0xf]
      %v1851 = vld [vmem:[%s1828 + $0x58] sm:$0xf]
      %v1852 = vld [vmem:[%s1828 + $0x5c] sm:$0xf]
      %v1853 = vld [vmem:[%s1828 + $0x60] sm:$0xf]
      %v1854 = vld [vmem:[%s1828 + $0x64] sm:$0xf]
      %v1855 = vld [vmem:[%s1828 + $0x68] sm:$0xf]
      %v1856 = vld [vmem:[%s1828 + $0x6c] sm:$0xf]
      %v1857 = vld [vmem:[%s1828 + $0x70] sm:$0xf]
      %v1858 = vld [vmem:[%s1828 + $0x74] sm:$0xf]
      %v1859 = vld [vmem:[%s1828 + $0x78] sm:$0xf]
      %v1860 = vld [vmem:[%s1828 + $0x7c] sm:$0xf]
      %v1861 = vld [vmem:[%s1828 + $0x80] sm:$0xf]
      %v1862 = vld [vmem:[%s1828 + $0x84] sm:$0xf]
      %v1863 = vld [vmem:[%s1828 + $0x88] sm:$0xf]
      %v1864 = vld [vmem:[%s1828 + $0x8c] sm:$0xf]
      %v1865 = vld [vmem:[%s1828 + $0x90] sm:$0xf]
      %v1866 = vld [vmem:[%s1828 + $0x94] sm:$0xf]
      %v1867 = vld [vmem:[%s1828 + $0x98] sm:$0xf]
      %v1868 = vld [vmem:[%s1828 + $0x9c] sm:$0xf]
      %v1869 = vld [vmem:[%s1828 + $0xa0] sm:$0xf]
      %v1870 = vld [vmem:[%s1828 + $0xa4] sm:$0xf]
      %v1871 = vld [vmem:[%s1828 + $0xa8] sm:$0xf]
      %v1872 = vld [vmem:[%s1828 + $0xac] sm:$0xf]
      %v1873 = vld [vmem:[%s1828 + $0xb0] sm:$0xf]
      %v1874 = vld [vmem:[%s1828 + $0xb4] sm:$0xf]
      %v1875 = vld [vmem:[%s1828 + $0xb8] sm:$0xf]
      %v1876 = vld [vmem:[%s1828 + $0xbc] sm:$0xf]
      %v1925 = vunpack.c.l.b16 %v1829
      %v1926 = vunpack.c.l.b16 %v1830
      %v1927 = vunpack.c.l.b16 %v1831
      %v1928 = vunpack.c.l.b16 %v1832
      %v1929 = vunpack.c.l.b16 %v1833
      %v1930 = vunpack.c.l.b16 %v1834
      %v1931 = vunpack.c.l.b16 %v1835
      %v1932 = vunpack.c.l.b16 %v1836
      %v1933 = vunpack.c.l.b16 %v1837
      %v1934 = vunpack.c.l.b16 %v1838
      %v1935 = vunpack.c.l.b16 %v1839
      %v1936 = vunpack.c.l.b16 %v1840
      %v1937 = vunpack.c.l.b16 %v1841
      %v1938 = vunpack.c.l.b16 %v1842
      %v1939 = vunpack.c.l.b16 %v1843
      %v1940 = vunpack.c.l.b16 %v1844
      %v1941 = vunpack.c.l.b16 %v1845
      %v1942 = vunpack.c.l.b16 %v1846
      %v1943 = vunpack.c.l.b16 %v1847
      %v1944 = vunpack.c.l.b16 %v1848
      %v1945 = vunpack.c.l.b16 %v1849
      %v1946 = vunpack.c.l.b16 %v1850
      %v1947 = vunpack.c.l.b16 %v1851
      %v1948 = vunpack.c.l.b16 %v1852
      %v1949 = vunpack.c.l.b16 %v1853
      %v1950 = vunpack.c.l.b16 %v1854
      %v1951 = vunpack.c.l.b16 %v1855
      %v1952 = vunpack.c.l.b16 %v1856
      %v1953 = vunpack.c.l.b16 %v1857
      %v1954 = vunpack.c.l.b16 %v1858
      %v1955 = vunpack.c.l.b16 %v1859
      %v1956 = vunpack.c.l.b16 %v1860
      %v1957 = vunpack.c.l.b16 %v1861
      %v1958 = vunpack.c.l.b16 %v1862
      %v1959 = vunpack.c.l.b16 %v1863
      %v1960 = vunpack.c.l.b16 %v1864
      %v1961 = vunpack.c.l.b16 %v1865
      %v1962 = vunpack.c.l.b16 %v1866
      %v1963 = vunpack.c.l.b16 %v1867
      %v1964 = vunpack.c.l.b16 %v1868
      %v1965 = vunpack.c.l.b16 %v1869
      %v1966 = vunpack.c.l.b16 %v1870
      %v1967 = vunpack.c.l.b16 %v1871
      %v1968 = vunpack.c.l.b16 %v1872
      %v1969 = vunpack.c.l.b16 %v1873
      %v1970 = vunpack.c.l.b16 %v1874
      %v1971 = vunpack.c.l.b16 %v1875
      %v1972 = vunpack.c.l.b16 %v1876
      %v1973 = vpack.c.b16 %v1926, %v1925
      %v1974 = vpack.c.b16 %v1928, %v1927
      %v1975 = vpack.c.b16 %v1930, %v1929
      %v1976 = vpack.c.b16 %v1932, %v1931
      %v1977 = vpack.c.b16 %v1934, %v1933
      %v1978 = vpack.c.b16 %v1936, %v1935
      %v1979 = vpack.c.b16 %v1938, %v1937
      %v1980 = vpack.c.b16 %v1940, %v1939
      %v1981 = vpack.c.b16 %v1942, %v1941
      %v1982 = vpack.c.b16 %v1944, %v1943
      %v1983 = vpack.c.b16 %v1946, %v1945
      %v1984 = vpack.c.b16 %v1948, %v1947
      %v1985 = vpack.c.b16 %v1950, %v1949
      %v1986 = vpack.c.b16 %v1952, %v1951
      %v1987 = vpack.c.b16 %v1954, %v1953
      %v1988 = vpack.c.b16 %v1956, %v1955
      %v1989 = vpack.c.b16 %v1958, %v1957
      %v1990 = vpack.c.b16 %v1960, %v1959
      %v1991 = vpack.c.b16 %v1962, %v1961
      %v1992 = vpack.c.b16 %v1964, %v1963
      %v1993 = vpack.c.b16 %v1966, %v1965
      %v1994 = vpack.c.b16 %v1968, %v1967
      %v1995 = vpack.c.b16 %v1970, %v1969
      %v1996 = vpack.c.b16 %v1972, %v1971
      %2021 = vmatprep.subr.bf16.mxu0 0
      %2022 = vmatpush1.bf16.msra.mxu0 %v1973
      %2023 = vmatprep.subr.bf16.mxu0 0
      %2024 = vmatpush1.bf16.msra.mxu0 %v1974
      %2025 = vmatprep.subr.bf16.mxu0 0
      %2026 = vmatpush1.bf16.msra.mxu0 %v1975
      %2027 = vmatprep.subr.bf16.mxu0 0
      %2028 = vmatpush1.bf16.msra.mxu0 %v1976
      %2029 = vmatprep.subr.bf16.mxu0 0
      %2030 = vmatpush1.bf16.msra.mxu0 %v1977
      %2031 = vmatprep.subr.bf16.mxu0 0
      %2032 = vmatpush1.bf16.msra.mxu0 %v1978
      %2033 = vmatprep.subr.bf16.mxu0 0
      %2034 = vmatpush1.bf16.msra.mxu0 %v1979
      %2035 = vmatprep.subr.bf16.mxu0 0
      %2036 = vmatpush1.bf16.msra.mxu0 %v1980
      %2037 = vmatprep.subr.bf16.mxu0 0
      %2038 = vmatpush1.bf16.msra.mxu0 %v1981
      %2039 = vmatprep.subr.bf16.mxu0 0
      %2040 = vmatpush1.bf16.msra.mxu0 %v1982
      %2041 = vmatprep.subr.bf16.mxu0 0
      %2042 = vmatpush1.bf16.msra.mxu0 %v1983
      %2043 = vmatprep.subr.bf16.mxu0 0
      %2044 = vmatpush1.bf16.msra.mxu0 %v1984
      %2045 = vmatprep.subr.bf16.mxu0 0
      %2046 = vmatpush1.bf16.msra.mxu0 %v1985
      %2047 = vmatprep.subr.bf16.mxu0 0
      %2048 = vmatpush1.bf16.msra.mxu0 %v1986
      %2049 = vmatprep.subr.bf16.mxu0 0
      %2050 = vmatpush1.bf16.msra.mxu0 %v1987
      %2051 = vmatprep.subr.bf16.mxu0 0
      %2052 = vmatpush1.bf16.msra.mxu0 %v1988
      %2053 = vmatprep.mubr.bf16.mxu0 %v554
      %2054 = vmatmul.mubr.bf16.gmra.mrb[0].mxu0 %v701
      %v2055 = vpop.f32.mrb[0].mxu0
      %v2056 = vadd.f32 0.0, %v2055
      %v2057 = vpop.f32.mrb[0].mxu0
      %v2058 = vpop.f32.mrb[0].mxu0
      %v2059 = vadd.f32 0.0, %v2058
      %v2060 = vpop.f32.mrb[0].mxu0
      %2061 = vmatprep.mubr.bf16.mxu0 %v555
      %2062 = vmatmul.mubr.bf16.gmra.mrb[0].mxu0 %v702
      %v2063 = vpop.f32.mrb[0].mxu0
      %v2064 = vadd.f32 0.0, %v2063
      %v2065 = vpop.f32.mrb[0].mxu0
      %v2066 = vpop.f32.mrb[0].mxu0
      %v2067 = vadd.f32 0.0, %v2066
      %v2068 = vpop.f32.mrb[0].mxu0
      %2069 = vmatprep.mubr.bf16.mxu0 %v556
      %2070 = vmatmul.mubr.bf16.gmra.mrb[0].mxu0 %v703
      %v2071 = vpop.f32.mrb[0].mxu0
      %v2072 = vadd.f32 0.0, %v2071
      %v2073 = vpop.f32.mrb[0].mxu0
      %v2074 = vpop.f32.mrb[0].mxu0
      %v2075 = vadd.f32 0.0, %v2074
      %v2076 = vpop.f32.mrb[0].mxu0
      %2077 = vmatprep.mubr.bf16.mxu0 %v557
      %2078 = vmatmul.mubr.bf16.gmra.mrb[0].mxu0 %v704
      %v2079 = vpop.f32.mrb[0].mxu0
      %v2080 = vadd.f32 0.0, %v2079
      %v2081 = vpop.f32.mrb[0].mxu0
      %v2082 = vpop.f32.mrb[0].mxu0
      %v2083 = vadd.f32 0.0, %v2082
      %v2084 = vpop.f32.mrb[0].mxu0
      %2085 = vmatprep.mubr.bf16.mxu0 %v558
      %2086 = vmatmul.mubr.bf16.gmra.mrb[0].mxu0 %v705
      %v2087 = vpop.f32.mrb[0].mxu0
      %v2088 = vadd.f32 0.0, %v2087
      %v2089 = vpop.f32.mrb[0].mxu0
      %v2090 = vpop.f32.mrb[0].mxu0
      %v2091 = vadd.f32 0.0, %v2090
      %v2092 = vpop.f32.mrb[0].mxu0
      %2093 = vmatprep.mubr.bf16.mxu0 %v559
      %2094 = vmatmul.mubr.bf16.gmra.mrb[0].mxu0 %v706
      %v2095 = vpop.f32.mrb[0].mxu0
      %v2096 = vadd.f32 0.0, %v2095
      %v2097 = vpop.f32.mrb[0].mxu0
      %v2098 = vpop.f32.mrb[0].mxu0
      %v2099 = vadd.f32 0.0, %v2098
      %v2100 = vpop.f32.mrb[0].mxu0
      %2101 = vmatprep.mubr.bf16.mxu0 %v560
      %2102 = vmatmul.mubr.bf16.gmra.mrb[0].mxu0 %v707
      %v2103 = vpop.f32.mrb[0].mxu0
      %v2104 = vadd.f32 0.0, %v2103
      %v2105 = vpop.f32.mrb[0].mxu0
      %v2106 = vpop.f32.mrb[0].mxu0
      %v2107 = vadd.f32 0.0, %v2106
      %v2108 = vpop.f32.mrb[0].mxu0
      %2109 = vmatprep.mubr.bf16.mxu0 %v561
      %2110 = vmatmul.mubr.bf16.gmra.mrb[0].mxu0 %v708
      %v2111 = vpop.f32.mrb[0].mxu0
      %v2112 = vadd.f32 0.0, %v2111
      %v2113 = vpop.f32.mrb[0].mxu0
      %v2114 = vpop.f32.mrb[0].mxu0
      %v2115 = vadd.f32 0.0, %v2114
      %v2116 = vpop.f32.mrb[0].mxu0
      %2117 = vmatprep.mubr.bf16.mxu0 %v562
      %2118 = vmatmul.mubr.bf16.gmra.mrb[0].mxu0 %v709
      %v2119 = vpop.f32.mrb[0].mxu0
      %v2120 = vadd.f32 0.0, %v2119
      %v2121 = vpop.f32.mrb[0].mxu0
      %v2122 = vpop.f32.mrb[0].mxu0
      %v2123 = vadd.f32 0.0, %v2122
      %v2124 = vpop.f32.mrb[0].mxu0
      %2125 = vmatprep.mubr.bf16.mxu0 %v563
      %2126 = vmatmul.mubr.bf16.gmra.mrb[0].mxu0 %v710
      %v2127 = vpop.f32.mrb[0].mxu0
      %v2128 = vadd.f32 0.0, %v2127
      %v2129 = vpop.f32.mrb[0].mxu0
      %v2130 = vpop.f32.mrb[0].mxu0
      %v2131 = vadd.f32 0.0, %v2130
      %v2132 = vpop.f32.mrb[0].mxu0
      %2133 = vmatprep.mubr.bf16.mxu0 %v564
      %2134 = vmatmul.mubr.bf16.gmra.mrb[0].mxu0 %v711
      %v2135 = vpop.f32.mrb[0].mxu0
      %v2136 = vadd.f32 0.0, %v2135
      %v2137 = vpop.f32.mrb[0].mxu0
      %v2138 = vpop.f32.mrb[0].mxu0
      %v2139 = vadd.f32 0.0, %v2138
      %v2140 = vpop.f32.mrb[0].mxu0
      %2141 = vmatprep.mubr.bf16.mxu0 %v565
      %2142 = vmatmul.mubr.bf16.gmra.mrb[0].mxu0 %v712
      %v2143 = vpop.f32.mrb[0].mxu0
      %v2144 = vadd.f32 0.0, %v2143
      %v2145 = vpop.f32.mrb[0].mxu0
      %v2146 = vpop.f32.mrb[0].mxu0
      %v2147 = vadd.f32 0.0, %v2146
      %v2148 = vpop.f32.mrb[0].mxu0
      %2149 = vmatprep.mubr.bf16.mxu0 %v566
      %2150 = vmatmul.mubr.bf16.gmra.mrb[0].mxu0 %v713
      %v2151 = vpop.f32.mrb[0].mxu0
      %v2152 = vadd.f32 0.0, %v2151
      %v2153 = vpop.f32.mrb[0].mxu0
      %v2154 = vpop.f32.mrb[0].mxu0
      %v2155 = vadd.f32 0.0, %v2154
      %v2156 = vpop.f32.mrb[0].mxu0
      %2157 = vmatprep.mubr.bf16.mxu0 %v567
      %2158 = vmatmul.mubr.bf16.gmra.mrb[0].mxu0 %v714
      %v2159 = vpop.f32.mrb[0].mxu0
      %v2160 = vadd.f32 0.0, %v2159
      %v2161 = vpop.f32.mrb[0].mxu0
      %v2162 = vpop.f32.mrb[0].mxu0
      %v2163 = vadd.f32 0.0, %v2162
      %v2164 = vpop.f32.mrb[0].mxu0
      %2165 = vmatprep.mubr.bf16.mxu0 %v568
      %2166 = vmatmul.mubr.bf16.gmra.mrb[0].mxu0 %v715
      %v2167 = vpop.f32.mrb[0].mxu0
      %v2168 = vadd.f32 0.0, %v2167
      %v2169 = vpop.f32.mrb[0].mxu0
      %v2170 = vpop.f32.mrb[0].mxu0
      %v2171 = vadd.f32 0.0, %v2170
      %v2172 = vpop.f32.mrb[0].mxu0
      %2173 = vmatprep.mubr.bf16.mxu0 0
      %2174 = vmatmul.mubr.bf16.gmra.mrb[0].mxu0 0
      %v2175 = vpop.f32.mrb[0].mxu0
      %v2176 = vadd.f32 0.0, %v2175
      %v2177 = vpop.f32.mrb[0].mxu0
      %v2178 = vpop.f32.mrb[0].mxu0
      %v2179 = vadd.f32 0.0, %v2178
      %v2180 = vpop.f32.mrb[0].mxu0
      %2181 = vdwg.mxu0
      %2182 = vmatprep.subr.bf16.mxu0 0
      %2183 = vmatpush1.bf16.msra.mxu0 %v1989
      %2184 = vmatprep.subr.bf16.mxu0 0
      %2185 = vmatpush1.bf16.msra.mxu0 %v1990
      %2186 = vmatprep.subr.bf16.mxu0 0
      %2187 = vmatpush1.bf16.msra.mxu0 %v1991
      %2188 = vmatprep.subr.bf16.mxu0 0
      %2189 = vmatpush1.bf16.msra.mxu0 %v1992
      %2190 = vmatprep.subr.bf16.mxu0 0
      %2191 = vmatpush1.bf16.msra.mxu0 %v1993
      %2192 = vmatprep.subr.bf16.mxu0 0
      %2193 = vmatpush1.bf16.msra.mxu0 %v1994
      %2194 = vmatprep.subr.bf16.mxu0 0
      %2195 = vmatpush1.bf16.msra.mxu0 %v1995
      %2196 = vmatprep.subr.bf16.mxu0 0
      %2197 = vmatpush1.bf16.msra.mxu0 %v1996
      %2198 = vmatprep.subr.bf16.mxu0 0
      %2199 = vmatpush1.bf16.msra.mxu0 0
      %2200 = vmatprep.subr.bf16.mxu0 0
      %2201 = vmatpush1.bf16.msra.mxu0 0
      %2202 = vmatprep.subr.bf16.mxu0 0
      %2203 = vmatpush1.bf16.msra.mxu0 0
      %2204 = vmatprep.subr.bf16.mxu0 0
      %2205 = vmatpush1.bf16.msra.mxu0 0
      %2206 = vmatprep.subr.bf16.mxu0 0
      %2207 = vmatpush1.bf16.msra.mxu0 0
      %2208 = vmatprep.subr.bf16.mxu0 0
      %2209 = vmatpush1.bf16.msra.mxu0 0
      %2210 = vmatprep.subr.bf16.mxu0 0
      %2211 = vmatpush1.bf16.msra.mxu0 0
      %2212 = vmatprep.subr.bf16.mxu0 0
      %2213 = vmatpush1.bf16.msra.mxu0 0
      %2214 = vmatprep.mubr.bf16.mxu0 0
      %2215 = vmatmul.mubr.bf16.gmra.mrb[0].mxu0 %v768
      %v2216 = vpop.f32.mrb[0].mxu0
      %v2217 = vadd.f32 %v2056, %v2216
      %v2218 = vpop.f32.mrb[0].mxu0
      %v2219 = vpop.f32.mrb[0].mxu0
      %v2220 = vadd.f32 %v2059, %v2219
      %v2221 = vpop.f32.mrb[0].mxu0
      %2222 = vmatprep.mubr.bf16.mxu0 0
      %2223 = vmatmul.mubr.bf16.gmra.mrb[0].mxu0 %v769
      %v2224 = vpop.f32.mrb[0].mxu0
      %v2225 = vadd.f32 %v2064, %v2224
      %v2226 = vpop.f32.mrb[0].mxu0
      %v2227 = vpop.f32.mrb[0].mxu0
      %v2228 = vadd.f32 %v2067, %v2227
      %v2229 = vpop.f32.mrb[0].mxu0
      %2230 = vmatprep.mubr.bf16.mxu0 0
      %2231 = vmatmul.mubr.bf16.gmra.mrb[0].mxu0 %v770
      %v2232 = vpop.f32.mrb[0].mxu0
      %v2233 = vadd.f32 %v2072, %v2232
      %v2234 = vpop.f32.mrb[0].mxu0
      %v2235 = vpop.f32.mrb[0].mxu0
      %v2236 = vadd.f32 %v2075, %v2235
      %v2237 = vpop.f32.mrb[0].mxu0
      %2238 = vmatprep.mubr.bf16.mxu0 0
      %2239 = vmatmul.mubr.bf16.gmra.mrb[0].mxu0 %v771
      %v2240 = vpop.f32.mrb[0].mxu0
      %v2241 = vadd.f32 %v2080, %v2240
      %v2242 = vpop.f32.mrb[0].mxu0
      %v2243 = vpop.f32.mrb[0].mxu0
      %v2244 = vadd.f32 %v2083, %v2243
      %v2245 = vpop.f32.mrb[0].mxu0
      %2246 = vmatprep.mubr.bf16.mxu0 0
      %2247 = vmatmul.mubr.bf16.gmra.mrb[0].mxu0 %v772
      %v2248 = vpop.f32.mrb[0].mxu0
      %v2249 = vadd.f32 %v2088, %v2248
      %v2250 = vpop.f32.mrb[0].mxu0
      %v2251 = vpop.f32.mrb[0].mxu0
      %v2252 = vadd.f32 %v2091, %v2251
      %v2253 = vpop.f32.mrb[0].mxu0
      %2254 = vmatprep.mubr.bf16.mxu0 0
      %2255 = vmatmul.mubr.bf16.gmra.mrb[0].mxu0 %v773
      %v2256 = vpop.f32.mrb[0].mxu0
      %v2257 = vadd.f32 %v2096, %v2256
      %v2258 = vpop.f32.mrb[0].mxu0
      %v2259 = vpop.f32.mrb[0].mxu0
      %v2260 = vadd.f32 %v2099, %v2259
      %v2261 = vpop.f32.mrb[0].mxu0
      %2262 = vmatprep.mubr.bf16.mxu0 0
      %2263 = vmatmul.mubr.bf16.gmra.mrb[0].mxu0 %v774
      %v2264 = vpop.f32.mrb[0].mxu0
      %v2265 = vadd.f32 %v2104, %v2264
      %v2266 = vpop.f32.mrb[0].mxu0
      %v2267 = vpop.f32.mrb[0].mxu0
      %v2268 = vadd.f32 %v2107, %v2267
      %v2269 = vpop.f32.mrb[0].mxu0
      %2270 = vmatprep.mubr.bf16.mxu0 0
      %2271 = vmatmul.mubr.bf16.gmra.mrb[0].mxu0 %v775
      %v2272 = vpop.f32.mrb[0].mxu0
      %v2273 = vadd.f32 %v2112, %v2272
      %v2274 = vpop.f32.mrb[0].mxu0
      %v2275 = vpop.f32.mrb[0].mxu0
      %v2276 = vadd.f32 %v2115, %v2275
      %v2277 = vpop.f32.mrb[0].mxu0
      %2278 = vmatprep.mubr.bf16.mxu0 0
      %2279 = vmatmul.mubr.bf16.gmra.mrb[0].mxu0 %v776
      %v2280 = vpop.f32.mrb[0].mxu0
      %v2281 = vadd.f32 %v2120, %v2280
      %v2282 = vpop.f32.mrb[0].mxu0
      %v2283 = vpop.f32.mrb[0].mxu0
      %v2284 = vadd.f32 %v2123, %v2283
      %v2285 = vpop.f32.mrb[0].mxu0
      %2286 = vmatprep.mubr.bf16.mxu0 0
      %2287 = vmatmul.mubr.bf16.gmra.mrb[0].mxu0 %v777
      %v2288 = vpop.f32.mrb[0].mxu0
      %v2289 = vadd.f32 %v2128, %v2288
      %v2290 = vpop.f32.mrb[0].mxu0
      %v2291 = vpop.f32.mrb[0].mxu0
      %v2292 = vadd.f32 %v2131, %v2291
      %v2293 = vpop.f32.mrb[0].mxu0
      %2294 = vmatprep.mubr.bf16.mxu0 0
      %2295 = vmatmul.mubr.bf16.gmra.mrb[0].mxu0 %v778
      %v2296 = vpop.f32.mrb[0].mxu0
      %v2297 = vadd.f32 %v2136, %v2296
      %v2298 = vpop.f32.mrb[0].mxu0
      %v2299 = vpop.f32.mrb[0].mxu0
      %v2300 = vadd.f32 %v2139, %v2299
      %v2301 = vpop.f32.mrb[0].mxu0
      %2302 = vmatprep.mubr.bf16.mxu0 0
      %2303 = vmatmul.mubr.bf16.gmra.mrb[0].mxu0 %v779
      %v2304 = vpop.f32.mrb[0].mxu0
      %v2305 = vadd.f32 %v2144, %v2304
      %v2306 = vpop.f32.mrb[0].mxu0
      %v2307 = vpop.f32.mrb[0].mxu0
      %v2308 = vadd.f32 %v2147, %v2307
      %v2309 = vpop.f32.mrb[0].mxu0
      %2310 = vmatprep.mubr.bf16.mxu0 0
      %2311 = vmatmul.mubr.bf16.gmra.mrb[0].mxu0 %v780
      %v2312 = vpop.f32.mrb[0].mxu0
      %v2313 = vadd.f32 %v2152, %v2312
      %v2314 = vpop.f32.mrb[0].mxu0
      %v2315 = vpop.f32.mrb[0].mxu0
      %v2316 = vadd.f32 %v2155, %v2315
      %v2317 = vpop.f32.mrb[0].mxu0
      %2318 = vmatprep.mubr.bf16.mxu0 0
      %2319 = vmatmul.mubr.bf16.gmra.mrb[0].mxu0 %v781
      %v2320 = vpop.f32.mrb[0].mxu0
      %v2321 = vadd.f32 %v2160, %v2320
      %v2322 = vpop.f32.mrb[0].mxu0
      %v2323 = vpop.f32.mrb[0].mxu0
      %v2324 = vadd.f32 %v2163, %v2323
      %v2325 = vpop.f32.mrb[0].mxu0
      %2326 = vmatprep.mubr.bf16.mxu0 0
      %2327 = vmatmul.mubr.bf16.gmra.mrb[0].mxu0 %v782
      %v2328 = vpop.f32.mrb[0].mxu0
      %v2329 = vadd.f32 %v2168, %v2328
      %v2330 = vpop.f32.mrb[0].mxu0
      %v2331 = vpop.f32.mrb[0].mxu0
      %v2332 = vadd.f32 %v2171, %v2331
      %v2333 = vpop.f32.mrb[0].mxu0
      %2334 = vmatprep.mubr.bf16.mxu0 0
      %2335 = vmatmul.mubr.bf16.gmra.mrb[0].mxu0 0
      %v2336 = vpop.f32.mrb[0].mxu0
      %v2337 = vadd.f32 %v2176, %v2336
      %v2338 = vpop.f32.mrb[0].mxu0
      %v2339 = vpop.f32.mrb[0].mxu0
      %v2340 = vadd.f32 %v2179, %v2339
      %v2341 = vpop.f32.mrb[0].mxu0
      %2342 = vdwg.mxu0
      %v2343 = vadd.f32 %v1702, %v2217
      %v2344 = vadd.f32 %v1705, %v2220
      %v2345 = vadd.f32 %v1710, %v2225
      %v2346 = vadd.f32 %v1713, %v2228
      %v2347 = vadd.f32 %v1718, %v2233
      %v2348 = vadd.f32 %v1721, %v2236
      %v2349 = vadd.f32 %v1726, %v2241
      %v2350 = vadd.f32 %v1729, %v2244
      %v2351 = vadd.f32 %v1734, %v2249
      %v2352 = vadd.f32 %v1737, %v2252
      %v2353 = vadd.f32 %v1742, %v2257
      %v2354 = vadd.f32 %v1745, %v2260
      %v2355 = vadd.f32 %v1750, %v2265
      %v2356 = vadd.f32 %v1753, %v2268
      %v2357 = vadd.f32 %v1758, %v2273
      %v2358 = vadd.f32 %v1761, %v2276
      %v2359 = vadd.f32 %v1766, %v2281
      %v2360 = vadd.f32 %v1769, %v2284
      %v2361 = vadd.f32 %v1774, %v2289
      %v2362 = vadd.f32 %v1777, %v2292
      %v2363 = vadd.f32 %v1782, %v2297
      %v2364 = vadd.f32 %v1785, %v2300
      %v2365 = vadd.f32 %v1790, %v2305
      %v2366 = vadd.f32 %v1793, %v2308
      %v2367 = vadd.f32 %v1798, %v2313
      %v2368 = vadd.f32 %v1801, %v2316
      %v2369 = vadd.f32 %v1806, %v2321
      %v2370 = vadd.f32 %v1809, %v2324
      %v2371 = vadd.f32 %v1814, %v2329
      %v2372 = vadd.f32 %v1817, %v2332
      %v2373 = vadd.f32 %v1822, %v2337
      %v2374 = vadd.f32 %v1825, %v2340
      %v2375 = vpack.c.bf16 %v2344, %v2343
      %v2376 = vpack.c.bf16 %v2346, %v2345
      %v2377 = vpack.c.bf16 %v2348, %v2347
      %v2378 = vpack.c.bf16 %v2350, %v2349
      %v2379 = vpack.c.bf16 %v2352, %v2351
      %v2380 = vpack.c.bf16 %v2354, %v2353
      %v2381 = vpack.c.bf16 %v2356, %v2355
      %v2382 = vpack.c.bf16 %v2358, %v2357
      %v2383 = vpack.c.bf16 %v2360, %v2359
      %v2384 = vpack.c.bf16 %v2362, %v2361
      %v2385 = vpack.c.bf16 %v2364, %v2363
      %v2386 = vpack.c.bf16 %v2366, %v2365
      %v2387 = vpack.c.bf16 %v2368, %v2367
      %v2388 = vpack.c.bf16 %v2370, %v2369
      %v2389 = vpack.c.bf16 %v2372, %v2371
      %v2390 = vpack.c.bf16 %v2374, %v2373
      %v2407 = vunpack.c.l.b16 %v2375
      %v2408 = vunpack.c.h.b16 %v2375
      %v2409 = vunpack.c.l.b16 %v2376
      %v2410 = vunpack.c.h.b16 %v2376
      %v2411 = vunpack.c.l.b16 %v2377
      %v2412 = vunpack.c.h.b16 %v2377
      %v2413 = vunpack.c.l.b16 %v2378
      %v2414 = vunpack.c.h.b16 %v2378
      %v2415 = vunpack.c.l.b16 %v2379
      %v2416 = vunpack.c.h.b16 %v2379
      %v2417 = vunpack.c.l.b16 %v2380
      %v2418 = vunpack.c.h.b16 %v2380
      %v2419 = vunpack.c.l.b16 %v2381
      %v2420 = vunpack.c.h.b16 %v2381
      %v2421 = vunpack.c.l.b16 %v2382
      %v2422 = vunpack.c.h.b16 %v2382
      %v2423 = vunpack.c.l.b16 %v2383
      %v2424 = vunpack.c.h.b16 %v2383
      %v2425 = vunpack.c.l.b16 %v2384
      %v2426 = vunpack.c.h.b16 %v2384
      %v2427 = vunpack.c.l.b16 %v2385
      %v2428 = vunpack.c.h.b16 %v2385
      %v2429 = vunpack.c.l.b16 %v2386
      %v2430 = vunpack.c.h.b16 %v2386
      %v2431 = vunpack.c.l.b16 %v2387
      %v2432 = vunpack.c.h.b16 %v2387
      %v2433 = vunpack.c.l.b16 %v2388
      %v2434 = vunpack.c.h.b16 %v2388
      %v2435 = vunpack.c.l.b16 %v2389
      %v2436 = vunpack.c.h.b16 %v2389
      %v2437 = vunpack.c.l.b16 %v2390
      %v2438 = vunpack.c.h.b16 %v2390
      %v2439 = vpack.c.b16 %v2407, %v2407
      %v2440 = vpack.c.b16 %v2408, %v2408
      %v2441 = vpack.c.b16 %v2409, %v2409
      %v2442 = vpack.c.b16 %v2410, %v2410
      %v2443 = vpack.c.b16 %v2411, %v2411
      %v2444 = vpack.c.b16 %v2412, %v2412
      %v2445 = vpack.c.b16 %v2413, %v2413
      %v2446 = vpack.c.b16 %v2414, %v2414
      %v2447 = vpack.c.b16 %v2415, %v2415
      %v2448 = vpack.c.b16 %v2416, %v2416
      %v2449 = vpack.c.b16 %v2417, %v2417
      %v2450 = vpack.c.b16 %v2418, %v2418
      %v2451 = vpack.c.b16 %v2419, %v2419
      %v2452 = vpack.c.b16 %v2420, %v2420
      %v2453 = vpack.c.b16 %v2421, %v2421
      %v2454 = vpack.c.b16 %v2422, %v2422
      %v2455 = vpack.c.b16 %v2423, %v2423
      %v2456 = vpack.c.b16 %v2424, %v2424
      %v2457 = vpack.c.b16 %v2425, %v2425
      %v2458 = vpack.c.b16 %v2426, %v2426
      %v2459 = vpack.c.b16 %v2427, %v2427
      %v2460 = vpack.c.b16 %v2428, %v2428
      %v2461 = vpack.c.b16 %v2429, %v2429
      %v2462 = vpack.c.b16 %v2430, %v2430
      %v2463 = vpack.c.b16 %v2431, %v2431
      %v2464 = vpack.c.b16 %v2432, %v2432
      %v2465 = vpack.c.b16 %v2433, %v2433
      %v2466 = vpack.c.b16 %v2434, %v2434
      %v2467 = vpack.c.b16 %v2435, %v2435
      %v2468 = vpack.c.b16 %v2436, %v2436
      %v2469 = vpack.c.b16 %v2437, %v2437
      %v2470 = vpack.c.b16 %v2438, %v2438
      %2503 = vst [vmem:[%s262] sm:$0xf] %v2439
      %2504 = vst [vmem:[%s262 + $0x4] sm:$0xf] %v2440
      %2505 = vst [vmem:[%s262 + $0x8] sm:$0xf] %v2441
      %2506 = vst [vmem:[%s262 + $0xc] sm:$0xf] %v2442
      %2507 = vst [vmem:[%s262 + $0x10] sm:$0xf] %v2443
      %2508 = vst [vmem:[%s262 + $0x14] sm:$0xf] %v2444
      %2509 = vst [vmem:[%s262 + $0x18] sm:$0xf] %v2445
      %2510 = vst [vmem:[%s262 + $0x1c] sm:$0xf] %v2446
      %2511 = vst [vmem:[%s262 + $0x20] sm:$0xf] %v2447
      %2512 = vst [vmem:[%s262 + $0x24] sm:$0xf] %v2448
      %2513 = vst [vmem:[%s262 + $0x28] sm:$0xf] %v2449
      %2514 = vst [vmem:[%s262 + $0x2c] sm:$0xf] %v2450
      %2515 = vst [vmem:[%s262 + $0x30] sm:$0xf] %v2451
      %2516 = vst [vmem:[%s262 + $0x34] sm:$0xf] %v2452
      %2517 = vst [vmem:[%s262 + $0x38] sm:$0xf] %v2453
      %2518 = vst [vmem:[%s262 + $0x3c] sm:$0xf] %v2454
      %2519 = vst [vmem:[%s262 + $0x40] sm:$0xf] %v2455
      %2520 = vst [vmem:[%s262 + $0x44] sm:$0xf] %v2456
      %2521 = vst [vmem:[%s262 + $0x48] sm:$0xf] %v2457
      %2522 = vst [vmem:[%s262 + $0x4c] sm:$0xf] %v2458
      %2523 = vst [vmem:[%s262 + $0x50] sm:$0xf] %v2459
      %2524 = vst [vmem:[%s262 + $0x54] sm:$0xf] %v2460
      %2525 = vst [vmem:[%s262 + $0x58] sm:$0xf] %v2461
      %2526 = vst [vmem:[%s262 + $0x5c] sm:$0xf] %v2462
      %2527 = vst [vmem:[%s262 + $0x60] sm:$0xf] %v2463
      %2528 = vst [vmem:[%s262 + $0x64] sm:$0xf] %v2464
      %2529 = vst [vmem:[%s262 + $0x68] sm:$0xf] %v2465
      %2530 = vst [vmem:[%s262 + $0x6c] sm:$0xf] %v2466
      %2531 = vst [vmem:[%s262 + $0x70] sm:$0xf] %v2467
      %2532 = vst [vmem:[%s262 + $0x74] sm:$0xf] %v2468
      %2533 = vst [vmem:[%s262 + $0x78] sm:$0xf] %v2469
      %2534 = vst [vmem:[%s262 + $0x7c] sm:$0xf] %v2470
      %v2535 = vunpack.c.l.bf16 %v2375
      %v2536 = vunpack.c.h.bf16 %v2375
      %v2537 = vunpack.c.l.bf16 %v2376
      %v2538 = vunpack.c.h.bf16 %v2376
      %v2539 = vunpack.c.l.bf16 %v2377
      %v2540 = vunpack.c.h.bf16 %v2377
      %v2541 = vunpack.c.l.bf16 %v2378
      %v2542 = vunpack.c.h.bf16 %v2378
      %v2543 = vunpack.c.l.bf16 %v2379
      %v2544 = vunpack.c.h.bf16 %v2379
      %v2545 = vunpack.c.l.bf16 %v2380
      %v2546 = vunpack.c.h.bf16 %v2380
      %v2547 = vunpack.c.l.bf16 %v2381
      %v2548 = vunpack.c.h.bf16 %v2381
      %v2549 = vunpack.c.l.bf16 %v2382
      %v2550 = vunpack.c.h.bf16 %v2382
      %v2551 = vunpack.c.l.bf16 %v2383
      %v2552 = vunpack.c.h.bf16 %v2383
      %v2553 = vunpack.c.l.bf16 %v2384
      %v2554 = vunpack.c.h.bf16 %v2384
      %v2555 = vunpack.c.l.bf16 %v2385
      %v2556 = vunpack.c.h.bf16 %v2385
      %v2557 = vunpack.c.l.bf16 %v2386
      %v2558 = vunpack.c.h.bf16 %v2386
      %v2559 = vunpack.c.l.bf16 %v2387
      %v2560 = vunpack.c.h.bf16 %v2387
      %v2561 = vunpack.c.l.bf16 %v2388
      %v2562 = vunpack.c.h.bf16 %v2388
      %v2563 = vunpack.c.l.bf16 %v2389
      %v2564 = vunpack.c.h.bf16 %v2389
      %v2565 = vunpack.c.l.bf16 %v2390
      %v2566 = vunpack.c.h.bf16 %v2390
      %v2567 = vadd.f32 %v2535, %v2536
      %v2568 = vadd.f32 %v2567, %v2537
      %v2569 = vadd.f32 %v2568, %v2538
      %v2570 = vadd.f32 %v2569, %v2539
      %v2571 = vadd.f32 %v2570, %v2540
      %v2572 = vadd.f32 %v2571, %v2541
      %v2573 = vadd.f32 %v2572, %v2542
      %v2574 = vadd.f32 %v2573, %v2543
      %v2575 = vadd.f32 %v2574, %v2544
      %v2576 = vadd.f32 %v2575, %v2545
      %v2577 = vadd.f32 %v2576, %v2546
      %v2578 = vadd.f32 %v2577, %v2547
      %v2579 = vadd.f32 %v2578, %v2548
      %v2580 = vadd.f32 %v2579, %v2549
      %v2581 = vadd.f32 %v2580, %v2550
      %v2582 = vadd.f32 %v2581, %v2551
      %v2583 = vadd.f32 %v2582, %v2552
      %v2584 = vadd.f32 %v2583, %v2553
      %v2585 = vadd.f32 %v2584, %v2554
      %v2586 = vadd.f32 %v2585, %v2555
      %v2587 = vadd.f32 %v2586, %v2556
      %v2588 = vadd.f32 %v2587, %v2557
      %v2589 = vadd.f32 %v2588, %v2558
      %v2590 = vadd.f32 %v2589, %v2559
      %v2591 = vadd.f32 %v2590, %v2560
      %v2592 = vadd.f32 %v2591, %v2561
      %v2593 = vadd.f32 %v2592, %v2562
      %v2594 = vadd.f32 %v2593, %v2563
      %v2595 = vadd.f32 %v2594, %v2564
      %v2596 = vadd.f32 %v2595, %v2565
      %v2597 = vadd.f32 %v2596, %v2566
      %v2598 = vrot.slane %v2597, 4
      %v2599 = vadd.f32 %v2597, %v2598
      %v2600 = vrot.slane %v2599, 2
      %v2601 = vadd.f32 %v2599, %v2600
      %v2602 = vrot.slane %v2601, 1
      %v2603 = vadd.f32 %v2601, %v2602
      %2604 = vst [vmem:[%s265] sm:$0x1] %v2603
      %v2605 = vmul.f32 %v2535, %v2535
      %v2606 = vmul.f32 %v2536, %v2536
      %v2607 = vmul.f32 %v2537, %v2537
      %v2608 = vmul.f32 %v2538, %v2538
      %v2609 = vmul.f32 %v2539, %v2539
      %v2610 = vmul.f32 %v2540, %v2540
      %v2611 = vmul.f32 %v2541, %v2541
      %v2612 = vmul.f32 %v2542, %v2542
      %v2613 = vmul.f32 %v2543, %v2543
      %v2614 = vmul.f32 %v2544, %v2544
      %v2615 = vmul.f32 %v2545, %v2545
      %v2616 = vmul.f32 %v2546, %v2546
      %v2617 = vmul.f32 %v2547, %v2547
      %v2618 = vmul.f32 %v2548, %v2548
      %v2619 = vmul.f32 %v2549, %v2549
      %v2620 = vmul.f32 %v2550, %v2550
      %v2621 = vmul.f32 %v2551, %v2551
      %v2622 = vmul.f32 %v2552, %v2552
      %v2623 = vmul.f32 %v2553, %v2553
      %v2624 = vmul.f32 %v2554, %v2554
      %v2625 = vmul.f32 %v2555, %v2555
      %v2626 = vmul.f32 %v2556, %v2556
      %v2627 = vmul.f32 %v2557, %v2557
      %v2628 = vmul.f32 %v2558, %v2558
      %v2629 = vmul.f32 %v2559, %v2559
      %v2630 = vmul.f32 %v2560, %v2560
      %v2631 = vmul.f32 %v2561, %v2561
      %v2632 = vmul.f32 %v2562, %v2562
      %v2633 = vmul.f32 %v2563, %v2563
      %v2634 = vmul.f32 %v2564, %v2564
      %v2635 = vmul.f32 %v2565, %v2565
      %v2636 = vmul.f32 %v2566, %v2566
      %v2637 = vadd.f32 %v2605, %v2606
      %v2638 = vadd.f32 %v2637, %v2607
      %v2639 = vadd.f32 %v2638, %v2608
      %v2640 = vadd.f32 %v2639, %v2609
      %v2641 = vadd.f32 %v2640, %v2610
      %v2642 = vadd.f32 %v2641, %v2611
      %v2643 = vadd.f32 %v2642, %v2612
      %v2644 = vadd.f32 %v2643, %v2613
      %v2645 = vadd.f32 %v2644, %v2614
      %v2646 = vadd.f32 %v2645, %v2615
      %v2647 = vadd.f32 %v2646, %v2616
      %v2648 = vadd.f32 %v2647, %v2617
      %v2649 = vadd.f32 %v2648, %v2618
      %v2650 = vadd.f32 %v2649, %v2619
      %v2651 = vadd.f32 %v2650, %v2620
      %v2652 = vadd.f32 %v2651, %v2621
      %v2653 = vadd.f32 %v2652, %v2622
      %v2654 = vadd.f32 %v2653, %v2623
      %v2655 = vadd.f32 %v2654, %v2624
      %v2656 = vadd.f32 %v2655, %v2625
      %v2657 = vadd.f32 %v2656, %v2626
      %v2658 = vadd.f32 %v2657, %v2627
      %v2659 = vadd.f32 %v2658, %v2628
      %v2660 = vadd.f32 %v2659, %v2629
      %v2661 = vadd.f32 %v2660, %v2630
      %v2662 = vadd.f32 %v2661, %v2631
      %v2663 = vadd.f32 %v2662, %v2632
      %v2664 = vadd.f32 %v2663, %v2633
      %v2665 = vadd.f32 %v2664, %v2634
      %v2666 = vadd.f32 %v2665, %v2635
      %v2667 = vadd.f32 %v2666, %v2636
      %v2668 = vrot.slane %v2667, 4
      %v2669 = vadd.f32 %v2667, %v2668
      %v2670 = vrot.slane %v2669, 2
      %v2671 = vadd.f32 %v2669, %v2670
      %v2672 = vrot.slane %v2671, 1
      %v2673 = vadd.f32 %v2671, %v2672
      %2674 = vst [vmem:[%s268] sm:$0x1] %v2673
      %p2675 = scmp.lt.s32.totalorder %s18, 1
      %s2676 = scalar_select %p2675, %s18, 1
      %s2677 = smul.addr %s2676, 32
      %s2678 = smul.addr %s2677, 4
      %s2679 = scalar_lea.vmem %s4, %s2678
      %p2680 = scmp.lt.s32.totalorder %s18, 1
      %s2681 = scalar_select %p2680, %s18, 1
      %s2682 = scalar_lea.vmem %s5, %s2681
      %p2683 = scmp.lt.s32.totalorder %s18, 1
      %s2684 = scalar_select %p2683, %s18, 1
      %s2685 = scalar_lea.vmem %s6, %s2684
      // Predicated region
      $region37: #{_forward_impl.4} parent=35 // pred_check
        %p2686 = pneg %p125
      $region38: #{_forward_impl.4} parent=35 // pred_check_branch
        %2688 = sbr.rel (%p2686) target = $region40
      $region39: #{_forward_impl.4} parent=35 // pred_region
        _
      $region40: #{_forward_impl.4} parent=35 // pred_fallthru
        _
      // Predicated region
      $region41: #{_forward_impl.4} parent=35 // pred_check
        %p2689 = pneg %p151
      $region42: #{_forward_impl.4} parent=35 // pred_check_branch
        %2691 = sbr.rel (%p2689) target = $region44
      $region43: #{_forward_impl.4} parent=35 // pred_region
        _
      $region44: #{_forward_impl.4} parent=35 // pred_fallthru
        _
      // Predicated region
      $region45: #{_forward_impl.4} parent=35 // pred_check
        %p2692 = pneg %p177
      $region46: #{_forward_impl.4} parent=35 // pred_check_branch
        %2694 = sbr.rel (%p2692) target = $region48
      $region47: #{_forward_impl.4} parent=35 // pred_region
        _
      $region48: #{_forward_impl.4} parent=35 // pred_fallthru
        _
    $region36: #{_forward_impl.4} parent=5 // pred_fallthru
      _
    %p2695 = scmp.le.s32.totalorder 2, %s13
    // Predicated region
    $region49: #{_forward_impl.4} parent=5 // pred_check
      %p2696 = pneg %p2695
    $region50: #{_forward_impl.4} parent=5 // pred_check_branch
      %2698 = sbr.rel (%p2696) target = $region52
    $region51: #{_forward_impl.4} parent=5 // pred_region
      %s2699 = ssub.s32 %s13, 2
      // Predicated region
      $region53: #{_forward_impl.4} parent=51 // pred_check
        %p2700 = pneg %p131
      $region54: #{_forward_impl.4} parent=51 // pred_check_branch
        %2702 = sbr.rel (%p2700) target = $region56
      $region55: #{_forward_impl.4} parent=51 // pred_region
        %p2703 = scmp.lt.s32.totalorder %s19, 1
        %s2704 = scalar_select %p2703, %s19, 1
        %s2705 = smul.addr %s2704, 32
        %s2706 = smul.addr %s2705, 4
        %s2707 = scalar_lea.vmem %s4, %s2706
      $region56: #{_forward_impl.4} parent=51 // pred_fallthru
        _
      // Predicated region
      $region57: #{_forward_impl.4} parent=51 // pred_check
        %p2708 = pneg %p157
      $region58: #{_forward_impl.4} parent=51 // pred_check_branch
        %2710 = sbr.rel (%p2708) target = $region60
      $region59: #{_forward_impl.4} parent=51 // pred_region
        %p2711 = scmp.lt.s32.totalorder %s19, 1
        %s2712 = scalar_select %p2711, %s19, 1
        %s2713 = scalar_lea.vmem %s5, %s2712
      $region60: #{_forward_impl.4} parent=51 // pred_fallthru
        _
      // Predicated region
      $region61: #{_forward_impl.4} parent=51 // pred_check
        %p2714 = pneg %p183
      $region62: #{_forward_impl.4} parent=51 // pred_check_branch
        %2716 = sbr.rel (%p2714) target = $region64
      $region63: #{_forward_impl.4} parent=51 // pred_region
        %p2717 = scmp.lt.s32.totalorder %s19, 1
        %s2718 = scalar_select %p2717, %s19, 1
        %s2719 = scalar_lea.vmem %s6, %s2718
      $region64: #{_forward_impl.4} parent=51 // pred_fallthru
        _
    $region52: #{_forward_impl.4} parent=5 // pred_fallthru
      _
  $region6: #{_forward_impl.4} parent=0 // loop_footer
    %s17 = sadd.s32 1, %s13
  $region7: #{_forward_impl.4} parent=0 // loop_footer_branch
    %12 = sbr.rel target = $region3
  $region8: #{_forward_impl.4} parent=0 // loop_exit
    _

</llo_original>
